<compile_context>
chip_gen: v6e
topology: v6e:2x2x1
jax: 0.10.0
libtpu: 0.0.40
codegen_flags: <defaults>
</compile_context>

<pallas_src>
import functools

import jax
import jax.numpy as jnp
from jax import lax
from jax.experimental import pallas as pl
from jax.experimental.pallas import tpu as pltpu

LANE = 128      # lane width
SUBLANE = 8     # f32 sublane tile


def _round_up(x, m):
    return ((x + m - 1) // m) * m


def _nbytes(shape, dtype):
    n = 1
    for d in shape:
        n *= int(d)
    return n * jnp.dtype(dtype).itemsize


# ----------------------------------------------------------------------------
# Fused encoder kernel: n_layers LSTM layers + FC, everything VMEM-resident.
# ----------------------------------------------------------------------------
def _make_encoder_kernel(S, Bt, Hp, n_layers, Sc):
    """S: seq_len, Bt: batch tile (x8), Hp: padded hidden (x128), Sc: chunk."""
    n_full = S // Sc
    rem = S - n_full * Sc

    def kernel(*refs):
        x_ref = refs[0]                        # (S*Bt, Ep) time-major, this tile
        w_refs = refs[1:1 + 3 * n_layers]      # per layer: w_ih, w_hh, b
        w_fc_ref = refs[1 + 3 * n_layers]      # (n_layers*Hp, Op)
        b_fc_ref = refs[2 + 3 * n_layers]      # (1, Op)
        out_ref = refs[3 + 3 * n_layers]       # (Bt, Op)
        seq_scr = refs[4 + 3 * n_layers]       # (S*Bt, Hp)  prev-layer outputs
        gx_scr = refs[5 + 3 * n_layers]        # (Sc*Bt, 4*Hp) chunk of x@W_ih+b

        out_acc = jnp.zeros(out_ref.shape, jnp.float32)

        for l in range(n_layers):
            # Hoisted once per layer (not once per time step).
            w_ih = w_refs[3 * l][...]
            w_hh = w_refs[3 * l + 1][...]
            bias = w_refs[3 * l + 2][...]

            def chunk_body(cidx, carry, csize):
                h, c = carry
                row0 = cidx * (Sc * Bt)
                if not isinstance(row0, int):
                    row0 = pl.multiple_of(row0, SUBLANE)
                # (1) Hoisted input projection for csize time steps: one
                #     lane-dense (csize*Bt, Din) @ (Din, 4*Hp) matmul.
                if l == 0:
                    x_chunk = x_ref[pl.ds(row0, csize * Bt), :]
                else:
                    x_chunk = seq_scr[pl.ds(row0, csize * Bt), :]
                gx_scr[0:csize * Bt, :] = (
                    jnp.dot(x_chunk, w_ih, preferred_element_type=jnp.float32)
                    + bias)
                # (2) Serial recurrence within the chunk (csize small & static).
                for t in range(csize):
                    gates = (gx_scr[t * Bt:(t + 1) * Bt, :]
                             + jnp.dot(h.astype(w_hh.dtype), w_hh,
                                       preferred_element_type=jnp.float32))
                    # Gate slices are 128-lane aligned (Hp % 128 == 0).
                    i_g = jax.nn.sigmoid(gates[:, 0 * Hp:1 * Hp])
                    f_g = jax.nn.sigmoid(gates[:, 1 * Hp:2 * Hp])
                    g_g = jnp.tanh(gates[:, 2 * Hp:3 * Hp])
                    o_g = jax.nn.sigmoid(gates[:, 3 * Hp:4 * Hp])
                    c = f_g * c + i_g * g_g
                    h = o_g * jnp.tanh(c)
                    if l < n_layers - 1:       # last layer's sequence is unused
                        seq_scr[pl.ds(row0 + t * Bt, Bt), :] = (
                            h.astype(seq_scr.dtype))
                return h, c

            h = jnp.zeros((Bt, Hp), jnp.float32)
            c = jnp.zeros((Bt, Hp), jnp.float32)
            if n_full > 1:
                # fori_loop keeps code size / vreg live ranges bounded at
                # large S; the chunk interior stays statically unrolled.
                h, c = lax.fori_loop(
                    0, n_full, lambda k, hc: chunk_body(k, hc, Sc), (h, c))
            else:
                for k in range(n_full):
                    h, c = chunk_body(k, (h, c), Sc)
            if rem:
                h, c = chunk_body(n_full, (h, c), rem)

            # (3) Fused FC partial for this layer's final hidden state
            #     (== PyTorch hidden.permute(1,0,2).reshape(B, L*H) @ W_fc).
            out_acc = out_acc + jnp.dot(
                h.astype(w_fc_ref.dtype), w_fc_ref[l * Hp:(l + 1) * Hp, :],
                preferred_element_type=jnp.float32)

        # (4) Dropout is identity in eval mode.
        out_ref[...] = (out_acc + b_fc_ref[...]).astype(out_ref.dtype)

    return kernel


# ----------------------------------------------------------------------------
# Parameter construction (PyTorch-equivalent layout) and kernel packing.
# ----------------------------------------------------------------------------
def init_params(key, input_dim, emb_dim, hid_dim, out_dim, n_layers):
    keys = jax.random.split(key, 3 + 4 * n_layers)
    params = {}
    params["embedding"] = 0.1 * jax.random.normal(
        keys[0], (input_dim, emb_dim), dtype=jnp.float32)

    k_idx = 1
    for l in range(n_layers):
        in_dim = emb_dim if l == 0 else hid_dim
        scale = 1.0 / jnp.sqrt(hid_dim)
        params[f"w_ih_{l}"] = scale * jax.random.normal(
            keys[k_idx], (in_dim, 4 * hid_dim), dtype=jnp.float32)
        params[f"w_hh_{l}"] = scale * jax.random.normal(
            keys[k_idx + 1], (hid_dim, 4 * hid_dim), dtype=jnp.float32)
        b_ih = scale * jax.random.normal(
            keys[k_idx + 2], (4 * hid_dim,), dtype=jnp.float32)
        b_hh = scale * jax.random.normal(
            keys[k_idx + 3], (4 * hid_dim,), dtype=jnp.float32)
        params[f"b_{l}"] = (b_ih + b_hh).reshape(1, 4 * hid_dim)
        k_idx += 4

    fc_scale = 1.0 / jnp.sqrt(n_layers * hid_dim)
    params["w_fc"] = fc_scale * jax.random.normal(
        keys[k_idx], (n_layers * hid_dim, out_dim), dtype=jnp.float32)
    params["b_fc"] = fc_scale * jax.random.normal(
        keys[k_idx + 1], (1, out_dim), dtype=jnp.float32)
    return params


def _pad_gate_matrix(w, rows_pad, h, hp):
    """(rows, 4*h) -> (rows_pad, 4*hp), each gate block padded separately."""
    rows = w.shape[0]
    w4 = w.reshape(rows, 4, h)
    w4 = jnp.pad(w4, ((0, rows_pad - rows), (0, 0), (0, hp - h)))
    return w4.reshape(rows_pad, 4 * hp)


def pack_params(params, hid_dim, n_layers, out_dim, mxu_dtype=jnp.bfloat16):
    """Pad params to lane/sublane-aligned kernel layout.

    Default mxu_dtype is bf16 (2x MXU rate, half the weight VMEM on all
    generations); gate math / accumulation stay f32 inside the kernel.
    Use jnp.float32 to match PyTorch numerics exactly.
    """
    h, hp = hid_dim, _round_up(hid_dim, LANE)
    emb_dim = params["w_ih_0"].shape[0]
    ep = _round_up(emb_dim, LANE)
    op = _round_up(out_dim, LANE)

    packed = {"embedding": params["embedding"]}
    for l in range(n_layers):
        in_pad = ep if l == 0 else hp
        packed[f"w_ih_{l}"] = _pad_gate_matrix(
            params[f"w_ih_{l}"], in_pad, h, hp).astype(mxu_dtype)
        packed[f"w_hh_{l}"] = _pad_gate_matrix(
            params[f"w_hh_{l}"], hp, h, hp).astype(mxu_dtype)
        b4 = params[f"b_{l}"].reshape(1, 4, h)
        packed[f"b_{l}"] = jnp.pad(
            b4, ((0, 0), (0, 0), (0, hp - h))).reshape(1, 4 * hp).astype(jnp.float32)

    w_fc = params["w_fc"]                               # (n_layers*h, out_dim)
    w_fc_p = jnp.zeros((n_layers * hp, op), mxu_dtype)
    for l in range(n_layers):
        w_fc_p = w_fc_p.at[l * hp:l * hp + h, :out_dim].set(
            w_fc[l * h:(l + 1) * h].astype(mxu_dtype))
    packed["w_fc"] = w_fc_p
    packed["b_fc"] = jnp.pad(
        params["b_fc"], ((0, 0), (0, op - out_dim))).astype(jnp.float32)
    return packed


def _choose_batch_tiling(batch):
    """Pad batch to sublanes and split into (at most) two tiles for megacore."""
    bp = _round_up(max(batch, SUBLANE), SUBLANE)
    if bp >= 2 * SUBLANE:
        bp = _round_up(bp, 2 * SUBLANE)
        return bp, bp // 2, 2
    return bp, bp, 1


# ----------------------------------------------------------------------------
# Full forward
# ----------------------------------------------------------------------------
@functools.partial(jax.jit, static_argnames=("n_layers", "out_dim", "seq_chunk"))
def lstm_encoder_forward(packed, src, n_layers, out_dim, seq_chunk=16):
    """src: (S, B) int32 token ids -> (B, out_dim) float32 (eval mode)."""
    S, B = src.shape
    Ep = packed["w_ih_0"].shape[0]
    Hp = packed["w_hh_0"].shape[0]
    Op = packed["w_fc"].shape[1]
    mxu_dtype = packed["w_ih_0"].dtype

    Bp, Bt, n_tiles = _choose_batch_tiling(B)
    Sc = max(1, min(seq_chunk, S))

    # Embedding lookup (glue: gather in plain JAX), pad batch/feature dims and
    # re-lay out as one contiguous time-major slab per batch tile so every
    # in-kernel operand is 2-D and lane/sublane aligned.
    # NOTE: padded batch rows receive the bias (nonzero h/c); they are sliced
    # off below and must never be reduced over inside the kernel.
    # TODO(synk): nn.Dropout is identity in eval mode; training-mode dropout
    # (with PyTorch RNG semantics) is not reproduced here.
    emb = packed["embedding"]
    x = emb[src]                                              # (S, B, E)
    x = jnp.pad(x, ((0, 0), (0, Bp - B), (0, Ep - emb.shape[1])))
    x = x.astype(mxu_dtype).reshape(S, n_tiles, Bt, Ep)
    x = x.transpose(1, 0, 2, 3).reshape(n_tiles, S * Bt, Ep)

    args = [x]
    for l in range(n_layers):
        args += [packed[f"w_ih_{l}"], packed[f"w_hh_{l}"], packed[f"b_{l}"]]
    args += [packed["w_fc"], packed["b_fc"]]

    in_specs = [pl.BlockSpec((None, S * Bt, Ep), lambda i: (i, 0, 0))]
    for a in args[1:]:
        # Full-array blocks, resident across the (small) batch-tile grid.
        in_specs.append(pl.BlockSpec(a.shape, lambda i: (0, 0)))
    out_spec = pl.BlockSpec((Bt, Op), lambda i: (i, 0))

    seq_shape = (S * Bt, Hp) if n_layers > 1 else (SUBLANE, LANE)
    scratch_shapes = [
        pltpu.VMEM(seq_shape, mxu_dtype),                 # prev-layer outputs
        pltpu.VMEM((Sc * Bt, 4 * Hp), jnp.float32),       # one chunk of x@W_ih+b
    ]

    # Scoped-VMEM budget from the actual footprint (defaults are 16/32 MiB).
    vmem = 2 * _nbytes((S * Bt, Ep), mxu_dtype)           # x block (dbl-buffered)
    vmem += 2 * sum(_nbytes(a.shape, a.dtype) for a in args[1:])
    vmem += 2 * _nbytes((Bt, Op), jnp.float32)
    vmem += _nbytes(seq_shape, mxu_dtype)
    vmem += _nbytes((Sc * Bt, 4 * Hp), jnp.float32)
    vmem_limit = int(min(max(vmem * 3 // 2 + (8 << 20), 32 << 20), 112 << 20))

    out = pl.pallas_call(
        _make_encoder_kernel(S, Bt, Hp, n_layers, Sc),
        out_shape=jax.ShapeDtypeStruct((Bp, Op), jnp.float32),
        grid=(n_tiles,),
        in_specs=in_specs,
        out_specs=out_spec,
        scratch_shapes=scratch_shapes,
        compiler_params=pltpu.CompilerParams(
            dimension_semantics=("parallel",),
            vmem_limit_bytes=vmem_limit),
    )(*args)
    return out[:B, :out_dim]


# ----------------------------------------------------------------------------
# Pure-JAX reference (unpadded, highest matmul precision) for correctness.
# ----------------------------------------------------------------------------
def lstm_encoder_reference(params, src, n_layers, hid_dim):
    prec = jax.lax.Precision.HIGHEST
    x = params["embedding"][src]
    S, B, _ = x.shape
    h_finals = []
    for l in range(n_layers):
        w_ih, w_hh, b = params[f"w_ih_{l}"], params[f"w_hh_{l}"], params[f"b_{l}"]
        h = jnp.zeros((B, hid_dim), jnp.float32)
        c = jnp.zeros((B, hid_dim), jnp.float32)
        outs = []
        for t in range(S):
            gates = (jnp.dot(x[t], w_ih, precision=prec)
                     + jnp.dot(h, w_hh, precision=prec) + b)
            i = jax.nn.sigmoid(gates[:, :hid_dim])
            f = jax.nn.sigmoid(gates[:, hid_dim:2 * hid_dim])
            g = jnp.tanh(gates[:, 2 * hid_dim:3 * hid_dim])
            o = jax.nn.sigmoid(gates[:, 3 * hid_dim:])
            c = f * c + i * g
            h = o * jnp.tanh(c)
            outs.append(h)
        x = jnp.stack(outs, 0)
        h_finals.append(h)
    hidden = jnp.transpose(jnp.stack(h_finals, 0), (1, 0, 2)).reshape(
        B, n_layers * hid_dim)
    return jnp.dot(hidden, params["w_fc"], precision=prec) + params["b_fc"]


if __name__ == "__main__":
    # Small shapes consistent with the module's forward.
    input_dim = 50      # vocab size
    emb_dim = 16
    hid_dim = 32
    out_dim = 8
    n_layers = 2
    seq_len = 8
    batch_size = 12     # -> Bp=16, two batch tiles (exercises the parallel grid)

    key = jax.random.PRNGKey(0)
    k_params, k_src = jax.random.split(key)

    params = init_params(k_params, input_dim, emb_dim, hid_dim,
                         out_dim, n_layers)
    src = jax.random.randint(k_src, (seq_len, batch_size), 0, input_dim,
                             dtype=jnp.int32)
    ref = lstm_encoder_reference(params, src, n_layers, hid_dim)

    # (a) f32 weights: exact-numerics check (seq_chunk=4 exercises the
    #     fori_loop chunked-gx path: 2 full chunks per layer).
    packed_f32 = pack_params(params, hid_dim, n_layers, out_dim,
                             mxu_dtype=jnp.float32)
    out_f32 = jax.block_until_ready(
        lstm_encoder_forward(packed_f32, src, n_layers=n_layers,
                             out_dim=out_dim, seq_chunk=4))
    assert out_f32.shape == (batch_size, out_dim)
    assert bool(jnp.allclose(out_f32, ref, atol=2e-3, rtol=2e-3))

    # (b) default bf16 weights/scratch (2x MXU rate, half the weight VMEM);
    #     accumulation stays f32 — looser tolerance for bf16 rounding.
    packed_bf16 = pack_params(params, hid_dim, n_layers, out_dim)
    out_bf16 = jax.block_until_ready(
        lstm_encoder_forward(packed_bf16, src, n_layers=n_layers,
                             out_dim=out_dim, seq_chunk=4))
    assert out_bf16.shape == (batch_size, out_dim)
    assert bool(jnp.allclose(out_bf16, ref, atol=1e-1, rtol=1e-1))

    print("KERNEL_OK")
</pallas_src>

<mosaic_0001>
module attributes {stable_mosaic.version = 11 : i64} {
  func.func @kernel(%arg0: i32, %arg1: memref<1x64x128xf32, #tpu.memory_space<vmem>>, %arg2: memref<128x512xf32, #tpu.memory_space<vmem>>, %arg3: memref<128x512xf32, #tpu.memory_space<vmem>>, %arg4: memref<1x512xf32, #tpu.memory_space<vmem>>, %arg5: memref<128x512xf32, #tpu.memory_space<vmem>>, %arg6: memref<128x512xf32, #tpu.memory_space<vmem>>, %arg7: memref<1x512xf32, #tpu.memory_space<vmem>>, %arg8: memref<256x128xf32, #tpu.memory_space<vmem>>, %arg9: memref<1x128xf32, #tpu.memory_space<vmem>>, %arg10: memref<8x128xf32, #tpu.memory_space<vmem>>, %arg11: memref<64x128xf32, #tpu.memory_space<vmem>>, %arg12: memref<32x512xf32, #tpu.memory_space<vmem>>) attributes {dimension_semantics = [#tpu.dimension_semantics<parallel>], iteration_bounds = array<i64: 2>, scalar_prefetch = 0 : i64, scratch_operands = 2 : i64, tpu.core_type = #tpu.core_type<tc>, window_params = [{transform_indices = @transform_0, window_bounds = array<i64: 1, 64, 128>}, {pipeline_mode = #tpu.pipeline_mode<synchronous>, transform_indices = @transform_1, window_bounds = array<i64: 128, 512>}, {pipeline_mode = #tpu.pipeline_mode<synchronous>, transform_indices = @transform_2, window_bounds = array<i64: 128, 512>}, {pipeline_mode = #tpu.pipeline_mode<synchronous>, transform_indices = @transform_3, window_bounds = array<i64: 1, 512>}, {pipeline_mode = #tpu.pipeline_mode<synchronous>, transform_indices = @transform_4, window_bounds = array<i64: 128, 512>}, {pipeline_mode = #tpu.pipeline_mode<synchronous>, transform_indices = @transform_5, window_bounds = array<i64: 128, 512>}, {pipeline_mode = #tpu.pipeline_mode<synchronous>, transform_indices = @transform_6, window_bounds = array<i64: 1, 512>}, {pipeline_mode = #tpu.pipeline_mode<synchronous>, transform_indices = @transform_7, window_bounds = array<i64: 256, 128>}, {pipeline_mode = #tpu.pipeline_mode<synchronous>, transform_indices = @transform_8, window_bounds = array<i64: 1, 128>}, {transform_indices = @transform_9, window_bounds = array<i64: 8, 128>}]} {
    %cst = arith.constant 0.000000e+00 : f32
    %0 = vector.broadcast %cst : f32 to vector<8x128xf32>
    %c0 = arith.constant 0 : index
    %c0_0 = arith.constant 0 : index
    %1 = vector.load %arg2[%c0, %c0_0] : memref<128x512xf32, #tpu.memory_space<vmem>>, vector<128x512xf32>
    %c0_1 = arith.constant 0 : index
    %c0_2 = arith.constant 0 : index
    %2 = vector.load %arg3[%c0_1, %c0_2] : memref<128x512xf32, #tpu.memory_space<vmem>>, vector<128x512xf32>
    %c0_3 = arith.constant 0 : index
    %c0_4 = arith.constant 0 : index
    %3 = vector.load %arg4[%c0_3, %c0_4] : memref<1x512xf32, #tpu.memory_space<vmem>>, vector<1x512xf32>
    %cst_5 = arith.constant 0.000000e+00 : f32
    %4 = vector.broadcast %cst_5 : f32 to vector<8x128xf32>
    %cst_6 = arith.constant 0.000000e+00 : f32
    %5 = vector.broadcast %cst_6 : f32 to vector<8x128xf32>
    %c0_i32 = arith.constant 0 : i32
    %c2_i32 = arith.constant 2 : i32
    %6 = arith.addi %c0_i32, %c2_i32 : i32
    %c1_i32 = arith.constant 1 : i32
    %7:2 = scf.for %arg13 = %c0_i32 to %6 step %c1_i32 iter_args(%arg14 = %4, %arg15 = %5) -> (vector<8x128xf32>, vector<8x128xf32>)  : i32 {
      %c32_i32 = arith.constant 32 : i32
      %25 = arith.muli %arg13, %c32_i32 : i32
      %26 = tpu.assume_multiple %25, 8 : i32
      %c0_29 = arith.constant 0 : index
      %27 = arith.index_cast %26 : i32 to index
      %c0_30 = arith.constant 0 : index
      %28 = vector.load %arg1[%c0_29, %27, %c0_30] : memref<1x64x128xf32, #tpu.memory_space<vmem>>, vector<1x32x128xf32>
      %29 = vector.shape_cast %28 : vector<1x32x128xf32> to vector<32x128xf32>
      %cst_31 = arith.constant dense<0.000000e+00> : vector<32x512xf32>
      %30 = tpu.matmul %29, %1, %cst_31 {dimension_numbers = #tpu.dot_dimension_numbers<[1], [0], [0], [1], [0, 0, 1, 1], [], []>} : vector<32x128xf32>, vector<128x512xf32>, vector<32x512xf32> -> vector<32x512xf32>
      %31 = vector.broadcast %3 : vector<1x512xf32> to vector<32x512xf32>
      %32 = arith.addf %30, %31 : vector<32x512xf32>
      %c0_32 = arith.constant 0 : index
      %c0_33 = arith.constant 0 : index
      %33 = vector.load %arg12[%c0_32, %c0_33] : memref<32x512xf32, #tpu.memory_space<vmem>>, vector<32x512xf32>
      tpu.vector_store %arg12[%c0_32, %c0_33], %32 {strides = array<i32>} : memref<32x512xf32, #tpu.memory_space<vmem>>, vector<32x512xf32>,
      %c0_34 = arith.constant 0 : index
      %c0_35 = arith.constant 0 : index
      %34 = vector.load %arg12[%c0_34, %c0_35] : memref<32x512xf32, #tpu.memory_space<vmem>>, vector<8x512xf32>
      %cst_36 = arith.constant dense<0.000000e+00> : vector<8x512xf32>
      %35 = tpu.matmul %arg14, %2, %cst_36 {dimension_numbers = #tpu.dot_dimension_numbers<[1], [0], [0], [1], [0, 0, 1, 1], [], []>} : vector<8x128xf32>, vector<128x512xf32>, vector<8x512xf32> -> vector<8x512xf32>
      %36 = arith.addf %34, %35 : vector<8x512xf32>
      %37 = vector.extract_strided_slice %36 {offsets = [0, 0], sizes = [8, 128], strides = [1, 1]} : vector<8x512xf32> to vector<8x128xf32>
      %38 = arith.negf %37 : vector<8x128xf32>
      %39 = math.exp %38 : vector<8x128xf32>
      %cst_37 = arith.constant 1.000000e+00 : f32
      %40 = vector.broadcast %cst_37 : f32 to vector<8x128xf32>
      %41 = arith.addf %40, %39 : vector<8x128xf32>
      %42 = arith.divf %40, %41 : vector<8x128xf32>
      %43 = vector.extract_strided_slice %36 {offsets = [0, 128], sizes = [8, 128], strides = [1, 1]} : vector<8x512xf32> to vector<8x128xf32>
      %44 = arith.negf %43 : vector<8x128xf32>
      %45 = math.exp %44 : vector<8x128xf32>
      %cst_38 = arith.constant 1.000000e+00 : f32
      %46 = vector.broadcast %cst_38 : f32 to vector<8x128xf32>
      %47 = arith.addf %46, %45 : vector<8x128xf32>
      %48 = arith.divf %46, %47 : vector<8x128xf32>
      %49 = vector.extract_strided_slice %36 {offsets = [0, 256], sizes = [8, 128], strides = [1, 1]} : vector<8x512xf32> to vector<8x128xf32>
      %50 = math.tanh %49 : vector<8x128xf32>
      %51 = vector.extract_strided_slice %36 {offsets = [0, 384], sizes = [8, 128], strides = [1, 1]} : vector<8x512xf32> to vector<8x128xf32>
      %52 = arith.negf %51 : vector<8x128xf32>
      %53 = math.exp %52 : vector<8x128xf32>
      %cst_39 = arith.constant 1.000000e+00 : f32
      %54 = vector.broadcast %cst_39 : f32 to vector<8x128xf32>
      %55 = arith.addf %54, %53 : vector<8x128xf32>
      %56 = arith.divf %54, %55 : vector<8x128xf32>
      %57 = arith.mulf %48, %arg15 : vector<8x128xf32>
      %58 = arith.mulf %42, %50 : vector<8x128xf32>
      %59 = arith.addf %57, %58 : vector<8x128xf32>
      %60 = math.tanh %59 : vector<8x128xf32>
      %61 = arith.mulf %56, %60 : vector<8x128xf32>
      %c0_i32_40 = arith.constant 0 : i32
      %62 = arith.addi %26, %c0_i32_40 : i32
      %63 = arith.index_cast %62 : i32 to index
      %c0_41 = arith.constant 0 : index
      %64 = vector.load %arg11[%63, %c0_41] : memref<64x128xf32, #tpu.memory_space<vmem>>, vector<8x128xf32>
      tpu.vector_store %arg11[%63, %c0_41], %61 {strides = array<i32>} : memref<64x128xf32, #tpu.memory_space<vmem>>, vector<8x128xf32>,
      %c8 = arith.constant 8 : index
      %c0_42 = arith.constant 0 : index
      %65 = vector.load %arg12[%c8, %c0_42] : memref<32x512xf32, #tpu.memory_space<vmem>>, vector<8x512xf32>
      %cst_43 = arith.constant dense<0.000000e+00> : vector<8x512xf32>
      %66 = tpu.matmul %61, %2, %cst_43 {dimension_numbers = #tpu.dot_dimension_numbers<[1], [0], [0], [1], [0, 0, 1, 1], [], []>} : vector<8x128xf32>, vector<128x512xf32>, vector<8x512xf32> -> vector<8x512xf32>
      %67 = arith.addf %65, %66 : vector<8x512xf32>
      %68 = vector.extract_strided_slice %67 {offsets = [0, 0], sizes = [8, 128], strides = [1, 1]} : vector<8x512xf32> to vector<8x128xf32>
      %69 = arith.negf %68 : vector<8x128xf32>
      %70 = math.exp %69 : vector<8x128xf32>
      %cst_44 = arith.constant 1.000000e+00 : f32
      %71 = vector.broadcast %cst_44 : f32 to vector<8x128xf32>
      %72 = arith.addf %71, %70 : vector<8x128xf32>
      %73 = arith.divf %71, %72 : vector<8x128xf32>
      %74 = vector.extract_strided_slice %67 {offsets = [0, 128], sizes = [8, 128], strides = [1, 1]} : vector<8x512xf32> to vector<8x128xf32>
      %75 = arith.negf %74 : vector<8x128xf32>
      %76 = math.exp %75 : vector<8x128xf32>
      %cst_45 = arith.constant 1.000000e+00 : f32
      %77 = vector.broadcast %cst_45 : f32 to vector<8x128xf32>
      %78 = arith.addf %77, %76 : vector<8x128xf32>
      %79 = arith.divf %77, %78 : vector<8x128xf32>
      %80 = vector.extract_strided_slice %67 {offsets = [0, 256], sizes = [8, 128], strides = [1, 1]} : vector<8x512xf32> to vector<8x128xf32>
      %81 = math.tanh %80 : vector<8x128xf32>
      %82 = vector.extract_strided_slice %67 {offsets = [0, 384], sizes = [8, 128], strides = [1, 1]} : vector<8x512xf32> to vector<8x128xf32>
      %83 = arith.negf %82 : vector<8x128xf32>
      %84 = math.exp %83 : vector<8x128xf32>
      %cst_46 = arith.constant 1.000000e+00 : f32
      %85 = vector.broadcast %cst_46 : f32 to vector<8x128xf32>
      %86 = arith.addf %85, %84 : vector<8x128xf32>
      %87 = arith.divf %85, %86 : vector<8x128xf32>
      %88 = arith.mulf %79, %59 : vector<8x128xf32>
      %89 = arith.mulf %73, %81 : vector<8x128xf32>
      %90 = arith.addf %88, %89 : vector<8x128xf32>
      %91 = math.tanh %90 : vector<8x128xf32>
      %92 = arith.mulf %87, %91 : vector<8x128xf32>
      %c8_i32 = arith.constant 8 : i32
      %93 = arith.addi %26, %c8_i32 : i32
      %94 = arith.index_cast %93 : i32 to index
      %c0_47 = arith.constant 0 : index
      %95 = vector.load %arg11[%94, %c0_47] : memref<64x128xf32, #tpu.memory_space<vmem>>, vector<8x128xf32>
      tpu.vector_store %arg11[%94, %c0_47], %92 {strides = array<i32>} : memref<64x128xf32, #tpu.memory_space<vmem>>, vector<8x128xf32>,
      %c16 = arith.constant 16 : index
      %c0_48 = arith.constant 0 : index
      %96 = vector.load %arg12[%c16, %c0_48] : memref<32x512xf32, #tpu.memory_space<vmem>>, vector<8x512xf32>
      %cst_49 = arith.constant dense<0.000000e+00> : vector<8x512xf32>
      %97 = tpu.matmul %92, %2, %cst_49 {dimension_numbers = #tpu.dot_dimension_numbers<[1], [0], [0], [1], [0, 0, 1, 1], [], []>} : vector<8x128xf32>, vector<128x512xf32>, vector<8x512xf32> -> vector<8x512xf32>
      %98 = arith.addf %96, %97 : vector<8x512xf32>
      %99 = vector.extract_strided_slice %98 {offsets = [0, 0], sizes = [8, 128], strides = [1, 1]} : vector<8x512xf32> to vector<8x128xf32>
      %100 = arith.negf %99 : vector<8x128xf32>
      %101 = math.exp %100 : vector<8x128xf32>
      %cst_50 = arith.constant 1.000000e+00 : f32
      %102 = vector.broadcast %cst_50 : f32 to vector<8x128xf32>
      %103 = arith.addf %102, %101 : vector<8x128xf32>
      %104 = arith.divf %102, %103 : vector<8x128xf32>
      %105 = vector.extract_strided_slice %98 {offsets = [0, 128], sizes = [8, 128], strides = [1, 1]} : vector<8x512xf32> to vector<8x128xf32>
      %106 = arith.negf %105 : vector<8x128xf32>
      %107 = math.exp %106 : vector<8x128xf32>
      %cst_51 = arith.constant 1.000000e+00 : f32
      %108 = vector.broadcast %cst_51 : f32 to vector<8x128xf32>
      %109 = arith.addf %108, %107 : vector<8x128xf32>
      %110 = arith.divf %108, %109 : vector<8x128xf32>
      %111 = vector.extract_strided_slice %98 {offsets = [0, 256], sizes = [8, 128], strides = [1, 1]} : vector<8x512xf32> to vector<8x128xf32>
      %112 = math.tanh %111 : vector<8x128xf32>
      %113 = vector.extract_strided_slice %98 {offsets = [0, 384], sizes = [8, 128], strides = [1, 1]} : vector<8x512xf32> to vector<8x128xf32>
      %114 = arith.negf %113 : vector<8x128xf32>
      %115 = math.exp %114 : vector<8x128xf32>
      %cst_52 = arith.constant 1.000000e+00 : f32
      %116 = vector.broadcast %cst_52 : f32 to vector<8x128xf32>
      %117 = arith.addf %116, %115 : vector<8x128xf32>
      %118 = arith.divf %116, %117 : vector<8x128xf32>
      %119 = arith.mulf %110, %90 : vector<8x128xf32>
      %120 = arith.mulf %104, %112 : vector<8x128xf32>
      %121 = arith.addf %119, %120 : vector<8x128xf32>
      %122 = math.tanh %121 : vector<8x128xf32>
      %123 = arith.mulf %118, %122 : vector<8x128xf32>
      %c16_i32 = arith.constant 16 : i32
      %124 = arith.addi %26, %c16_i32 : i32
      %125 = arith.index_cast %124 : i32 to index
      %c0_53 = arith.constant 0 : index
      %126 = vector.load %arg11[%125, %c0_53] : memref<64x128xf32, #tpu.memory_space<vmem>>, vector<8x128xf32>
      tpu.vector_store %arg11[%125, %c0_53], %123 {strides = array<i32>} : memref<64x128xf32, #tpu.memory_space<vmem>>, vector<8x128xf32>,
      %c24 = arith.constant 24 : index
      %c0_54 = arith.constant 0 : index
      %127 = vector.load %arg12[%c24, %c0_54] : memref<32x512xf32, #tpu.memory_space<vmem>>, vector<8x512xf32>
      %cst_55 = arith.constant dense<0.000000e+00> : vector<8x512xf32>
      %128 = tpu.matmul %123, %2, %cst_55 {dimension_numbers = #tpu.dot_dimension_numbers<[1], [0], [0], [1], [0, 0, 1, 1], [], []>} : vector<8x128xf32>, vector<128x512xf32>, vector<8x512xf32> -> vector<8x512xf32>
      %129 = arith.addf %127, %128 : vector<8x512xf32>
      %130 = vector.extract_strided_slice %129 {offsets = [0, 0], sizes = [8, 128], strides = [1, 1]} : vector<8x512xf32> to vector<8x128xf32>
      %131 = arith.negf %130 : vector<8x128xf32>
      %132 = math.exp %131 : vector<8x128xf32>
      %cst_56 = arith.constant 1.000000e+00 : f32
      %133 = vector.broadcast %cst_56 : f32 to vector<8x128xf32>
      %134 = arith.addf %133, %132 : vector<8x128xf32>
      %135 = arith.divf %133, %134 : vector<8x128xf32>
      %136 = vector.extract_strided_slice %129 {offsets = [0, 128], sizes = [8, 128], strides = [1, 1]} : vector<8x512xf32> to vector<8x128xf32>
      %137 = arith.negf %136 : vector<8x128xf32>
      %138 = math.exp %137 : vector<8x128xf32>
      %cst_57 = arith.constant 1.000000e+00 : f32
      %139 = vector.broadcast %cst_57 : f32 to vector<8x128xf32>
      %140 = arith.addf %139, %138 : vector<8x128xf32>
      %141 = arith.divf %139, %140 : vector<8x128xf32>
      %142 = vector.extract_strided_slice %129 {offsets = [0, 256], sizes = [8, 128], strides = [1, 1]} : vector<8x512xf32> to vector<8x128xf32>
      %143 = math.tanh %142 : vector<8x128xf32>
      %144 = vector.extract_strided_slice %129 {offsets = [0, 384], sizes = [8, 128], strides = [1, 1]} : vector<8x512xf32> to vector<8x128xf32>
      %145 = arith.negf %144 : vector<8x128xf32>
      %146 = math.exp %145 : vector<8x128xf32>
      %cst_58 = arith.constant 1.000000e+00 : f32
      %147 = vector.broadcast %cst_58 : f32 to vector<8x128xf32>
      %148 = arith.addf %147, %146 : vector<8x128xf32>
      %149 = arith.divf %147, %148 : vector<8x128xf32>
      %150 = arith.mulf %141, %121 : vector<8x128xf32>
      %151 = arith.mulf %135, %143 : vector<8x128xf32>
      %152 = arith.addf %150, %151 : vector<8x128xf32>
      %153 = math.tanh %152 : vector<8x128xf32>
      %154 = arith.mulf %149, %153 : vector<8x128xf32>
      %c24_i32 = arith.constant 24 : i32
      %155 = arith.addi %26, %c24_i32 : i32
      %156 = arith.index_cast %155 : i32 to index
      %c0_59 = arith.constant 0 : index
      %157 = vector.load %arg11[%156, %c0_59] : memref<64x128xf32, #tpu.memory_space<vmem>>, vector<8x128xf32>
      tpu.vector_store %arg11[%156, %c0_59], %154 {strides = array<i32>} : memref<64x128xf32, #tpu.memory_space<vmem>>, vector<8x128xf32>,
      scf.yield %154, %152 : vector<8x128xf32>, vector<8x128xf32>
    }
    %c2_i32_7 = arith.constant 2 : i32
    %c0_8 = arith.constant 0 : index
    %c0_9 = arith.constant 0 : index
    %8 = vector.load %arg8[%c0_8, %c0_9] : memref<256x128xf32, #tpu.memory_space<vmem>>, vector<128x128xf32>
    %cst_10 = arith.constant dense<0.000000e+00> : vector<8x128xf32>
    %9 = tpu.matmul %7#0, %8, %cst_10 {dimension_numbers = #tpu.dot_dimension_numbers<[1], [0], [0], [1], [0, 0, 1, 1], [], []>} : vector<8x128xf32>, vector<128x128xf32>, vector<8x128xf32> -> vector<8x128xf32>
    %10 = arith.addf %0, %9 : vector<8x128xf32>
    %c0_11 = arith.constant 0 : index
    %c0_12 = arith.constant 0 : index
    %11 = vector.load %arg5[%c0_11, %c0_12] : memref<128x512xf32, #tpu.memory_space<vmem>>, vector<128x512xf32>
    %c0_13 = arith.constant 0 : index
    %c0_14 = arith.constant 0 : index
    %12 = vector.load %arg6[%c0_13, %c0_14] : memref<128x512xf32, #tpu.memory_space<vmem>>, vector<128x512xf32>
    %c0_15 = arith.constant 0 : index
    %c0_16 = arith.constant 0 : index
    %13 = vector.load %arg7[%c0_15, %c0_16] : memref<1x512xf32, #tpu.memory_space<vmem>>, vector<1x512xf32>
    %cst_17 = arith.constant 0.000000e+00 : f32
    %14 = vector.broadcast %cst_17 : f32 to vector<8x128xf32>
    %cst_18 = arith.constant 0.000000e+00 : f32
    %15 = vector.broadcast %cst_18 : f32 to vector<8x128xf32>
    %c0_i32_19 = arith.constant 0 : i32
    %c2_i32_20 = arith.constant 2 : i32
    %16 = arith.addi %c0_i32_19, %c2_i32_20 : i32
    %c1_i32_21 = arith.constant 1 : i32
    %17:2 = scf.for %arg13 = %c0_i32_19 to %16 step %c1_i32_21 iter_args(%arg14 = %14, %arg15 = %15) -> (vector<8x128xf32>, vector<8x128xf32>)  : i32 {
      %c32_i32 = arith.constant 32 : i32
      %25 = arith.muli %arg13, %c32_i32 : i32
      %26 = tpu.assume_multiple %25, 8 : i32
      %27 = arith.index_cast %26 : i32 to index
      %c0_29 = arith.constant 0 : index
      %28 = vector.load %arg11[%27, %c0_29] : memref<64x128xf32, #tpu.memory_space<vmem>>, vector<32x128xf32>
      %cst_30 = arith.constant dense<0.000000e+00> : vector<32x512xf32>
      %29 = tpu.matmul %28, %11, %cst_30 {dimension_numbers = #tpu.dot_dimension_numbers<[1], [0], [0], [1], [0, 0, 1, 1], [], []>} : vector<32x128xf32>, vector<128x512xf32>, vector<32x512xf32> -> vector<32x512xf32>
      %30 = vector.broadcast %13 : vector<1x512xf32> to vector<32x512xf32>
      %31 = arith.addf %29, %30 : vector<32x512xf32>
      %c0_31 = arith.constant 0 : index
      %c0_32 = arith.constant 0 : index
      %32 = vector.load %arg12[%c0_31, %c0_32] : memref<32x512xf32, #tpu.memory_space<vmem>>, vector<32x512xf32>
      tpu.vector_store %arg12[%c0_31, %c0_32], %31 {strides = array<i32>} : memref<32x512xf32, #tpu.memory_space<vmem>>, vector<32x512xf32>,
      %c0_33 = arith.constant 0 : index
      %c0_34 = arith.constant 0 : index
      %33 = vector.load %arg12[%c0_33, %c0_34] : memref<32x512xf32, #tpu.memory_space<vmem>>, vector<8x512xf32>
      %cst_35 = arith.constant dense<0.000000e+00> : vector<8x512xf32>
      %34 = tpu.matmul %arg14, %12, %cst_35 {dimension_numbers = #tpu.dot_dimension_numbers<[1], [0], [0], [1], [0, 0, 1, 1], [], []>} : vector<8x128xf32>, vector<128x512xf32>, vector<8x512xf32> -> vector<8x512xf32>
      %35 = arith.addf %33, %34 : vector<8x512xf32>
      %36 = vector.extract_strided_slice %35 {offsets = [0, 0], sizes = [8, 128], strides = [1, 1]} : vector<8x512xf32> to vector<8x128xf32>
      %37 = arith.negf %36 : vector<8x128xf32>
      %38 = math.exp %37 : vector<8x128xf32>
      %cst_36 = arith.constant 1.000000e+00 : f32
      %39 = vector.broadcast %cst_36 : f32 to vector<8x128xf32>
      %40 = arith.addf %39, %38 : vector<8x128xf32>
      %41 = arith.divf %39, %40 : vector<8x128xf32>
      %42 = vector.extract_strided_slice %35 {offsets = [0, 128], sizes = [8, 128], strides = [1, 1]} : vector<8x512xf32> to vector<8x128xf32>
      %43 = arith.negf %42 : vector<8x128xf32>
      %44 = math.exp %43 : vector<8x128xf32>
      %cst_37 = arith.constant 1.000000e+00 : f32
      %45 = vector.broadcast %cst_37 : f32 to vector<8x128xf32>
      %46 = arith.addf %45, %44 : vector<8x128xf32>
      %47 = arith.divf %45, %46 : vector<8x128xf32>
      %48 = vector.extract_strided_slice %35 {offsets = [0, 256], sizes = [8, 128], strides = [1, 1]} : vector<8x512xf32> to vector<8x128xf32>
      %49 = math.tanh %48 : vector<8x128xf32>
      %50 = vector.extract_strided_slice %35 {offsets = [0, 384], sizes = [8, 128], strides = [1, 1]} : vector<8x512xf32> to vector<8x128xf32>
      %51 = arith.negf %50 : vector<8x128xf32>
      %52 = math.exp %51 : vector<8x128xf32>
      %cst_38 = arith.constant 1.000000e+00 : f32
      %53 = vector.broadcast %cst_38 : f32 to vector<8x128xf32>
      %54 = arith.addf %53, %52 : vector<8x128xf32>
      %55 = arith.divf %53, %54 : vector<8x128xf32>
      %56 = arith.mulf %47, %arg15 : vector<8x128xf32>
      %57 = arith.mulf %41, %49 : vector<8x128xf32>
      %58 = arith.addf %56, %57 : vector<8x128xf32>
      %59 = math.tanh %58 : vector<8x128xf32>
      %60 = arith.mulf %55, %59 : vector<8x128xf32>
      %c8 = arith.constant 8 : index
      %c0_39 = arith.constant 0 : index
      %61 = vector.load %arg12[%c8, %c0_39] : memref<32x512xf32, #tpu.memory_space<vmem>>, vector<8x512xf32>
      %cst_40 = arith.constant dense<0.000000e+00> : vector<8x512xf32>
      %62 = tpu.matmul %60, %12, %cst_40 {dimension_numbers = #tpu.dot_dimension_numbers<[1], [0], [0], [1], [0, 0, 1, 1], [], []>} : vector<8x128xf32>, vector<128x512xf32>, vector<8x512xf32> -> vector<8x512xf32>
      %63 = arith.addf %61, %62 : vector<8x512xf32>
      %64 = vector.extract_strided_slice %63 {offsets = [0, 0], sizes = [8, 128], strides = [1, 1]} : vector<8x512xf32> to vector<8x128xf32>
      %65 = arith.negf %64 : vector<8x128xf32>
      %66 = math.exp %65 : vector<8x128xf32>
      %cst_41 = arith.constant 1.000000e+00 : f32
      %67 = vector.broadcast %cst_41 : f32 to vector<8x128xf32>
      %68 = arith.addf %67, %66 : vector<8x128xf32>
      %69 = arith.divf %67, %68 : vector<8x128xf32>
      %70 = vector.extract_strided_slice %63 {offsets = [0, 128], sizes = [8, 128], strides = [1, 1]} : vector<8x512xf32> to vector<8x128xf32>
      %71 = arith.negf %70 : vector<8x128xf32>
      %72 = math.exp %71 : vector<8x128xf32>
      %cst_42 = arith.constant 1.000000e+00 : f32
      %73 = vector.broadcast %cst_42 : f32 to vector<8x128xf32>
      %74 = arith.addf %73, %72 : vector<8x128xf32>
      %75 = arith.divf %73, %74 : vector<8x128xf32>
      %76 = vector.extract_strided_slice %63 {offsets = [0, 256], sizes = [8, 128], strides = [1, 1]} : vector<8x512xf32> to vector<8x128xf32>
      %77 = math.tanh %76 : vector<8x128xf32>
      %78 = vector.extract_strided_slice %63 {offsets = [0, 384], sizes = [8, 128], strides = [1, 1]} : vector<8x512xf32> to vector<8x128xf32>
      %79 = arith.negf %78 : vector<8x128xf32>
      %80 = math.exp %79 : vector<8x128xf32>
      %cst_43 = arith.constant 1.000000e+00 : f32
      %81 = vector.broadcast %cst_43 : f32 to vector<8x128xf32>
      %82 = arith.addf %81, %80 : vector<8x128xf32>
      %83 = arith.divf %81, %82 : vector<8x128xf32>
      %84 = arith.mulf %75, %58 : vector<8x128xf32>
      %85 = arith.mulf %69, %77 : vector<8x128xf32>
      %86 = arith.addf %84, %85 : vector<8x128xf32>
      %87 = math.tanh %86 : vector<8x128xf32>
      %88 = arith.mulf %83, %87 : vector<8x128xf32>
      %c16 = arith.constant 16 : index
      %c0_44 = arith.constant 0 : index
      %89 = vector.load %arg12[%c16, %c0_44] : memref<32x512xf32, #tpu.memory_space<vmem>>, vector<8x512xf32>
      %cst_45 = arith.constant dense<0.000000e+00> : vector<8x512xf32>
      %90 = tpu.matmul %88, %12, %cst_45 {dimension_numbers = #tpu.dot_dimension_numbers<[1], [0], [0], [1], [0, 0, 1, 1], [], []>} : vector<8x128xf32>, vector<128x512xf32>, vector<8x512xf32> -> vector<8x512xf32>
      %91 = arith.addf %89, %90 : vector<8x512xf32>
      %92 = vector.extract_strided_slice %91 {offsets = [0, 0], sizes = [8, 128], strides = [1, 1]} : vector<8x512xf32> to vector<8x128xf32>
      %93 = arith.negf %92 : vector<8x128xf32>
      %94 = math.exp %93 : vector<8x128xf32>
      %cst_46 = arith.constant 1.000000e+00 : f32
      %95 = vector.broadcast %cst_46 : f32 to vector<8x128xf32>
      %96 = arith.addf %95, %94 : vector<8x128xf32>
      %97 = arith.divf %95, %96 : vector<8x128xf32>
      %98 = vector.extract_strided_slice %91 {offsets = [0, 128], sizes = [8, 128], strides = [1, 1]} : vector<8x512xf32> to vector<8x128xf32>
      %99 = arith.negf %98 : vector<8x128xf32>
      %100 = math.exp %99 : vector<8x128xf32>
      %cst_47 = arith.constant 1.000000e+00 : f32
      %101 = vector.broadcast %cst_47 : f32 to vector<8x128xf32>
      %102 = arith.addf %101, %100 : vector<8x128xf32>
      %103 = arith.divf %101, %102 : vector<8x128xf32>
      %104 = vector.extract_strided_slice %91 {offsets = [0, 256], sizes = [8, 128], strides = [1, 1]} : vector<8x512xf32> to vector<8x128xf32>
      %105 = math.tanh %104 : vector<8x128xf32>
      %106 = vector.extract_strided_slice %91 {offsets = [0, 384], sizes = [8, 128], strides = [1, 1]} : vector<8x512xf32> to vector<8x128xf32>
      %107 = arith.negf %106 : vector<8x128xf32>
      %108 = math.exp %107 : vector<8x128xf32>
      %cst_48 = arith.constant 1.000000e+00 : f32
      %109 = vector.broadcast %cst_48 : f32 to vector<8x128xf32>
      %110 = arith.addf %109, %108 : vector<8x128xf32>
      %111 = arith.divf %109, %110 : vector<8x128xf32>
      %112 = arith.mulf %103, %86 : vector<8x128xf32>
      %113 = arith.mulf %97, %105 : vector<8x128xf32>
      %114 = arith.addf %112, %113 : vector<8x128xf32>
      %115 = math.tanh %114 : vector<8x128xf32>
      %116 = arith.mulf %111, %115 : vector<8x128xf32>
      %c24 = arith.constant 24 : index
      %c0_49 = arith.constant 0 : index
      %117 = vector.load %arg12[%c24, %c0_49] : memref<32x512xf32, #tpu.memory_space<vmem>>, vector<8x512xf32>
      %cst_50 = arith.constant dense<0.000000e+00> : vector<8x512xf32>
      %118 = tpu.matmul %116, %12, %cst_50 {dimension_numbers = #tpu.dot_dimension_numbers<[1], [0], [0], [1], [0, 0, 1, 1], [], []>} : vector<8x128xf32>, vector<128x512xf32>, vector<8x512xf32> -> vector<8x512xf32>
      %119 = arith.addf %117, %118 : vector<8x512xf32>
      %120 = vector.extract_strided_slice %119 {offsets = [0, 0], sizes = [8, 128], strides = [1, 1]} : vector<8x512xf32> to vector<8x128xf32>
      %121 = arith.negf %120 : vector<8x128xf32>
      %122 = math.exp %121 : vector<8x128xf32>
      %cst_51 = arith.constant 1.000000e+00 : f32
      %123 = vector.broadcast %cst_51 : f32 to vector<8x128xf32>
      %124 = arith.addf %123, %122 : vector<8x128xf32>
      %125 = arith.divf %123, %124 : vector<8x128xf32>
      %126 = vector.extract_strided_slice %119 {offsets = [0, 128], sizes = [8, 128], strides = [1, 1]} : vector<8x512xf32> to vector<8x128xf32>
      %127 = arith.negf %126 : vector<8x128xf32>
      %128 = math.exp %127 : vector<8x128xf32>
      %cst_52 = arith.constant 1.000000e+00 : f32
      %129 = vector.broadcast %cst_52 : f32 to vector<8x128xf32>
      %130 = arith.addf %129, %128 : vector<8x128xf32>
      %131 = arith.divf %129, %130 : vector<8x128xf32>
      %132 = vector.extract_strided_slice %119 {offsets = [0, 256], sizes = [8, 128], strides = [1, 1]} : vector<8x512xf32> to vector<8x128xf32>
      %133 = math.tanh %132 : vector<8x128xf32>
      %134 = vector.extract_strided_slice %119 {offsets = [0, 384], sizes = [8, 128], strides = [1, 1]} : vector<8x512xf32> to vector<8x128xf32>
      %135 = arith.negf %134 : vector<8x128xf32>
      %136 = math.exp %135 : vector<8x128xf32>
      %cst_53 = arith.constant 1.000000e+00 : f32
      %137 = vector.broadcast %cst_53 : f32 to vector<8x128xf32>
      %138 = arith.addf %137, %136 : vector<8x128xf32>
      %139 = arith.divf %137, %138 : vector<8x128xf32>
      %140 = arith.mulf %131, %114 : vector<8x128xf32>
      %141 = arith.mulf %125, %133 : vector<8x128xf32>
      %142 = arith.addf %140, %141 : vector<8x128xf32>
      %143 = math.tanh %142 : vector<8x128xf32>
      %144 = arith.mulf %139, %143 : vector<8x128xf32>
      scf.yield %144, %142 : vector<8x128xf32>, vector<8x128xf32>
    }
    %c2_i32_22 = arith.constant 2 : i32
    %c128 = arith.constant 128 : index
    %c0_23 = arith.constant 0 : index
    %18 = vector.load %arg8[%c128, %c0_23] : memref<256x128xf32, #tpu.memory_space<vmem>>, vector<128x128xf32>
    %cst_24 = arith.constant dense<0.000000e+00> : vector<8x128xf32>
    %19 = tpu.matmul %17#0, %18, %cst_24 {dimension_numbers = #tpu.dot_dimension_numbers<[1], [0], [0], [1], [0, 0, 1, 1], [], []>} : vector<8x128xf32>, vector<128x128xf32>, vector<8x128xf32> -> vector<8x128xf32>
    %20 = arith.addf %10, %19 : vector<8x128xf32>
    %c0_25 = arith.constant 0 : index
    %c0_26 = arith.constant 0 : index
    %21 = vector.load %arg9[%c0_25, %c0_26] : memref<1x128xf32, #tpu.memory_space<vmem>>, vector<1x128xf32>
    %22 = vector.broadcast %21 : vector<1x128xf32> to vector<8x128xf32>
    %23 = arith.addf %20, %22 : vector<8x128xf32>
    %c0_27 = arith.constant 0 : index
    %c0_28 = arith.constant 0 : index
    %24 = vector.load %arg10[%c0_27, %c0_28] : memref<8x128xf32, #tpu.memory_space<vmem>>, vector<8x128xf32>
    tpu.vector_store %arg10[%c0_27, %c0_28], %23 {strides = array<i32>} : memref<8x128xf32, #tpu.memory_space<vmem>>, vector<8x128xf32>,
    return
  }
  func.func @transform_0(%arg0: i32) -> (i32, i32, i32) {
    %c0_i32 = arith.constant 0 : i32
    %c0_i32_0 = arith.constant 0 : i32
    %c0_i32_1 = arith.constant 0 : i32
    return %arg0, %c0_i32, %c0_i32_0 : i32, i32, i32
  }
  func.func @transform_1(%arg0: i32) -> (i32, i32) {
    %c0_i32 = arith.constant 0 : i32
    %c0_i32_0 = arith.constant 0 : i32
    %c0_i32_1 = arith.constant 0 : i32
    return %c0_i32, %c0_i32_0 : i32, i32
  }
  func.func @transform_2(%arg0: i32) -> (i32, i32) {
    %c0_i32 = arith.constant 0 : i32
    %c0_i32_0 = arith.constant 0 : i32
    %c0_i32_1 = arith.constant 0 : i32
    return %c0_i32, %c0_i32_0 : i32, i32
  }
  func.func @transform_3(%arg0: i32) -> (i32, i32) {
    %c0_i32 = arith.constant 0 : i32
    %c0_i32_0 = arith.constant 0 : i32
    %c0_i32_1 = arith.constant 0 : i32
    return %c0_i32, %c0_i32_0 : i32, i32
  }
  func.func @transform_4(%arg0: i32) -> (i32, i32) {
    %c0_i32 = arith.constant 0 : i32
    %c0_i32_0 = arith.constant 0 : i32
    %c0_i32_1 = arith.constant 0 : i32
    return %c0_i32, %c0_i32_0 : i32, i32
  }
  func.func @transform_5(%arg0: i32) -> (i32, i32) {
    %c0_i32 = arith.constant 0 : i32
    %c0_i32_0 = arith.constant 0 : i32
    %c0_i32_1 = arith.constant 0 : i32
    return %c0_i32, %c0_i32_0 : i32, i32
  }
  func.func @transform_6(%arg0: i32) -> (i32, i32) {
    %c0_i32 = arith.constant 0 : i32
    %c0_i32_0 = arith.constant 0 : i32
    %c0_i32_1 = arith.constant 0 : i32
    return %c0_i32, %c0_i32_0 : i32, i32
  }
  func.func @transform_7(%arg0: i32) -> (i32, i32) {
    %c0_i32 = arith.constant 0 : i32
    %c0_i32_0 = arith.constant 0 : i32
    %c0_i32_1 = arith.constant 0 : i32
    return %c0_i32, %c0_i32_0 : i32, i32
  }
  func.func @transform_8(%arg0: i32) -> (i32, i32) {
    %c0_i32 = arith.constant 0 : i32
    %c0_i32_0 = arith.constant 0 : i32
    %c0_i32_1 = arith.constant 0 : i32
    return %c0_i32, %c0_i32_0 : i32, i32
  }
  func.func @transform_9(%arg0: i32) -> (i32, i32) {
    %c0_i32 = arith.constant 0 : i32
    %c0_i32_0 = arith.constant 0 : i32
    return %arg0, %c0_i32 : i32, i32
  }
}

</mosaic_0001>

<llo_original>
// kernel: lstm_encoder_forward.1
$region0: #{lstm_encoder_forward.1}
  #allocation0 [shape = 'u32[]', space=smem, size = 0x4, offset = 0x4, fixed_abs, tag = 'smem constant byte address 0x4 - core index']
  #allocation1 [shape = 'u32[144,128]{1,0:T(1,128)}', space=vmem, size = 0x12000, scoped, tag = 'internal scratch']
  #allocation2 [shape = 'f32[64,128]{1,0:T(8,128)}', space=vmem, size = 0x8000, scoped, tag = 'scratch operand']
  #allocation3 [shape = 'f32[32,512]{1,0:T(8,128)}', space=vmem, size = 0x10000, scoped, tag = 'scratch operand']
  %s0 = inlined_call_operand.vmem [shape: f32[2,64,128], index: 0, kind: input, shape index: {}]
  %s1 = inlined_call_operand.vmem [shape: f32[128,512], index: 1, kind: input, shape index: {}]
  %s2 = inlined_call_operand.vmem [shape: f32[128,512], index: 2, kind: input, shape index: {}]
  %s3 = inlined_call_operand.vmem [shape: f32[1,512], index: 3, kind: input, shape index: {}]
  %s4 = inlined_call_operand.vmem [shape: f32[128,512], index: 4, kind: input, shape index: {}]
  %s5 = inlined_call_operand.hbm [shape: f32[128,512], index: 5, kind: input, shape index: {}]
  %s6 = inlined_call_operand.vmem [shape: f32[1,512], index: 6, kind: input, shape index: {}]
  %s7 = inlined_call_operand.hbm [shape: f32[256,128], index: 7, kind: input, shape index: {}]
  %s8 = inlined_call_operand.vmem [shape: f32[1,128], index: 8, kind: input, shape index: {}]
  %s9 = inlined_call_operand.vmem [shape: f32[16,128], index: 9, kind: output, shape index: {}]
  %s10 = sld [smem:[#allocation0]]
  $region91: #{lstm_encoder_forward.1} parent=0
    _
  %s12 = ssub.s32 1, %s10
  %s13 = scalar_select 0, %s12, %s10
  $region1: #{lstm_encoder_forward.1} parent=0
    #allocation4 [shape = 'u8[262144]{0}', space=vmem, size = 0x40000, scoped, tag = 'input window, operand 5, single buffered']
    #allocation5 [shape = 's32[2]{0}', space=sflag, size = 0x8, scoped, tag = 'scoped memory for lstm_encoder_forward.1']
    #allocation6 [shape = 'u8[131072]{0}', space=vmem, size = 0x20000, scoped, tag = 'input window, operand 7, single buffered']
    #allocation7 [shape = 's32[1]{0}', space=sflag, size = 0x4, scoped, tag = 'scoped memory for lstm_encoder_forward.1']
    %14 = vsyncpa [#allocation5], 0
    %15 = vsyncpa [#allocation7], 0
    loop: start=0, step=1, limit=4
    $region2: #{lstm_encoder_forward.1} parent=1 // loop_pre_header
      _
    $region3: #{lstm_encoder_forward.1} parent=1 // loop_header
      %s17 = sphi 0, %s21
      %p18 = scmp.ge.s32.totalorder %s17, 4
      %s27 = sphi 0, %s29
      %s30 = sphi 0, %s27
      %s31 = sphi 0, %s30
      %s47 = sphi 0, %s31
      %s51 = sphi 0, %s51
      %s53 = sphi 0, %s51
      %s54 = sphi 0, %s53
      %s68 = sphi 0, %s54
      %s72 = sphi 0, %s72
      %s74 = sphi 0, %s72
      %s75 = sphi 0, %s74
      %s89 = sphi 0, %s75
      %s93 = sphi 0, %s93
      %s95 = sphi 0, %s93
      %s96 = sphi 0, %s95
      %s110 = sphi 0, %s96
      %s114 = sphi 0, %s114
      %s116 = sphi 0, %s114
      %s117 = sphi 0, %s116
      %s131 = sphi 0, %s117
      %s135 = sphi 0, %s135
      %s137 = sphi 0, %s135
      %s138 = sphi 0, %s137
      %s152 = sphi 0, %s138
      %s156 = sphi 0, %s156
      %s158 = sphi 0, %s156
      %s159 = sphi 0, %s158
      %s173 = sphi 0, %s159
      %s177 = sphi 0, %s177
      %s179 = sphi 0, %s177
      %s180 = sphi 0, %s179
      %s194 = sphi 0, %s180
      %s198 = sphi 0, %s198
      %s200 = sphi 0, %s198
      %s201 = sphi 0, %s200
      %s215 = sphi 0, %s201
      %s221 = sphi 0, %s223
      %s224 = sphi 0, %s221
      %s225 = sphi 0, %s224
      %s241 = sphi 0, %s225
    $region4: #{lstm_encoder_forward.1} parent=1 // loop_header_branch
      %20 = sbr.rel (%p18) target = $region8
    $region5: #{lstm_encoder_forward.1} parent=1 // loop_body
      %s22 = ssub.s32 %s17, 1
      %s23 = ssub.s32 %s17, 2
      %s24 = sadd.s32 %s17, 1
      %s25 = ssub.s32 %s17, %s24
      %p26 = scmp.eq.s32.totalorder %s25, 0
      %s28 = sadd.s32 %s27, 1
      %s29 = scalar_select %p26, %s27, %s28
      %p32 = pneg %p26
      %p33 = scmp.eq.s32.totalorder %s17, 1
      %p34 = por %p32, %p33
      %p35 = scmp.ne.s32.totalorder %s27, %s30
      %p36 = scmp.eq.s32.totalorder %s17, 0
      %p37 = por %p35, %p36
      %p38 = scmp.ne.s32.totalorder %s27, %s30
      %p39 = scmp.eq.s32.totalorder %s22, 1
      %p40 = por %p38, %p39
      %p41 = scmp.ne.s32.totalorder %s30, %s31
      %p42 = scmp.eq.s32.totalorder %s22, 0
      %p43 = por %p41, %p42
      %p44 = scmp.ne.s32.totalorder %s30, %s31
      %p45 = scmp.eq.s32.totalorder %s23, 1
      %p46 = por %p44, %p45
      %p48 = scmp.ne.s32.totalorder %s31, %s47
      %p49 = scmp.eq.s32.totalorder %s23, 0
      %p50 = por %p48, %p49
      %s52 = sadd.s32 %s51, 1
      %p55 = scmp.eq.s32.totalorder %s17, 1
      %p56 = scmp.ne.s32.totalorder %s51, %s53
      %p57 = scmp.eq.s32.totalorder %s17, 0
      %p58 = por %p56, %p57
      %p59 = scmp.ne.s32.totalorder %s51, %s53
      %p60 = scmp.eq.s32.totalorder %s22, 1
      %p61 = por %p59, %p60
      %p62 = scmp.ne.s32.totalorder %s53, %s54
      %p63 = scmp.eq.s32.totalorder %s22, 0
      %p64 = por %p62, %p63
      %p65 = scmp.ne.s32.totalorder %s53, %s54
      %p66 = scmp.eq.s32.totalorder %s23, 1
      %p67 = por %p65, %p66
      %p69 = scmp.ne.s32.totalorder %s54, %s68
      %p70 = scmp.eq.s32.totalorder %s23, 0
      %p71 = por %p69, %p70
      %s73 = sadd.s32 %s72, 1
      %p76 = scmp.eq.s32.totalorder %s17, 1
      %p77 = scmp.ne.s32.totalorder %s72, %s74
      %p78 = scmp.eq.s32.totalorder %s17, 0
      %p79 = por %p77, %p78
      %p80 = scmp.ne.s32.totalorder %s72, %s74
      %p81 = scmp.eq.s32.totalorder %s22, 1
      %p82 = por %p80, %p81
      %p83 = scmp.ne.s32.totalorder %s74, %s75
      %p84 = scmp.eq.s32.totalorder %s22, 0
      %p85 = por %p83, %p84
      %p86 = scmp.ne.s32.totalorder %s74, %s75
      %p87 = scmp.eq.s32.totalorder %s23, 1
      %p88 = por %p86, %p87
      %p90 = scmp.ne.s32.totalorder %s75, %s89
      %p91 = scmp.eq.s32.totalorder %s23, 0
      %p92 = por %p90, %p91
      %s94 = sadd.s32 %s93, 1
      %p97 = scmp.eq.s32.totalorder %s17, 1
      %p98 = scmp.ne.s32.totalorder %s93, %s95
      %p99 = scmp.eq.s32.totalorder %s17, 0
      %p100 = por %p98, %p99
      %p101 = scmp.ne.s32.totalorder %s93, %s95
      %p102 = scmp.eq.s32.totalorder %s22, 1
      %p103 = por %p101, %p102
      %p104 = scmp.ne.s32.totalorder %s95, %s96
      %p105 = scmp.eq.s32.totalorder %s22, 0
      %p106 = por %p104, %p105
      %p107 = scmp.ne.s32.totalorder %s95, %s96
      %p108 = scmp.eq.s32.totalorder %s23, 1
      %p109 = por %p107, %p108
      %p111 = scmp.ne.s32.totalorder %s96, %s110
      %p112 = scmp.eq.s32.totalorder %s23, 0
      %p113 = por %p111, %p112
      %s115 = sadd.s32 %s114, 1
      %p118 = scmp.eq.s32.totalorder %s17, 1
      %p119 = scmp.ne.s32.totalorder %s114, %s116
      %p120 = scmp.eq.s32.totalorder %s17, 0
      %p121 = por %p119, %p120
      %p122 = scmp.ne.s32.totalorder %s114, %s116
      %p123 = scmp.eq.s32.totalorder %s22, 1
      %p124 = por %p122, %p123
      %p125 = scmp.ne.s32.totalorder %s116, %s117
      %p126 = scmp.eq.s32.totalorder %s22, 0
      %p127 = por %p125, %p126
      %p128 = scmp.ne.s32.totalorder %s116, %s117
      %p129 = scmp.eq.s32.totalorder %s23, 1
      %p130 = por %p128, %p129
      %p132 = scmp.ne.s32.totalorder %s117, %s131
      %p133 = scmp.eq.s32.totalorder %s23, 0
      %p134 = por %p132, %p133
      %s136 = sadd.s32 %s135, 1
      %p139 = scmp.eq.s32.totalorder %s17, 1
      %p140 = scmp.ne.s32.totalorder %s135, %s137
      %p141 = scmp.eq.s32.totalorder %s17, 0
      %p142 = por %p140, %p141
      %p143 = scmp.ne.s32.totalorder %s135, %s137
      %p144 = scmp.eq.s32.totalorder %s22, 1
      %p145 = por %p143, %p144
      %p146 = scmp.ne.s32.totalorder %s137, %s138
      %p147 = scmp.eq.s32.totalorder %s22, 0
      %p148 = por %p146, %p147
      %p149 = scmp.ne.s32.totalorder %s137, %s138
      %p150 = scmp.eq.s32.totalorder %s23, 1
      %p151 = por %p149, %p150
      %p153 = scmp.ne.s32.totalorder %s138, %s152
      %p154 = scmp.eq.s32.totalorder %s23, 0
      %p155 = por %p153, %p154
      %s157 = sadd.s32 %s156, 1
      %p160 = scmp.eq.s32.totalorder %s17, 1
      %p161 = scmp.ne.s32.totalorder %s156, %s158
      %p162 = scmp.eq.s32.totalorder %s17, 0
      %p163 = por %p161, %p162
      %p164 = scmp.ne.s32.totalorder %s156, %s158
      %p165 = scmp.eq.s32.totalorder %s22, 1
      %p166 = por %p164, %p165
      %p167 = scmp.ne.s32.totalorder %s158, %s159
      %p168 = scmp.eq.s32.totalorder %s22, 0
      %p169 = por %p167, %p168
      %p170 = scmp.ne.s32.totalorder %s158, %s159
      %p171 = scmp.eq.s32.totalorder %s23, 1
      %p172 = por %p170, %p171
      %p174 = scmp.ne.s32.totalorder %s159, %s173
      %p175 = scmp.eq.s32.totalorder %s23, 0
      %p176 = por %p174, %p175
      %s178 = sadd.s32 %s177, 1
      %p181 = scmp.eq.s32.totalorder %s17, 1
      %p182 = scmp.ne.s32.totalorder %s177, %s179
      %p183 = scmp.eq.s32.totalorder %s17, 0
      %p184 = por %p182, %p183
      %p185 = scmp.ne.s32.totalorder %s177, %s179
      %p186 = scmp.eq.s32.totalorder %s22, 1
      %p187 = por %p185, %p186
      %p188 = scmp.ne.s32.totalorder %s179, %s180
      %p189 = scmp.eq.s32.totalorder %s22, 0
      %p190 = por %p188, %p189
      %p191 = scmp.ne.s32.totalorder %s179, %s180
      %p192 = scmp.eq.s32.totalorder %s23, 1
      %p193 = por %p191, %p192
      %p195 = scmp.ne.s32.totalorder %s180, %s194
      %p196 = scmp.eq.s32.totalorder %s23, 0
      %p197 = por %p195, %p196
      %s199 = sadd.s32 %s198, 1
      %p202 = scmp.eq.s32.totalorder %s17, 1
      %p203 = scmp.ne.s32.totalorder %s198, %s200
      %p204 = scmp.eq.s32.totalorder %s17, 0
      %p205 = por %p203, %p204
      %p206 = scmp.ne.s32.totalorder %s198, %s200
      %p207 = scmp.eq.s32.totalorder %s22, 1
      %p208 = por %p206, %p207
      %p209 = scmp.ne.s32.totalorder %s200, %s201
      %p210 = scmp.eq.s32.totalorder %s22, 0
      %p211 = por %p209, %p210
      %p212 = scmp.ne.s32.totalorder %s200, %s201
      %p213 = scmp.eq.s32.totalorder %s23, 1
      %p214 = por %p212, %p213
      %p216 = scmp.ne.s32.totalorder %s201, %s215
      %p217 = scmp.eq.s32.totalorder %s23, 0
      %p218 = por %p216, %p217
      %s219 = ssub.s32 %s17, %s24
      %p220 = scmp.eq.s32.totalorder %s219, 0
      %s222 = sadd.s32 %s221, 1
      %s223 = scalar_select %p220, %s221, %s222
      %p226 = pneg %p220
      %p227 = scmp.eq.s32.totalorder %s17, 1
      %p228 = por %p226, %p227
      %p229 = scmp.ne.s32.totalorder %s221, %s224
      %p230 = scmp.eq.s32.totalorder %s17, 0
      %p231 = por %p229, %p230
      %p232 = scmp.ne.s32.totalorder %s221, %s224
      %p233 = scmp.eq.s32.totalorder %s22, 1
      %p234 = por %p232, %p233
      %p235 = scmp.ne.s32.totalorder %s224, %s225
      %p236 = scmp.eq.s32.totalorder %s22, 0
      %p237 = por %p235, %p236
      %p238 = scmp.ne.s32.totalorder %s224, %s225
      %p239 = scmp.eq.s32.totalorder %s23, 1
      %p240 = por %p238, %p239
      %p242 = scmp.ne.s32.totalorder %s225, %s241
      %p243 = scmp.eq.s32.totalorder %s23, 0
      %p244 = por %p242, %p243
      %p245 = scmp.le.s32.totalorder 1, %s17
      %p246 = scmp.lt.s32.totalorder %s17, 3
      %p247 = pnand %p245, %p246
      %p248 = pneg %p247
      // Predicated region
      $region9: #{lstm_encoder_forward.1} parent=5 // pred_check
        _
      $region10: #{lstm_encoder_forward.1} parent=5 // pred_check_branch
        %250 = sbr.rel (%p247) target = $region12
      $region11: #{lstm_encoder_forward.1} parent=5 // pred_region
        %s251 = ssub.s32 %s17, 1
        // Predicated region
        $region13: #{lstm_encoder_forward.1} parent=11 // pred_check
          %p252 = pneg %p64
        $region14: #{lstm_encoder_forward.1} parent=11 // pred_check_branch
          %254 = sbr.rel (%p252) target = $region16
        $region15: #{lstm_encoder_forward.1} parent=11 // pred_region
          _
        $region16: #{lstm_encoder_forward.1} parent=11 // pred_fallthru
          _
        // Predicated region
        $region17: #{lstm_encoder_forward.1} parent=11 // pred_check
          %p255 = pneg %p85
        $region18: #{lstm_encoder_forward.1} parent=11 // pred_check_branch
          %257 = sbr.rel (%p255) target = $region20
        $region19: #{lstm_encoder_forward.1} parent=11 // pred_region
          _
        $region20: #{lstm_encoder_forward.1} parent=11 // pred_fallthru
          _
        // Predicated region
        $region21: #{lstm_encoder_forward.1} parent=11 // pred_check
          %p258 = pneg %p106
        $region22: #{lstm_encoder_forward.1} parent=11 // pred_check_branch
          %260 = sbr.rel (%p258) target = $region24
        $region23: #{lstm_encoder_forward.1} parent=11 // pred_region
          _
        $region24: #{lstm_encoder_forward.1} parent=11 // pred_fallthru
          _
        // Predicated region
        $region25: #{lstm_encoder_forward.1} parent=11 // pred_check
          %p261 = pneg %p127
        $region26: #{lstm_encoder_forward.1} parent=11 // pred_check_branch
          %263 = sbr.rel (%p261) target = $region28
        $region27: #{lstm_encoder_forward.1} parent=11 // pred_region
          _
        $region28: #{lstm_encoder_forward.1} parent=11 // pred_fallthru
          _
        // Predicated region
        $region29: #{lstm_encoder_forward.1} parent=11 // pred_check
          %p264 = pneg %p148
        $region30: #{lstm_encoder_forward.1} parent=11 // pred_check_branch
          %266 = sbr.rel (%p264) target = $region32
        $region31: #{lstm_encoder_forward.1} parent=11 // pred_region
          %s268 = ssub.s32 8192, 8192
          %269 = vsyncadd [#allocation5], %s268
          %s270 = sshll.u32 [#allocation4], 4
          %s271 = int_to_ptr.vmem [resolvable:$true] %s270
          %276 = dma.hbm_to_vmem [thread:$0]  %s5, 8192, %s271, [#allocation5], 512, 512, 32
        $region32: #{lstm_encoder_forward.1} parent=11 // pred_fallthru
          _
        // Predicated region
        $region33: #{lstm_encoder_forward.1} parent=11 // pred_check
          %p277 = pneg %p169
        $region34: #{lstm_encoder_forward.1} parent=11 // pred_check_branch
          %279 = sbr.rel (%p277) target = $region36
        $region35: #{lstm_encoder_forward.1} parent=11 // pred_region
          _
        $region36: #{lstm_encoder_forward.1} parent=11 // pred_fallthru
          _
        // Predicated region
        $region37: #{lstm_encoder_forward.1} parent=11 // pred_check
          %p280 = pneg %p190
        $region38: #{lstm_encoder_forward.1} parent=11 // pred_check_branch
          %282 = sbr.rel (%p280) target = $region40
        $region39: #{lstm_encoder_forward.1} parent=11 // pred_region
          %s284 = ssub.s32 4096, 4096
          %285 = vsyncadd [#allocation7], %s284
          %s286 = sshll.u32 [#allocation6], 4
          %s287 = int_to_ptr.vmem [resolvable:$true] %s286
          %292 = dma.hbm_to_vmem [thread:$0]  %s7, 4096, %s287, [#allocation7], 128, 128, 8
        $region40: #{lstm_encoder_forward.1} parent=11 // pred_fallthru
          _
        // Predicated region
        $region41: #{lstm_encoder_forward.1} parent=11 // pred_check
          %p293 = pneg %p211
        $region42: #{lstm_encoder_forward.1} parent=11 // pred_check_branch
          %295 = sbr.rel (%p293) target = $region44
        $region43: #{lstm_encoder_forward.1} parent=11 // pred_region
          _
        $region44: #{lstm_encoder_forward.1} parent=11 // pred_fallthru
          _
      $region12: #{lstm_encoder_forward.1} parent=5 // pred_fallthru
        _
      %p296 = scmp.lt.s32.totalorder %s17, 2
      // Predicated region
      $region45: #{lstm_encoder_forward.1} parent=5 // pred_check
        %p297 = pneg %p296
      $region46: #{lstm_encoder_forward.1} parent=5 // pred_check_branch
        %299 = sbr.rel (%p297) target = $region48
      $region47: #{lstm_encoder_forward.1} parent=5 // pred_region
        // Predicated region
        $region49: #{lstm_encoder_forward.1} parent=47 // pred_check
          %p300 = pneg %p37
        $region50: #{lstm_encoder_forward.1} parent=47 // pred_check_branch
          %302 = sbr.rel (%p300) target = $region52
        $region51: #{lstm_encoder_forward.1} parent=47 // pred_region
          %p303 = scmp.lt.s32.totalorder %s17, 1
          %s304 = scalar_select %p303, %s17, 1
          %s305 = smul.addr %s304, 8
          %s306 = smul.addr %s305, 8
          %s307 = scalar_lea.vmem %s0, %s306
        $region52: #{lstm_encoder_forward.1} parent=47 // pred_fallthru
          _
      $region48: #{lstm_encoder_forward.1} parent=5 // pred_fallthru
        _
      %p308 = scmp.le.s32.totalorder 1, %s17
      %p309 = scmp.lt.s32.totalorder %s17, 3
      %p310 = pnand %p308, %p309
      %p311 = pneg %p310
      // Predicated region
      $region53: #{lstm_encoder_forward.1} parent=5 // pred_check
        _
      $region54: #{lstm_encoder_forward.1} parent=5 // pred_check_branch
        %313 = sbr.rel (%p310) target = $region56
      $region55: #{lstm_encoder_forward.1} parent=5 // pred_region
        %s314 = ssub.s32 %s17, 1
        // Predicated region
        $region57: #{lstm_encoder_forward.1} parent=55 // pred_check
          %p315 = pneg %p148
        $region58: #{lstm_encoder_forward.1} parent=55 // pred_check_branch
          %317 = sbr.rel (%p315) target = $region60
        $region59: #{lstm_encoder_forward.1} parent=55 // pred_region
          %318 = dma.done [#allocation5], 8192
        $region60: #{lstm_encoder_forward.1} parent=55 // pred_fallthru
          _
        // Predicated region
        $region61: #{lstm_encoder_forward.1} parent=55 // pred_check
          %p319 = pneg %p190
        $region62: #{lstm_encoder_forward.1} parent=55 // pred_check_branch
          %321 = sbr.rel (%p319) target = $region64
        $region63: #{lstm_encoder_forward.1} parent=55 // pred_region
          %322 = dma.done [#allocation7], 4096
        $region64: #{lstm_encoder_forward.1} parent=55 // pred_fallthru
          _
        %p323 = scmp.lt.s32.totalorder %s22, 1
        %s324 = scalar_select %p323, %s22, 1
        %s325 = smul.addr %s324, 8
        %s326 = smul.addr %s325, 8
        %s327 = scalar_lea.vmem %s0, %s326
        %p328 = pneg %p43
        %p329 = pneg %p40
        %p330 = pneg %p64
        %p331 = pneg %p61
        %p332 = pneg %p85
        %p333 = pneg %p82
        %p334 = pneg %p106
        %p335 = pneg %p103
        %p336 = pneg %p127
        %p337 = pneg %p124
        %p338 = pneg %p148
        %p339 = pneg %p145
        %p340 = pneg %p169
        %p341 = pneg %p166
        %p342 = pneg %p190
        %p343 = pneg %p187
        %p344 = pneg %p211
        %p345 = pneg %p208
        %p346 = pneg %p237
        %p347 = pneg %p234
        %p348 = scmp.lt.s32.totalorder %s22, 1
        %s349 = scalar_select %p348, %s22, 1
        %s350 = smul.addr %s349, 8
        %s351 = scalar_lea.vmem %s9, %s350
        %p352 = scmp.lt.s32.totalorder %s22, 1
        %s353 = scalar_select %p352, %s22, 1
        %s354 = smul.addr %s353, 8
        %s355 = smul.addr %s354, 8
        %s356 = scalar_lea.vmem %s0, %s355
        %p357 = scmp.lt.s32.totalorder %s22, 1
        %s358 = scalar_select %p357, %s22, 1
        %s359 = smul.addr %s358, 8
        %s360 = scalar_lea.vmem %s9, %s359
        %v361 = vld [vmem:[%s1] sm:$0xff]
        %v362 = vld [vmem:[%s1 + $0x8] sm:$0xff]
        %v363 = vld [vmem:[%s1 + $0x10] sm:$0xff]
        %v364 = vld [vmem:[%s1 + $0x18] sm:$0xff]
        %v365 = vld [vmem:[%s1 + $0x20] sm:$0xff]
        %v366 = vld [vmem:[%s1 + $0x28] sm:$0xff]
        %v367 = vld [vmem:[%s1 + $0x30] sm:$0xff]
        %v368 = vld [vmem:[%s1 + $0x38] sm:$0xff]
        %v369 = vld [vmem:[%s1 + $0x40] sm:$0xff]
        %v370 = vld [vmem:[%s1 + $0x48] sm:$0xff]
        %v371 = vld [vmem:[%s1 + $0x50] sm:$0xff]
        %v372 = vld [vmem:[%s1 + $0x58] sm:$0xff]
        %v373 = vld [vmem:[%s1 + $0x60] sm:$0xff]
        %v374 = vld [vmem:[%s1 + $0x68] sm:$0xff]
        %v375 = vld [vmem:[%s1 + $0x70] sm:$0xff]
        %v376 = vld [vmem:[%s1 + $0x78] sm:$0xff]
        %v377 = vld [vmem:[%s1 + $0x80] sm:$0xff]
        %v378 = vld [vmem:[%s1 + $0x88] sm:$0xff]
        %v379 = vld [vmem:[%s1 + $0x90] sm:$0xff]
        %v380 = vld [vmem:[%s1 + $0x98] sm:$0xff]
        %v381 = vld [vmem:[%s1 + $0xa0] sm:$0xff]
        %v382 = vld [vmem:[%s1 + $0xa8] sm:$0xff]
        %v383 = vld [vmem:[%s1 + $0xb0] sm:$0xff]
        %v384 = vld [vmem:[%s1 + $0xb8] sm:$0xff]
        %v385 = vld [vmem:[%s1 + $0xc0] sm:$0xff]
        %v386 = vld [vmem:[%s1 + $0xc8] sm:$0xff]
        %v387 = vld [vmem:[%s1 + $0xd0] sm:$0xff]
        %v388 = vld [vmem:[%s1 + $0xd8] sm:$0xff]
        %v389 = vld [vmem:[%s1 + $0xe0] sm:$0xff]
        %v390 = vld [vmem:[%s1 + $0xe8] sm:$0xff]
        %v391 = vld [vmem:[%s1 + $0xf0] sm:$0xff]
        %v392 = vld [vmem:[%s1 + $0xf8] sm:$0xff]
        %v393 = vld [vmem:[%s1 + $0x100] sm:$0xff]
        %v394 = vld [vmem:[%s1 + $0x108] sm:$0xff]
        %v395 = vld [vmem:[%s1 + $0x110] sm:$0xff]
        %v396 = vld [vmem:[%s1 + $0x118] sm:$0xff]
        %v397 = vld [vmem:[%s1 + $0x120] sm:$0xff]
        %v398 = vld [vmem:[%s1 + $0x128] sm:$0xff]
        %v399 = vld [vmem:[%s1 + $0x130] sm:$0xff]
        %v400 = vld [vmem:[%s1 + $0x138] sm:$0xff]
        %v401 = vld [vmem:[%s1 + $0x140] sm:$0xff]
        %v402 = vld [vmem:[%s1 + $0x148] sm:$0xff]
        %v403 = vld [vmem:[%s1 + $0x150] sm:$0xff]
        %v404 = vld [vmem:[%s1 + $0x158] sm:$0xff]
        %v405 = vld [vmem:[%s1 + $0x160] sm:$0xff]
        %v406 = vld [vmem:[%s1 + $0x168] sm:$0xff]
        %v407 = vld [vmem:[%s1 + $0x170] sm:$0xff]
        %v408 = vld [vmem:[%s1 + $0x178] sm:$0xff]
        %v409 = vld [vmem:[%s1 + $0x180] sm:$0xff]
        %v410 = vld [vmem:[%s1 + $0x188] sm:$0xff]
        %v411 = vld [vmem:[%s1 + $0x190] sm:$0xff]
        %v412 = vld [vmem:[%s1 + $0x198] sm:$0xff]
        %v413 = vld [vmem:[%s1 + $0x1a0] sm:$0xff]
        %v414 = vld [vmem:[%s1 + $0x1a8] sm:$0xff]
        %v415 = vld [vmem:[%s1 + $0x1b0] sm:$0xff]
        %v416 = vld [vmem:[%s1 + $0x1b8] sm:$0xff]
        %v417 = vld [vmem:[%s1 + $0x1c0] sm:$0xff]
        %v418 = vld [vmem:[%s1 + $0x1c8] sm:$0xff]
        %v419 = vld [vmem:[%s1 + $0x1d0] sm:$0xff]
        %v420 = vld [vmem:[%s1 + $0x1d8] sm:$0xff]
        %v421 = vld [vmem:[%s1 + $0x1e0] sm:$0xff]
        %v422 = vld [vmem:[%s1 + $0x1e8] sm:$0xff]
        %v423 = vld [vmem:[%s1 + $0x1f0] sm:$0xff]
        %v424 = vld [vmem:[%s1 + $0x1f8] sm:$0xff]
        %v425 = vld [vmem:[%s2] sm:$0xff]
        %v426 = vld [vmem:[%s2 + $0x8] sm:$0xff]
        %v427 = vld [vmem:[%s2 + $0x10] sm:$0xff]
        %v428 = vld [vmem:[%s2 + $0x18] sm:$0xff]
        %v429 = vld [vmem:[%s2 + $0x20] sm:$0xff]
        %v430 = vld [vmem:[%s2 + $0x28] sm:$0xff]
        %v431 = vld [vmem:[%s2 + $0x30] sm:$0xff]
        %v432 = vld [vmem:[%s2 + $0x38] sm:$0xff]
        %v433 = vld [vmem:[%s2 + $0x40] sm:$0xff]
        %v434 = vld [vmem:[%s2 + $0x48] sm:$0xff]
        %v435 = vld [vmem:[%s2 + $0x50] sm:$0xff]
        %v436 = vld [vmem:[%s2 + $0x58] sm:$0xff]
        %v437 = vld [vmem:[%s2 + $0x60] sm:$0xff]
        %v438 = vld [vmem:[%s2 + $0x68] sm:$0xff]
        %v439 = vld [vmem:[%s2 + $0x70] sm:$0xff]
        %v440 = vld [vmem:[%s2 + $0x78] sm:$0xff]
        %v441 = vld [vmem:[%s2 + $0x80] sm:$0xff]
        %v442 = vld [vmem:[%s2 + $0x88] sm:$0xff]
        %v443 = vld [vmem:[%s2 + $0x90] sm:$0xff]
        %v444 = vld [vmem:[%s2 + $0x98] sm:$0xff]
        %v445 = vld [vmem:[%s2 + $0xa0] sm:$0xff]
        %v446 = vld [vmem:[%s2 + $0xa8] sm:$0xff]
        %v447 = vld [vmem:[%s2 + $0xb0] sm:$0xff]
        %v448 = vld [vmem:[%s2 + $0xb8] sm:$0xff]
        %v449 = vld [vmem:[%s2 + $0xc0] sm:$0xff]
        %v450 = vld [vmem:[%s2 + $0xc8] sm:$0xff]
        %v451 = vld [vmem:[%s2 + $0xd0] sm:$0xff]
        %v452 = vld [vmem:[%s2 + $0xd8] sm:$0xff]
        %v453 = vld [vmem:[%s2 + $0xe0] sm:$0xff]
        %v454 = vld [vmem:[%s2 + $0xe8] sm:$0xff]
        %v455 = vld [vmem:[%s2 + $0xf0] sm:$0xff]
        %v456 = vld [vmem:[%s2 + $0xf8] sm:$0xff]
        %v457 = vld [vmem:[%s2 + $0x100] sm:$0xff]
        %v458 = vld [vmem:[%s2 + $0x108] sm:$0xff]
        %v459 = vld [vmem:[%s2 + $0x110] sm:$0xff]
        %v460 = vld [vmem:[%s2 + $0x118] sm:$0xff]
        %v461 = vld [vmem:[%s2 + $0x120] sm:$0xff]
        %v462 = vld [vmem:[%s2 + $0x128] sm:$0xff]
        %v463 = vld [vmem:[%s2 + $0x130] sm:$0xff]
        %v464 = vld [vmem:[%s2 + $0x138] sm:$0xff]
        %v465 = vld [vmem:[%s2 + $0x140] sm:$0xff]
        %v466 = vld [vmem:[%s2 + $0x148] sm:$0xff]
        %v467 = vld [vmem:[%s2 + $0x150] sm:$0xff]
        %v468 = vld [vmem:[%s2 + $0x158] sm:$0xff]
        %v469 = vld [vmem:[%s2 + $0x160] sm:$0xff]
        %v470 = vld [vmem:[%s2 + $0x168] sm:$0xff]
        %v471 = vld [vmem:[%s2 + $0x170] sm:$0xff]
        %v472 = vld [vmem:[%s2 + $0x178] sm:$0xff]
        %v473 = vld [vmem:[%s2 + $0x180] sm:$0xff]
        %v474 = vld [vmem:[%s2 + $0x188] sm:$0xff]
        %v475 = vld [vmem:[%s2 + $0x190] sm:$0xff]
        %v476 = vld [vmem:[%s2 + $0x198] sm:$0xff]
        %v477 = vld [vmem:[%s2 + $0x1a0] sm:$0xff]
        %v478 = vld [vmem:[%s2 + $0x1a8] sm:$0xff]
        %v479 = vld [vmem:[%s2 + $0x1b0] sm:$0xff]
        %v480 = vld [vmem:[%s2 + $0x1b8] sm:$0xff]
        %v481 = vld [vmem:[%s2 + $0x1c0] sm:$0xff]
        %v482 = vld [vmem:[%s2 + $0x1c8] sm:$0xff]
        %v483 = vld [vmem:[%s2 + $0x1d0] sm:$0xff]
        %v484 = vld [vmem:[%s2 + $0x1d8] sm:$0xff]
        %v485 = vld [vmem:[%s2 + $0x1e0] sm:$0xff]
        %v486 = vld [vmem:[%s2 + $0x1e8] sm:$0xff]
        %v487 = vld [vmem:[%s2 + $0x1f0] sm:$0xff]
        %v488 = vld [vmem:[%s2 + $0x1f8] sm:$0xff]
        %v489 = vld [vmem:[%s3] sm:$0xf]
        loop: start=0, step=1, limit=2
        $region65: #{lstm_encoder_forward.1} parent=55 // loop_pre_header
          _
        $region66: #{lstm_encoder_forward.1} parent=55 // loop_header
          %s491 = sphi 0, %s495
          %p492 = scmp.ge.s32.totalorder %s491, 2
          %v496 = vphi 0.0, %v1422
          %v497 = vphi 0.0, %v1420
        $region67: #{lstm_encoder_forward.1} parent=55 // loop_header_branch
          %494 = sbr.rel (%p492) target = $region71
        $region68: #{lstm_encoder_forward.1} parent=55 // loop_body
          %s498 = smul.u32 %s491, 32
          %s499 = scalar_lea.vmem %s356, %s498
          %v500 = vld [vmem:[%s499] sm:$0xff]
          %v501 = vld [vmem:[%s499 + $0x8] sm:$0xff]
          %v502 = vld [vmem:[%s499 + $0x10] sm:$0xff]
          %v503 = vld [vmem:[%s499 + $0x18] sm:$0xff]
          %v505 = vlaneseq
          %v506 = vshrl.u32 %v505, 7
          %v507 = vsub.s32 0, %v506
          %v508 = vrot.slane %v489, %v507
          %v509 = vlaneseq
          %v510 = vshrl.u32 %v509, 7
          %v511 = vsub.s32 1, %v510
          %v512 = vrot.slane %v489, %v511
          %v513 = vlaneseq
          %v514 = vshrl.u32 %v513, 7
          %v515 = vsub.s32 2, %v514
          %v516 = vrot.slane %v489, %v515
          %v517 = vlaneseq
          %v518 = vshrl.u32 %v517, 7
          %v519 = vsub.s32 3, %v518
          %v520 = vrot.slane %v489, %v519
          %525 = vmatprep.subr.mxu0 %v422
          %526 = vmatpush1.msra.mxu0 %v421
          %527 = vmatprep.subr.mxu0 %v418
          %528 = vmatpush1.msra.mxu0 %v417
          %529 = vmatprep.subr.mxu0 %v414
          %530 = vmatpush1.msra.mxu0 %v413
          %531 = vmatprep.subr.mxu0 %v410
          %532 = vmatpush1.msra.mxu0 %v409
          %533 = vmatprep.subr.mxu0 %v406
          %534 = vmatpush1.msra.mxu0 %v405
          %535 = vmatprep.subr.mxu0 %v402
          %536 = vmatpush1.msra.mxu0 %v401
          %537 = vmatprep.subr.mxu0 %v398
          %538 = vmatpush1.msra.mxu0 %v397
          %539 = vmatprep.subr.mxu0 %v394
          %540 = vmatpush1.msra.mxu0 %v393
          %541 = vmatprep.subr.mxu0 %v390
          %542 = vmatpush1.msra.mxu0 %v389
          %543 = vmatprep.subr.mxu0 %v386
          %544 = vmatpush1.msra.mxu0 %v385
          %545 = vmatprep.subr.mxu0 %v382
          %546 = vmatpush1.msra.mxu0 %v381
          %547 = vmatprep.subr.mxu0 %v378
          %548 = vmatpush1.msra.mxu0 %v377
          %549 = vmatprep.subr.mxu0 %v374
          %550 = vmatpush1.msra.mxu0 %v373
          %551 = vmatprep.subr.mxu0 %v370
          %552 = vmatpush1.msra.mxu0 %v369
          %553 = vmatprep.subr.mxu0 %v366
          %554 = vmatpush1.msra.mxu0 %v365
          %555 = vmatprep.subr.mxu0 %v362
          %556 = vmatpush1.msra.mxu0 %v361
          %557 = vmatprep.subr.mxu0 0.0
          %558 = vmatpush2.msra.mxu0 0.0
          %559 = vmatprep.subr.mxu0 0.0
          %560 = vmatpush2.msra.mxu0 0.0
          %561 = vmatprep.subr.mxu0 0.0
          %562 = vmatpush2.msra.mxu0 0.0
          %563 = vmatprep.subr.mxu0 0.0
          %564 = vmatpush2.msra.mxu0 0.0
          %565 = vmatprep.subr.mxu0 0.0
          %566 = vmatpush2.msra.mxu0 0.0
          %567 = vmatprep.subr.mxu0 0.0
          %568 = vmatpush2.msra.mxu0 0.0
          %569 = vmatprep.subr.mxu0 0.0
          %570 = vmatpush2.msra.mxu0 0.0
          %571 = vmatprep.subr.mxu0 0.0
          %572 = vmatpush2.msra.mxu0 0.0
          %573 = vmatprep.subr.mxu0 0.0
          %574 = vmatpush2.msra.mxu0 0.0
          %575 = vmatprep.subr.mxu0 0.0
          %576 = vmatpush2.msra.mxu0 0.0
          %577 = vmatprep.subr.mxu0 0.0
          %578 = vmatpush2.msra.mxu0 0.0
          %579 = vmatprep.subr.mxu0 0.0
          %580 = vmatpush2.msra.mxu0 0.0
          %581 = vmatprep.subr.mxu0 0.0
          %582 = vmatpush2.msra.mxu0 0.0
          %583 = vmatprep.subr.mxu0 0.0
          %584 = vmatpush2.msra.mxu0 0.0
          %585 = vmatprep.subr.mxu0 0.0
          %586 = vmatpush2.msra.mxu0 0.0
          %587 = vmatprep.subr.mxu0 0.0
          %588 = vmatpush2.msra.mxu0 0.0
          %589 = vmatprep.mubr.f32.mxu0 0.0
          %590 = vmatmul.mubr.f32.gmra.mxu0 %v500
          %v591 = vpop.f32.mrf.mxu0
          %v592 = vadd.f32 %v508, %v591
          %v593 = vpop.f32.mrf.mxu0
          %v594 = vadd.f32 %v512, %v593
          %595 = vmatprep.mubr.f32.mxu0 0.0
          %596 = vmatmul.mubr.f32.gmra.mxu0 %v501
          %v597 = vpop.f32.mrf.mxu0
          %v598 = vadd.f32 %v508, %v597
          %v599 = vpop.f32.mrf.mxu0
          %v600 = vadd.f32 %v512, %v599
          %601 = vmatprep.mubr.f32.mxu0 0.0
          %602 = vmatmul.mubr.f32.gmra.mxu0 %v502
          %v603 = vpop.f32.mrf.mxu0
          %v604 = vadd.f32 %v508, %v603
          %v605 = vpop.f32.mrf.mxu0
          %v606 = vadd.f32 %v512, %v605
          %607 = vmatprep.mubr.f32.mxu0 0.0
          %608 = vmatmul.mubr.f32.gmra.mxu0 %v503
          %v609 = vpop.f32.mrf.mxu0
          %v610 = vadd.f32 %v508, %v609
          %v611 = vpop.f32.mrf.mxu0
          %v612 = vadd.f32 %v512, %v611
          %613 = vdwg.mxu0
          %614 = vmatprep.subr.mxu0 %v424
          %615 = vmatpush1.msra.mxu0 %v423
          %616 = vmatprep.subr.mxu0 %v420
          %617 = vmatpush1.msra.mxu0 %v419
          %618 = vmatprep.subr.mxu0 %v416
          %619 = vmatpush1.msra.mxu0 %v415
          %620 = vmatprep.subr.mxu0 %v412
          %621 = vmatpush1.msra.mxu0 %v411
          %622 = vmatprep.subr.mxu0 %v408
          %623 = vmatpush1.msra.mxu0 %v407
          %624 = vmatprep.subr.mxu0 %v404
          %625 = vmatpush1.msra.mxu0 %v403
          %626 = vmatprep.subr.mxu0 %v400
          %627 = vmatpush1.msra.mxu0 %v399
          %628 = vmatprep.subr.mxu0 %v396
          %629 = vmatpush1.msra.mxu0 %v395
          %630 = vmatprep.subr.mxu0 %v392
          %631 = vmatpush1.msra.mxu0 %v391
          %632 = vmatprep.subr.mxu0 %v388
          %633 = vmatpush1.msra.mxu0 %v387
          %634 = vmatprep.subr.mxu0 %v384
          %635 = vmatpush1.msra.mxu0 %v383
          %636 = vmatprep.subr.mxu0 %v380
          %637 = vmatpush1.msra.mxu0 %v379
          %638 = vmatprep.subr.mxu0 %v376
          %639 = vmatpush1.msra.mxu0 %v375
          %640 = vmatprep.subr.mxu0 %v372
          %641 = vmatpush1.msra.mxu0 %v371
          %642 = vmatprep.subr.mxu0 %v368
          %643 = vmatpush1.msra.mxu0 %v367
          %644 = vmatprep.subr.mxu0 %v364
          %645 = vmatpush1.msra.mxu0 %v363
          %646 = vmatprep.subr.mxu0 0.0
          %647 = vmatpush2.msra.mxu0 0.0
          %648 = vmatprep.subr.mxu0 0.0
          %649 = vmatpush2.msra.mxu0 0.0
          %650 = vmatprep.subr.mxu0 0.0
          %651 = vmatpush2.msra.mxu0 0.0
          %652 = vmatprep.subr.mxu0 0.0
          %653 = vmatpush2.msra.mxu0 0.0
          %654 = vmatprep.subr.mxu0 0.0
          %655 = vmatpush2.msra.mxu0 0.0
          %656 = vmatprep.subr.mxu0 0.0
          %657 = vmatpush2.msra.mxu0 0.0
          %658 = vmatprep.subr.mxu0 0.0
          %659 = vmatpush2.msra.mxu0 0.0
          %660 = vmatprep.subr.mxu0 0.0
          %661 = vmatpush2.msra.mxu0 0.0
          %662 = vmatprep.subr.mxu0 0.0
          %663 = vmatpush2.msra.mxu0 0.0
          %664 = vmatprep.subr.mxu0 0.0
          %665 = vmatpush2.msra.mxu0 0.0
          %666 = vmatprep.subr.mxu0 0.0
          %667 = vmatpush2.msra.mxu0 0.0
          %668 = vmatprep.subr.mxu0 0.0
          %669 = vmatpush2.msra.mxu0 0.0
          %670 = vmatprep.subr.mxu0 0.0
          %671 = vmatpush2.msra.mxu0 0.0
          %672 = vmatprep.subr.mxu0 0.0
          %673 = vmatpush2.msra.mxu0 0.0
          %674 = vmatprep.subr.mxu0 0.0
          %675 = vmatpush2.msra.mxu0 0.0
          %676 = vmatprep.subr.mxu0 0.0
          %677 = vmatpush2.msra.mxu0 0.0
          %678 = vmatprep.mubr.f32.mxu0 0.0
          %679 = vmatmul.mubr.f32.gmra.mxu0 %v500
          %v680 = vpop.f32.mrf.mxu0
          %v681 = vadd.f32 %v516, %v680
          %v682 = vpop.f32.mrf.mxu0
          %v683 = vadd.f32 %v520, %v682
          %684 = vmatprep.mubr.f32.mxu0 0.0
          %685 = vmatmul.mubr.f32.gmra.mxu0 %v501
          %v686 = vpop.f32.mrf.mxu0
          %v687 = vadd.f32 %v516, %v686
          %v688 = vpop.f32.mrf.mxu0
          %v689 = vadd.f32 %v520, %v688
          %690 = vmatprep.mubr.f32.mxu0 0.0
          %691 = vmatmul.mubr.f32.gmra.mxu0 %v502
          %v692 = vpop.f32.mrf.mxu0
          %v693 = vadd.f32 %v516, %v692
          %v694 = vpop.f32.mrf.mxu0
          %v695 = vadd.f32 %v520, %v694
          %696 = vmatprep.mubr.f32.mxu0 0.0
          %697 = vmatmul.mubr.f32.gmra.mxu0 %v503
          %v698 = vpop.f32.mrf.mxu0
          %v699 = vadd.f32 %v516, %v698
          %v700 = vpop.f32.mrf.mxu0
          %v701 = vadd.f32 %v520, %v700
          %702 = vdwg.mxu0
          %703 = vst [vmem:[#allocation3] sm:$0xff] %v592
          %704 = vst [vmem:[#allocation3 + $0x8] sm:$0xff] %v594
          %705 = vst [vmem:[#allocation3 + $0x10] sm:$0xff] %v681
          %706 = vst [vmem:[#allocation3 + $0x18] sm:$0xff] %v683
          %707 = vst [vmem:[#allocation3 + $0x20] sm:$0xff] %v598
          %708 = vst [vmem:[#allocation3 + $0x28] sm:$0xff] %v600
          %709 = vst [vmem:[#allocation3 + $0x30] sm:$0xff] %v687
          %710 = vst [vmem:[#allocation3 + $0x38] sm:$0xff] %v689
          %711 = vst [vmem:[#allocation3 + $0x40] sm:$0xff] %v604
          %712 = vst [vmem:[#allocation3 + $0x48] sm:$0xff] %v606
          %713 = vst [vmem:[#allocation3 + $0x50] sm:$0xff] %v693
          %714 = vst [vmem:[#allocation3 + $0x58] sm:$0xff] %v695
          %715 = vst [vmem:[#allocation3 + $0x60] sm:$0xff] %v610
          %716 = vst [vmem:[#allocation3 + $0x68] sm:$0xff] %v612
          %717 = vst [vmem:[#allocation3 + $0x70] sm:$0xff] %v699
          %718 = vst [vmem:[#allocation3 + $0x78] sm:$0xff] %v701
          %v719 = vld [vmem:[#allocation3] sm:$0xff]
          %v720 = vld [vmem:[#allocation3 + $0x8] sm:$0xff]
          %v721 = vld [vmem:[#allocation3 + $0x10] sm:$0xff]
          %v722 = vld [vmem:[#allocation3 + $0x18] sm:$0xff]
          %723 = vmatprep.subr.mxu0 %v486
          %724 = vmatpush1.msra.mxu0 %v485
          %725 = vmatprep.subr.mxu0 %v482
          %726 = vmatpush1.msra.mxu0 %v481
          %727 = vmatprep.subr.mxu0 %v478
          %728 = vmatpush1.msra.mxu0 %v477
          %729 = vmatprep.subr.mxu0 %v474
          %730 = vmatpush1.msra.mxu0 %v473
          %731 = vmatprep.subr.mxu0 %v470
          %732 = vmatpush1.msra.mxu0 %v469
          %733 = vmatprep.subr.mxu0 %v466
          %734 = vmatpush1.msra.mxu0 %v465
          %735 = vmatprep.subr.mxu0 %v462
          %736 = vmatpush1.msra.mxu0 %v461
          %737 = vmatprep.subr.mxu0 %v458
          %738 = vmatpush1.msra.mxu0 %v457
          %739 = vmatprep.subr.mxu0 %v454
          %740 = vmatpush1.msra.mxu0 %v453
          %741 = vmatprep.subr.mxu0 %v450
          %742 = vmatpush1.msra.mxu0 %v449
          %743 = vmatprep.subr.mxu0 %v446
          %744 = vmatpush1.msra.mxu0 %v445
          %745 = vmatprep.subr.mxu0 %v442
          %746 = vmatpush1.msra.mxu0 %v441
          %747 = vmatprep.subr.mxu0 %v438
          %748 = vmatpush1.msra.mxu0 %v437
          %749 = vmatprep.subr.mxu0 %v434
          %750 = vmatpush1.msra.mxu0 %v433
          %751 = vmatprep.subr.mxu0 %v430
          %752 = vmatpush1.msra.mxu0 %v429
          %753 = vmatprep.subr.mxu0 %v426
          %754 = vmatpush1.msra.mxu0 %v425
          %755 = vmatprep.subr.mxu0 0.0
          %756 = vmatpush2.msra.mxu0 0.0
          %757 = vmatprep.subr.mxu0 0.0
          %758 = vmatpush2.msra.mxu0 0.0
          %759 = vmatprep.subr.mxu0 0.0
          %760 = vmatpush2.msra.mxu0 0.0
          %761 = vmatprep.subr.mxu0 0.0
          %762 = vmatpush2.msra.mxu0 0.0
          %763 = vmatprep.subr.mxu0 0.0
          %764 = vmatpush2.msra.mxu0 0.0
          %765 = vmatprep.subr.mxu0 0.0
          %766 = vmatpush2.msra.mxu0 0.0
          %767 = vmatprep.subr.mxu0 0.0
          %768 = vmatpush2.msra.mxu0 0.0
          %769 = vmatprep.subr.mxu0 0.0
          %770 = vmatpush2.msra.mxu0 0.0
          %771 = vmatprep.subr.mxu0 0.0
          %772 = vmatpush2.msra.mxu0 0.0
          %773 = vmatprep.subr.mxu0 0.0
          %774 = vmatpush2.msra.mxu0 0.0
          %775 = vmatprep.subr.mxu0 0.0
          %776 = vmatpush2.msra.mxu0 0.0
          %777 = vmatprep.subr.mxu0 0.0
          %778 = vmatpush2.msra.mxu0 0.0
          %779 = vmatprep.subr.mxu0 0.0
          %780 = vmatpush2.msra.mxu0 0.0
          %781 = vmatprep.subr.mxu0 0.0
          %782 = vmatpush2.msra.mxu0 0.0
          %783 = vmatprep.subr.mxu0 0.0
          %784 = vmatpush2.msra.mxu0 0.0
          %785 = vmatprep.subr.mxu0 0.0
          %786 = vmatpush2.msra.mxu0 0.0
          %787 = vmatprep.mubr.f32.mxu0 0.0
          %788 = vmatmul.mubr.f32.gmra.mxu0 %v496
          %v789 = vpop.f32.mrf.mxu0
          %v790 = vadd.f32 0.0, %v789
          %v791 = vpop.f32.mrf.mxu0
          %v792 = vadd.f32 0.0, %v791
          %793 = vdwg.mxu0
          %794 = vmatprep.subr.mxu0 %v488
          %795 = vmatpush1.msra.mxu0 %v487
          %796 = vmatprep.subr.mxu0 %v484
          %797 = vmatpush1.msra.mxu0 %v483
          %798 = vmatprep.subr.mxu0 %v480
          %799 = vmatpush1.msra.mxu0 %v479
          %800 = vmatprep.subr.mxu0 %v476
          %801 = vmatpush1.msra.mxu0 %v475
          %802 = vmatprep.subr.mxu0 %v472
          %803 = vmatpush1.msra.mxu0 %v471
          %804 = vmatprep.subr.mxu0 %v468
          %805 = vmatpush1.msra.mxu0 %v467
          %806 = vmatprep.subr.mxu0 %v464
          %807 = vmatpush1.msra.mxu0 %v463
          %808 = vmatprep.subr.mxu0 %v460
          %809 = vmatpush1.msra.mxu0 %v459
          %810 = vmatprep.subr.mxu0 %v456
          %811 = vmatpush1.msra.mxu0 %v455
          %812 = vmatprep.subr.mxu0 %v452
          %813 = vmatpush1.msra.mxu0 %v451
          %814 = vmatprep.subr.mxu0 %v448
          %815 = vmatpush1.msra.mxu0 %v447
          %816 = vmatprep.subr.mxu0 %v444
          %817 = vmatpush1.msra.mxu0 %v443
          %818 = vmatprep.subr.mxu0 %v440
          %819 = vmatpush1.msra.mxu0 %v439
          %820 = vmatprep.subr.mxu0 %v436
          %821 = vmatpush1.msra.mxu0 %v435
          %822 = vmatprep.subr.mxu0 %v432
          %823 = vmatpush1.msra.mxu0 %v431
          %824 = vmatprep.subr.mxu0 %v428
          %825 = vmatpush1.msra.mxu0 %v427
          %826 = vmatprep.subr.mxu0 0.0
          %827 = vmatpush2.msra.mxu0 0.0
          %828 = vmatprep.subr.mxu0 0.0
          %829 = vmatpush2.msra.mxu0 0.0
          %830 = vmatprep.subr.mxu0 0.0
          %831 = vmatpush2.msra.mxu0 0.0
          %832 = vmatprep.subr.mxu0 0.0
          %833 = vmatpush2.msra.mxu0 0.0
          %834 = vmatprep.subr.mxu0 0.0
          %835 = vmatpush2.msra.mxu0 0.0
          %836 = vmatprep.subr.mxu0 0.0
          %837 = vmatpush2.msra.mxu0 0.0
          %838 = vmatprep.subr.mxu0 0.0
          %839 = vmatpush2.msra.mxu0 0.0
          %840 = vmatprep.subr.mxu0 0.0
          %841 = vmatpush2.msra.mxu0 0.0
          %842 = vmatprep.subr.mxu0 0.0
          %843 = vmatpush2.msra.mxu0 0.0
          %844 = vmatprep.subr.mxu0 0.0
          %845 = vmatpush2.msra.mxu0 0.0
          %846 = vmatprep.subr.mxu0 0.0
          %847 = vmatpush2.msra.mxu0 0.0
          %848 = vmatprep.subr.mxu0 0.0
          %849 = vmatpush2.msra.mxu0 0.0
          %850 = vmatprep.subr.mxu0 0.0
          %851 = vmatpush2.msra.mxu0 0.0
          %852 = vmatprep.subr.mxu0 0.0
          %853 = vmatpush2.msra.mxu0 0.0
          %854 = vmatprep.subr.mxu0 0.0
          %855 = vmatpush2.msra.mxu0 0.0
          %856 = vmatprep.subr.mxu0 0.0
          %857 = vmatpush2.msra.mxu0 0.0
          %858 = vmatprep.mubr.f32.mxu0 0.0
          %859 = vmatmul.mubr.f32.gmra.mxu0 %v496
          %v860 = vpop.f32.mrf.mxu0
          %v861 = vadd.f32 0.0, %v860
          %v862 = vpop.f32.mrf.mxu0
          %v863 = vadd.f32 0.0, %v862
          %864 = vdwg.mxu0
          %v865 = vadd.f32 %v719, %v790
          %v866 = vadd.f32 %v720, %v792
          %v867 = vadd.f32 %v721, %v861
          %v868 = vadd.f32 %v722, %v863
          %v869 = vxor.u32 %v865, 2147483648
          %v870 = vmul.f32 %v869, 1.442695
          %v871 = vpow.pop %v870
          %v872 = vadd.f32 %v871, 1.0
          %v873 = vrcp.pop %v872
          %v874 = vmul.f32 1.0, %v873
          %v875 = vxor.u32 %v866, 2147483648
          %v876 = vmul.f32 %v875, 1.442695
          %v877 = vpow.pop %v876
          %v878 = vadd.f32 %v877, 1.0
          %v879 = vrcp.pop %v878
          %v880 = vmul.f32 1.0, %v879
          %v881 = vtanh.pop %v867
          %v882 = vxor.u32 %v868, 2147483648
          %v883 = vmul.f32 %v882, 1.442695
          %v884 = vpow.pop %v883
          %v885 = vadd.f32 %v884, 1.0
          %v886 = vrcp.pop %v885
          %v887 = vmul.f32 1.0, %v886
          %v888 = vmul.f32 %v880, %v497
          %v889 = vmul.f32 %v874, %v881
          %v890 = vadd.f32 %v888, %v889
          %v891 = vtanh.pop %v890
          %v892 = vmul.f32 %v887, %v891
          %s893 = scalar_lea.vmem [#allocation2], %s498
          %894 = vst [vmem:[%s893] sm:$0xff] %v892
          %v895 = vld [vmem:[#allocation3 + $0x20] sm:$0xff]
          %v896 = vld [vmem:[#allocation3 + $0x28] sm:$0xff]
          %v897 = vld [vmem:[#allocation3 + $0x30] sm:$0xff]
          %v898 = vld [vmem:[#allocation3 + $0x38] sm:$0xff]
          %899 = vmatprep.subr.mxu0 %v486
          %900 = vmatpush1.msra.mxu0 %v485
          %901 = vmatprep.subr.mxu0 %v482
          %902 = vmatpush1.msra.mxu0 %v481
          %903 = vmatprep.subr.mxu0 %v478
          %904 = vmatpush1.msra.mxu0 %v477
          %905 = vmatprep.subr.mxu0 %v474
          %906 = vmatpush1.msra.mxu0 %v473
          %907 = vmatprep.subr.mxu0 %v470
          %908 = vmatpush1.msra.mxu0 %v469
          %909 = vmatprep.subr.mxu0 %v466
          %910 = vmatpush1.msra.mxu0 %v465
          %911 = vmatprep.subr.mxu0 %v462
          %912 = vmatpush1.msra.mxu0 %v461
          %913 = vmatprep.subr.mxu0 %v458
          %914 = vmatpush1.msra.mxu0 %v457
          %915 = vmatprep.subr.mxu0 %v454
          %916 = vmatpush1.msra.mxu0 %v453
          %917 = vmatprep.subr.mxu0 %v450
          %918 = vmatpush1.msra.mxu0 %v449
          %919 = vmatprep.subr.mxu0 %v446
          %920 = vmatpush1.msra.mxu0 %v445
          %921 = vmatprep.subr.mxu0 %v442
          %922 = vmatpush1.msra.mxu0 %v441
          %923 = vmatprep.subr.mxu0 %v438
          %924 = vmatpush1.msra.mxu0 %v437
          %925 = vmatprep.subr.mxu0 %v434
          %926 = vmatpush1.msra.mxu0 %v433
          %927 = vmatprep.subr.mxu0 %v430
          %928 = vmatpush1.msra.mxu0 %v429
          %929 = vmatprep.subr.mxu0 %v426
          %930 = vmatpush1.msra.mxu0 %v425
          %931 = vmatprep.subr.mxu0 0.0
          %932 = vmatpush2.msra.mxu0 0.0
          %933 = vmatprep.subr.mxu0 0.0
          %934 = vmatpush2.msra.mxu0 0.0
          %935 = vmatprep.subr.mxu0 0.0
          %936 = vmatpush2.msra.mxu0 0.0
          %937 = vmatprep.subr.mxu0 0.0
          %938 = vmatpush2.msra.mxu0 0.0
          %939 = vmatprep.subr.mxu0 0.0
          %940 = vmatpush2.msra.mxu0 0.0
          %941 = vmatprep.subr.mxu0 0.0
          %942 = vmatpush2.msra.mxu0 0.0
          %943 = vmatprep.subr.mxu0 0.0
          %944 = vmatpush2.msra.mxu0 0.0
          %945 = vmatprep.subr.mxu0 0.0
          %946 = vmatpush2.msra.mxu0 0.0
          %947 = vmatprep.subr.mxu0 0.0
          %948 = vmatpush2.msra.mxu0 0.0
          %949 = vmatprep.subr.mxu0 0.0
          %950 = vmatpush2.msra.mxu0 0.0
          %951 = vmatprep.subr.mxu0 0.0
          %952 = vmatpush2.msra.mxu0 0.0
          %953 = vmatprep.subr.mxu0 0.0
          %954 = vmatpush2.msra.mxu0 0.0
          %955 = vmatprep.subr.mxu0 0.0
          %956 = vmatpush2.msra.mxu0 0.0
          %957 = vmatprep.subr.mxu0 0.0
          %958 = vmatpush2.msra.mxu0 0.0
          %959 = vmatprep.subr.mxu0 0.0
          %960 = vmatpush2.msra.mxu0 0.0
          %961 = vmatprep.subr.mxu0 0.0
          %962 = vmatpush2.msra.mxu0 0.0
          %963 = vmatprep.mubr.f32.mxu0 0.0
          %964 = vmatmul.mubr.f32.gmra.mxu0 %v892
          %v965 = vpop.f32.mrf.mxu0
          %v966 = vadd.f32 0.0, %v965
          %v967 = vpop.f32.mrf.mxu0
          %v968 = vadd.f32 0.0, %v967
          %969 = vdwg.mxu0
          %970 = vmatprep.subr.mxu0 %v488
          %971 = vmatpush1.msra.mxu0 %v487
          %972 = vmatprep.subr.mxu0 %v484
          %973 = vmatpush1.msra.mxu0 %v483
          %974 = vmatprep.subr.mxu0 %v480
          %975 = vmatpush1.msra.mxu0 %v479
          %976 = vmatprep.subr.mxu0 %v476
          %977 = vmatpush1.msra.mxu0 %v475
          %978 = vmatprep.subr.mxu0 %v472
          %979 = vmatpush1.msra.mxu0 %v471
          %980 = vmatprep.subr.mxu0 %v468
          %981 = vmatpush1.msra.mxu0 %v467
          %982 = vmatprep.subr.mxu0 %v464
          %983 = vmatpush1.msra.mxu0 %v463
          %984 = vmatprep.subr.mxu0 %v460
          %985 = vmatpush1.msra.mxu0 %v459
          %986 = vmatprep.subr.mxu0 %v456
          %987 = vmatpush1.msra.mxu0 %v455
          %988 = vmatprep.subr.mxu0 %v452
          %989 = vmatpush1.msra.mxu0 %v451
          %990 = vmatprep.subr.mxu0 %v448
          %991 = vmatpush1.msra.mxu0 %v447
          %992 = vmatprep.subr.mxu0 %v444
          %993 = vmatpush1.msra.mxu0 %v443
          %994 = vmatprep.subr.mxu0 %v440
          %995 = vmatpush1.msra.mxu0 %v439
          %996 = vmatprep.subr.mxu0 %v436
          %997 = vmatpush1.msra.mxu0 %v435
          %998 = vmatprep.subr.mxu0 %v432
          %999 = vmatpush1.msra.mxu0 %v431
          %1000 = vmatprep.subr.mxu0 %v428
          %1001 = vmatpush1.msra.mxu0 %v427
          %1002 = vmatprep.subr.mxu0 0.0
          %1003 = vmatpush2.msra.mxu0 0.0
          %1004 = vmatprep.subr.mxu0 0.0
          %1005 = vmatpush2.msra.mxu0 0.0
          %1006 = vmatprep.subr.mxu0 0.0
          %1007 = vmatpush2.msra.mxu0 0.0
          %1008 = vmatprep.subr.mxu0 0.0
          %1009 = vmatpush2.msra.mxu0 0.0
          %1010 = vmatprep.subr.mxu0 0.0
          %1011 = vmatpush2.msra.mxu0 0.0
          %1012 = vmatprep.subr.mxu0 0.0
          %1013 = vmatpush2.msra.mxu0 0.0
          %1014 = vmatprep.subr.mxu0 0.0
          %1015 = vmatpush2.msra.mxu0 0.0
          %1016 = vmatprep.subr.mxu0 0.0
          %1017 = vmatpush2.msra.mxu0 0.0
          %1018 = vmatprep.subr.mxu0 0.0
          %1019 = vmatpush2.msra.mxu0 0.0
          %1020 = vmatprep.subr.mxu0 0.0
          %1021 = vmatpush2.msra.mxu0 0.0
          %1022 = vmatprep.subr.mxu0 0.0
          %1023 = vmatpush2.msra.mxu0 0.0
          %1024 = vmatprep.subr.mxu0 0.0
          %1025 = vmatpush2.msra.mxu0 0.0
          %1026 = vmatprep.subr.mxu0 0.0
          %1027 = vmatpush2.msra.mxu0 0.0
          %1028 = vmatprep.subr.mxu0 0.0
          %1029 = vmatpush2.msra.mxu0 0.0
          %1030 = vmatprep.subr.mxu0 0.0
          %1031 = vmatpush2.msra.mxu0 0.0
          %1032 = vmatprep.subr.mxu0 0.0
          %1033 = vmatpush2.msra.mxu0 0.0
          %1034 = vmatprep.mubr.f32.mxu0 0.0
          %1035 = vmatmul.mubr.f32.gmra.mxu0 %v892
          %v1036 = vpop.f32.mrf.mxu0
          %v1037 = vadd.f32 0.0, %v1036
          %v1038 = vpop.f32.mrf.mxu0
          %v1039 = vadd.f32 0.0, %v1038
          %1040 = vdwg.mxu0
          %v1041 = vadd.f32 %v895, %v966
          %v1042 = vadd.f32 %v896, %v968
          %v1043 = vadd.f32 %v897, %v1037
          %v1044 = vadd.f32 %v898, %v1039
          %v1045 = vxor.u32 %v1041, 2147483648
          %v1046 = vmul.f32 %v1045, 1.442695
          %v1047 = vpow.pop %v1046
          %v1048 = vadd.f32 %v1047, 1.0
          %v1049 = vrcp.pop %v1048
          %v1050 = vmul.f32 1.0, %v1049
          %v1051 = vxor.u32 %v1042, 2147483648
          %v1052 = vmul.f32 %v1051, 1.442695
          %v1053 = vpow.pop %v1052
          %v1054 = vadd.f32 %v1053, 1.0
          %v1055 = vrcp.pop %v1054
          %v1056 = vmul.f32 1.0, %v1055
          %v1057 = vtanh.pop %v1043
          %v1058 = vxor.u32 %v1044, 2147483648
          %v1059 = vmul.f32 %v1058, 1.442695
          %v1060 = vpow.pop %v1059
          %v1061 = vadd.f32 %v1060, 1.0
          %v1062 = vrcp.pop %v1061
          %v1063 = vmul.f32 1.0, %v1062
          %v1064 = vmul.f32 %v1056, %v890
          %v1065 = vmul.f32 %v1050, %v1057
          %v1066 = vadd.f32 %v1064, %v1065
          %v1067 = vtanh.pop %v1066
          %v1068 = vmul.f32 %v1063, %v1067
          %s1069 = sadd.s32 %s498, 8
          %s1070 = scalar_lea.vmem [#allocation2], %s1069
          %1071 = vst [vmem:[%s1070] sm:$0xff] %v1068
          %v1072 = vld [vmem:[#allocation3 + $0x40] sm:$0xff]
          %v1073 = vld [vmem:[#allocation3 + $0x48] sm:$0xff]
          %v1074 = vld [vmem:[#allocation3 + $0x50] sm:$0xff]
          %v1075 = vld [vmem:[#allocation3 + $0x58] sm:$0xff]
          %1076 = vmatprep.subr.mxu0 %v486
          %1077 = vmatpush1.msra.mxu0 %v485
          %1078 = vmatprep.subr.mxu0 %v482
          %1079 = vmatpush1.msra.mxu0 %v481
          %1080 = vmatprep.subr.mxu0 %v478
          %1081 = vmatpush1.msra.mxu0 %v477
          %1082 = vmatprep.subr.mxu0 %v474
          %1083 = vmatpush1.msra.mxu0 %v473
          %1084 = vmatprep.subr.mxu0 %v470
          %1085 = vmatpush1.msra.mxu0 %v469
          %1086 = vmatprep.subr.mxu0 %v466
          %1087 = vmatpush1.msra.mxu0 %v465
          %1088 = vmatprep.subr.mxu0 %v462
          %1089 = vmatpush1.msra.mxu0 %v461
          %1090 = vmatprep.subr.mxu0 %v458
          %1091 = vmatpush1.msra.mxu0 %v457
          %1092 = vmatprep.subr.mxu0 %v454
          %1093 = vmatpush1.msra.mxu0 %v453
          %1094 = vmatprep.subr.mxu0 %v450
          %1095 = vmatpush1.msra.mxu0 %v449
          %1096 = vmatprep.subr.mxu0 %v446
          %1097 = vmatpush1.msra.mxu0 %v445
          %1098 = vmatprep.subr.mxu0 %v442
          %1099 = vmatpush1.msra.mxu0 %v441
          %1100 = vmatprep.subr.mxu0 %v438
          %1101 = vmatpush1.msra.mxu0 %v437
          %1102 = vmatprep.subr.mxu0 %v434
          %1103 = vmatpush1.msra.mxu0 %v433
          %1104 = vmatprep.subr.mxu0 %v430
          %1105 = vmatpush1.msra.mxu0 %v429
          %1106 = vmatprep.subr.mxu0 %v426
          %1107 = vmatpush1.msra.mxu0 %v425
          %1108 = vmatprep.subr.mxu0 0.0
          %1109 = vmatpush2.msra.mxu0 0.0
          %1110 = vmatprep.subr.mxu0 0.0
          %1111 = vmatpush2.msra.mxu0 0.0
          %1112 = vmatprep.subr.mxu0 0.0
          %1113 = vmatpush2.msra.mxu0 0.0
          %1114 = vmatprep.subr.mxu0 0.0
          %1115 = vmatpush2.msra.mxu0 0.0
          %1116 = vmatprep.subr.mxu0 0.0
          %1117 = vmatpush2.msra.mxu0 0.0
          %1118 = vmatprep.subr.mxu0 0.0
          %1119 = vmatpush2.msra.mxu0 0.0
          %1120 = vmatprep.subr.mxu0 0.0
          %1121 = vmatpush2.msra.mxu0 0.0
          %1122 = vmatprep.subr.mxu0 0.0
          %1123 = vmatpush2.msra.mxu0 0.0
          %1124 = vmatprep.subr.mxu0 0.0
          %1125 = vmatpush2.msra.mxu0 0.0
          %1126 = vmatprep.subr.mxu0 0.0
          %1127 = vmatpush2.msra.mxu0 0.0
          %1128 = vmatprep.subr.mxu0 0.0
          %1129 = vmatpush2.msra.mxu0 0.0
          %1130 = vmatprep.subr.mxu0 0.0
          %1131 = vmatpush2.msra.mxu0 0.0
          %1132 = vmatprep.subr.mxu0 0.0
          %1133 = vmatpush2.msra.mxu0 0.0
          %1134 = vmatprep.subr.mxu0 0.0
          %1135 = vmatpush2.msra.mxu0 0.0
          %1136 = vmatprep.subr.mxu0 0.0
          %1137 = vmatpush2.msra.mxu0 0.0
          %1138 = vmatprep.subr.mxu0 0.0
          %1139 = vmatpush2.msra.mxu0 0.0
          %1140 = vmatprep.mubr.f32.mxu0 0.0
          %1141 = vmatmul.mubr.f32.gmra.mxu0 %v1068
          %v1142 = vpop.f32.mrf.mxu0
          %v1143 = vadd.f32 0.0, %v1142
          %v1144 = vpop.f32.mrf.mxu0
          %v1145 = vadd.f32 0.0, %v1144
          %1146 = vdwg.mxu0
          %1147 = vmatprep.subr.mxu0 %v488
          %1148 = vmatpush1.msra.mxu0 %v487
          %1149 = vmatprep.subr.mxu0 %v484
          %1150 = vmatpush1.msra.mxu0 %v483
          %1151 = vmatprep.subr.mxu0 %v480
          %1152 = vmatpush1.msra.mxu0 %v479
          %1153 = vmatprep.subr.mxu0 %v476
          %1154 = vmatpush1.msra.mxu0 %v475
          %1155 = vmatprep.subr.mxu0 %v472
          %1156 = vmatpush1.msra.mxu0 %v471
          %1157 = vmatprep.subr.mxu0 %v468
          %1158 = vmatpush1.msra.mxu0 %v467
          %1159 = vmatprep.subr.mxu0 %v464
          %1160 = vmatpush1.msra.mxu0 %v463
          %1161 = vmatprep.subr.mxu0 %v460
          %1162 = vmatpush1.msra.mxu0 %v459
          %1163 = vmatprep.subr.mxu0 %v456
          %1164 = vmatpush1.msra.mxu0 %v455
          %1165 = vmatprep.subr.mxu0 %v452
          %1166 = vmatpush1.msra.mxu0 %v451
          %1167 = vmatprep.subr.mxu0 %v448
          %1168 = vmatpush1.msra.mxu0 %v447
          %1169 = vmatprep.subr.mxu0 %v444
          %1170 = vmatpush1.msra.mxu0 %v443
          %1171 = vmatprep.subr.mxu0 %v440
          %1172 = vmatpush1.msra.mxu0 %v439
          %1173 = vmatprep.subr.mxu0 %v436
          %1174 = vmatpush1.msra.mxu0 %v435
          %1175 = vmatprep.subr.mxu0 %v432
          %1176 = vmatpush1.msra.mxu0 %v431
          %1177 = vmatprep.subr.mxu0 %v428
          %1178 = vmatpush1.msra.mxu0 %v427
          %1179 = vmatprep.subr.mxu0 0.0
          %1180 = vmatpush2.msra.mxu0 0.0
          %1181 = vmatprep.subr.mxu0 0.0
          %1182 = vmatpush2.msra.mxu0 0.0
          %1183 = vmatprep.subr.mxu0 0.0
          %1184 = vmatpush2.msra.mxu0 0.0
          %1185 = vmatprep.subr.mxu0 0.0
          %1186 = vmatpush2.msra.mxu0 0.0
          %1187 = vmatprep.subr.mxu0 0.0
          %1188 = vmatpush2.msra.mxu0 0.0
          %1189 = vmatprep.subr.mxu0 0.0
          %1190 = vmatpush2.msra.mxu0 0.0
          %1191 = vmatprep.subr.mxu0 0.0
          %1192 = vmatpush2.msra.mxu0 0.0
          %1193 = vmatprep.subr.mxu0 0.0
          %1194 = vmatpush2.msra.mxu0 0.0
          %1195 = vmatprep.subr.mxu0 0.0
          %1196 = vmatpush2.msra.mxu0 0.0
          %1197 = vmatprep.subr.mxu0 0.0
          %1198 = vmatpush2.msra.mxu0 0.0
          %1199 = vmatprep.subr.mxu0 0.0
          %1200 = vmatpush2.msra.mxu0 0.0
          %1201 = vmatprep.subr.mxu0 0.0
          %1202 = vmatpush2.msra.mxu0 0.0
          %1203 = vmatprep.subr.mxu0 0.0
          %1204 = vmatpush2.msra.mxu0 0.0
          %1205 = vmatprep.subr.mxu0 0.0
          %1206 = vmatpush2.msra.mxu0 0.0
          %1207 = vmatprep.subr.mxu0 0.0
          %1208 = vmatpush2.msra.mxu0 0.0
          %1209 = vmatprep.subr.mxu0 0.0
          %1210 = vmatpush2.msra.mxu0 0.0
          %1211 = vmatprep.mubr.f32.mxu0 0.0
          %1212 = vmatmul.mubr.f32.gmra.mxu0 %v1068
          %v1213 = vpop.f32.mrf.mxu0
          %v1214 = vadd.f32 0.0, %v1213
          %v1215 = vpop.f32.mrf.mxu0
          %v1216 = vadd.f32 0.0, %v1215
          %1217 = vdwg.mxu0
          %v1218 = vadd.f32 %v1072, %v1143
          %v1219 = vadd.f32 %v1073, %v1145
          %v1220 = vadd.f32 %v1074, %v1214
          %v1221 = vadd.f32 %v1075, %v1216
          %v1222 = vxor.u32 %v1218, 2147483648
          %v1223 = vmul.f32 %v1222, 1.442695
          %v1224 = vpow.pop %v1223
          %v1225 = vadd.f32 %v1224, 1.0
          %v1226 = vrcp.pop %v1225
          %v1227 = vmul.f32 1.0, %v1226
          %v1228 = vxor.u32 %v1219, 2147483648
          %v1229 = vmul.f32 %v1228, 1.442695
          %v1230 = vpow.pop %v1229
          %v1231 = vadd.f32 %v1230, 1.0
          %v1232 = vrcp.pop %v1231
          %v1233 = vmul.f32 1.0, %v1232
          %v1234 = vtanh.pop %v1220
          %v1235 = vxor.u32 %v1221, 2147483648
          %v1236 = vmul.f32 %v1235, 1.442695
          %v1237 = vpow.pop %v1236
          %v1238 = vadd.f32 %v1237, 1.0
          %v1239 = vrcp.pop %v1238
          %v1240 = vmul.f32 1.0, %v1239
          %v1241 = vmul.f32 %v1233, %v1066
          %v1242 = vmul.f32 %v1227, %v1234
          %v1243 = vadd.f32 %v1241, %v1242
          %v1244 = vtanh.pop %v1243
          %v1245 = vmul.f32 %v1240, %v1244
          %s1246 = sadd.s32 %s498, 16
          %s1247 = scalar_lea.vmem [#allocation2], %s1246
          %1248 = vst [vmem:[%s1247] sm:$0xff] %v1245
          %v1249 = vld [vmem:[#allocation3 + $0x60] sm:$0xff]
          %v1250 = vld [vmem:[#allocation3 + $0x68] sm:$0xff]
          %v1251 = vld [vmem:[#allocation3 + $0x70] sm:$0xff]
          %v1252 = vld [vmem:[#allocation3 + $0x78] sm:$0xff]
          %1253 = vmatprep.subr.mxu0 %v486
          %1254 = vmatpush1.msra.mxu0 %v485
          %1255 = vmatprep.subr.mxu0 %v482
          %1256 = vmatpush1.msra.mxu0 %v481
          %1257 = vmatprep.subr.mxu0 %v478
          %1258 = vmatpush1.msra.mxu0 %v477
          %1259 = vmatprep.subr.mxu0 %v474
          %1260 = vmatpush1.msra.mxu0 %v473
          %1261 = vmatprep.subr.mxu0 %v470
          %1262 = vmatpush1.msra.mxu0 %v469
          %1263 = vmatprep.subr.mxu0 %v466
          %1264 = vmatpush1.msra.mxu0 %v465
          %1265 = vmatprep.subr.mxu0 %v462
          %1266 = vmatpush1.msra.mxu0 %v461
          %1267 = vmatprep.subr.mxu0 %v458
          %1268 = vmatpush1.msra.mxu0 %v457
          %1269 = vmatprep.subr.mxu0 %v454
          %1270 = vmatpush1.msra.mxu0 %v453
          %1271 = vmatprep.subr.mxu0 %v450
          %1272 = vmatpush1.msra.mxu0 %v449
          %1273 = vmatprep.subr.mxu0 %v446
          %1274 = vmatpush1.msra.mxu0 %v445
          %1275 = vmatprep.subr.mxu0 %v442
          %1276 = vmatpush1.msra.mxu0 %v441
          %1277 = vmatprep.subr.mxu0 %v438
          %1278 = vmatpush1.msra.mxu0 %v437
          %1279 = vmatprep.subr.mxu0 %v434
          %1280 = vmatpush1.msra.mxu0 %v433
          %1281 = vmatprep.subr.mxu0 %v430
          %1282 = vmatpush1.msra.mxu0 %v429
          %1283 = vmatprep.subr.mxu0 %v426
          %1284 = vmatpush1.msra.mxu0 %v425
          %1285 = vmatprep.subr.mxu0 0.0
          %1286 = vmatpush2.msra.mxu0 0.0
          %1287 = vmatprep.subr.mxu0 0.0
          %1288 = vmatpush2.msra.mxu0 0.0
          %1289 = vmatprep.subr.mxu0 0.0
          %1290 = vmatpush2.msra.mxu0 0.0
          %1291 = vmatprep.subr.mxu0 0.0
          %1292 = vmatpush2.msra.mxu0 0.0
          %1293 = vmatprep.subr.mxu0 0.0
          %1294 = vmatpush2.msra.mxu0 0.0
          %1295 = vmatprep.subr.mxu0 0.0
          %1296 = vmatpush2.msra.mxu0 0.0
          %1297 = vmatprep.subr.mxu0 0.0
          %1298 = vmatpush2.msra.mxu0 0.0
          %1299 = vmatprep.subr.mxu0 0.0
          %1300 = vmatpush2.msra.mxu0 0.0
          %1301 = vmatprep.subr.mxu0 0.0
          %1302 = vmatpush2.msra.mxu0 0.0
          %1303 = vmatprep.subr.mxu0 0.0
          %1304 = vmatpush2.msra.mxu0 0.0
          %1305 = vmatprep.subr.mxu0 0.0
          %1306 = vmatpush2.msra.mxu0 0.0
          %1307 = vmatprep.subr.mxu0 0.0
          %1308 = vmatpush2.msra.mxu0 0.0
          %1309 = vmatprep.subr.mxu0 0.0
          %1310 = vmatpush2.msra.mxu0 0.0
          %1311 = vmatprep.subr.mxu0 0.0
          %1312 = vmatpush2.msra.mxu0 0.0
          %1313 = vmatprep.subr.mxu0 0.0
          %1314 = vmatpush2.msra.mxu0 0.0
          %1315 = vmatprep.subr.mxu0 0.0
          %1316 = vmatpush2.msra.mxu0 0.0
          %1317 = vmatprep.mubr.f32.mxu0 0.0
          %1318 = vmatmul.mubr.f32.gmra.mxu0 %v1245
          %v1319 = vpop.f32.mrf.mxu0
          %v1320 = vadd.f32 0.0, %v1319
          %v1321 = vpop.f32.mrf.mxu0
          %v1322 = vadd.f32 0.0, %v1321
          %1323 = vdwg.mxu0
          %1324 = vmatprep.subr.mxu0 %v488
          %1325 = vmatpush1.msra.mxu0 %v487
          %1326 = vmatprep.subr.mxu0 %v484
          %1327 = vmatpush1.msra.mxu0 %v483
          %1328 = vmatprep.subr.mxu0 %v480
          %1329 = vmatpush1.msra.mxu0 %v479
          %1330 = vmatprep.subr.mxu0 %v476
          %1331 = vmatpush1.msra.mxu0 %v475
          %1332 = vmatprep.subr.mxu0 %v472
          %1333 = vmatpush1.msra.mxu0 %v471
          %1334 = vmatprep.subr.mxu0 %v468
          %1335 = vmatpush1.msra.mxu0 %v467
          %1336 = vmatprep.subr.mxu0 %v464
          %1337 = vmatpush1.msra.mxu0 %v463
          %1338 = vmatprep.subr.mxu0 %v460
          %1339 = vmatpush1.msra.mxu0 %v459
          %1340 = vmatprep.subr.mxu0 %v456
          %1341 = vmatpush1.msra.mxu0 %v455
          %1342 = vmatprep.subr.mxu0 %v452
          %1343 = vmatpush1.msra.mxu0 %v451
          %1344 = vmatprep.subr.mxu0 %v448
          %1345 = vmatpush1.msra.mxu0 %v447
          %1346 = vmatprep.subr.mxu0 %v444
          %1347 = vmatpush1.msra.mxu0 %v443
          %1348 = vmatprep.subr.mxu0 %v440
          %1349 = vmatpush1.msra.mxu0 %v439
          %1350 = vmatprep.subr.mxu0 %v436
          %1351 = vmatpush1.msra.mxu0 %v435
          %1352 = vmatprep.subr.mxu0 %v432
          %1353 = vmatpush1.msra.mxu0 %v431
          %1354 = vmatprep.subr.mxu0 %v428
          %1355 = vmatpush1.msra.mxu0 %v427
          %1356 = vmatprep.subr.mxu0 0.0
          %1357 = vmatpush2.msra.mxu0 0.0
          %1358 = vmatprep.subr.mxu0 0.0
          %1359 = vmatpush2.msra.mxu0 0.0
          %1360 = vmatprep.subr.mxu0 0.0
          %1361 = vmatpush2.msra.mxu0 0.0
          %1362 = vmatprep.subr.mxu0 0.0
          %1363 = vmatpush2.msra.mxu0 0.0
          %1364 = vmatprep.subr.mxu0 0.0
          %1365 = vmatpush2.msra.mxu0 0.0
          %1366 = vmatprep.subr.mxu0 0.0
          %1367 = vmatpush2.msra.mxu0 0.0
          %1368 = vmatprep.subr.mxu0 0.0
          %1369 = vmatpush2.msra.mxu0 0.0
          %1370 = vmatprep.subr.mxu0 0.0
          %1371 = vmatpush2.msra.mxu0 0.0
          %1372 = vmatprep.subr.mxu0 0.0
          %1373 = vmatpush2.msra.mxu0 0.0
          %1374 = vmatprep.subr.mxu0 0.0
          %1375 = vmatpush2.msra.mxu0 0.0
          %1376 = vmatprep.subr.mxu0 0.0
          %1377 = vmatpush2.msra.mxu0 0.0
          %1378 = vmatprep.subr.mxu0 0.0
          %1379 = vmatpush2.msra.mxu0 0.0
          %1380 = vmatprep.subr.mxu0 0.0
          %1381 = vmatpush2.msra.mxu0 0.0
          %1382 = vmatprep.subr.mxu0 0.0
          %1383 = vmatpush2.msra.mxu0 0.0
          %1384 = vmatprep.subr.mxu0 0.0
          %1385 = vmatpush2.msra.mxu0 0.0
          %1386 = vmatprep.subr.mxu0 0.0
          %1387 = vmatpush2.msra.mxu0 0.0
          %1388 = vmatprep.mubr.f32.mxu0 0.0
          %1389 = vmatmul.mubr.f32.gmra.mxu0 %v1245
          %v1390 = vpop.f32.mrf.mxu0
          %v1391 = vadd.f32 0.0, %v1390
          %v1392 = vpop.f32.mrf.mxu0
          %v1393 = vadd.f32 0.0, %v1392
          %1394 = vdwg.mxu0
          %v1395 = vadd.f32 %v1249, %v1320
          %v1396 = vadd.f32 %v1250, %v1322
          %v1397 = vadd.f32 %v1251, %v1391
          %v1398 = vadd.f32 %v1252, %v1393
          %v1399 = vxor.u32 %v1395, 2147483648
          %v1400 = vmul.f32 %v1399, 1.442695
          %v1401 = vpow.pop %v1400
          %v1402 = vadd.f32 %v1401, 1.0
          %v1403 = vrcp.pop %v1402
          %v1404 = vmul.f32 1.0, %v1403
          %v1405 = vxor.u32 %v1396, 2147483648
          %v1406 = vmul.f32 %v1405, 1.442695
          %v1407 = vpow.pop %v1406
          %v1408 = vadd.f32 %v1407, 1.0
          %v1409 = vrcp.pop %v1408
          %v1410 = vmul.f32 1.0, %v1409
          %v1411 = vtanh.pop %v1397
          %v1412 = vxor.u32 %v1398, 2147483648
          %v1413 = vmul.f32 %v1412, 1.442695
          %v1414 = vpow.pop %v1413
          %v1415 = vadd.f32 %v1414, 1.0
          %v1416 = vrcp.pop %v1415
          %v1417 = vmul.f32 1.0, %v1416
          %v1418 = vmul.f32 %v1410, %v1243
          %v1419 = vmul.f32 %v1404, %v1411
          %v1420 = vadd.f32 %v1418, %v1419
          %v1421 = vtanh.pop %v1420
          %v1422 = vmul.f32 %v1417, %v1421
          %s1423 = sadd.s32 %s498, 24
          %s1424 = scalar_lea.vmem [#allocation2], %s1423
          %1425 = vst [vmem:[%s1424] sm:$0xff] %v1422
        $region69: #{lstm_encoder_forward.1} parent=55 // loop_footer
          %s495 = sadd.s32 1, %s491
        $region70: #{lstm_encoder_forward.1} parent=55 // loop_footer_branch
          %490 = sbr.rel target = $region66
        $region71: #{lstm_encoder_forward.1} parent=55 // loop_exit
          _
        %v1426 = vld [vmem:[#allocation6] sm:$0xff]
        %v1427 = vld [vmem:[#allocation6 + $0x8] sm:$0xff]
        %v1428 = vld [vmem:[#allocation6 + $0x10] sm:$0xff]
        %v1429 = vld [vmem:[#allocation6 + $0x18] sm:$0xff]
        %v1430 = vld [vmem:[#allocation6 + $0x20] sm:$0xff]
        %v1431 = vld [vmem:[#allocation6 + $0x28] sm:$0xff]
        %v1432 = vld [vmem:[#allocation6 + $0x30] sm:$0xff]
        %v1433 = vld [vmem:[#allocation6 + $0x38] sm:$0xff]
        %v1434 = vld [vmem:[#allocation6 + $0x40] sm:$0xff]
        %v1435 = vld [vmem:[#allocation6 + $0x48] sm:$0xff]
        %v1436 = vld [vmem:[#allocation6 + $0x50] sm:$0xff]
        %v1437 = vld [vmem:[#allocation6 + $0x58] sm:$0xff]
        %v1438 = vld [vmem:[#allocation6 + $0x60] sm:$0xff]
        %v1439 = vld [vmem:[#allocation6 + $0x68] sm:$0xff]
        %v1440 = vld [vmem:[#allocation6 + $0x70] sm:$0xff]
        %v1441 = vld [vmem:[#allocation6 + $0x78] sm:$0xff]
        %v1442 = vld [vmem:[%s4] sm:$0xff]
        %v1443 = vld [vmem:[%s4 + $0x8] sm:$0xff]
        %v1444 = vld [vmem:[%s4 + $0x10] sm:$0xff]
        %v1445 = vld [vmem:[%s4 + $0x18] sm:$0xff]
        %v1446 = vld [vmem:[%s4 + $0x20] sm:$0xff]
        %v1447 = vld [vmem:[%s4 + $0x28] sm:$0xff]
        %v1448 = vld [vmem:[%s4 + $0x30] sm:$0xff]
        %v1449 = vld [vmem:[%s4 + $0x38] sm:$0xff]
        %v1450 = vld [vmem:[%s4 + $0x40] sm:$0xff]
        %v1451 = vld [vmem:[%s4 + $0x48] sm:$0xff]
        %v1452 = vld [vmem:[%s4 + $0x50] sm:$0xff]
        %v1453 = vld [vmem:[%s4 + $0x58] sm:$0xff]
        %v1454 = vld [vmem:[%s4 + $0x60] sm:$0xff]
        %v1455 = vld [vmem:[%s4 + $0x68] sm:$0xff]
        %v1456 = vld [vmem:[%s4 + $0x70] sm:$0xff]
        %v1457 = vld [vmem:[%s4 + $0x78] sm:$0xff]
        %v1458 = vld [vmem:[%s4 + $0x80] sm:$0xff]
        %v1459 = vld [vmem:[%s4 + $0x88] sm:$0xff]
        %v1460 = vld [vmem:[%s4 + $0x90] sm:$0xff]
        %v1461 = vld [vmem:[%s4 + $0x98] sm:$0xff]
        %v1462 = vld [vmem:[%s4 + $0xa0] sm:$0xff]
        %v1463 = vld [vmem:[%s4 + $0xa8] sm:$0xff]
        %v1464 = vld [vmem:[%s4 + $0xb0] sm:$0xff]
        %v1465 = vld [vmem:[%s4 + $0xb8] sm:$0xff]
        %v1466 = vld [vmem:[%s4 + $0xc0] sm:$0xff]
        %v1467 = vld [vmem:[%s4 + $0xc8] sm:$0xff]
        %v1468 = vld [vmem:[%s4 + $0xd0] sm:$0xff]
        %v1469 = vld [vmem:[%s4 + $0xd8] sm:$0xff]
        %v1470 = vld [vmem:[%s4 + $0xe0] sm:$0xff]
        %v1471 = vld [vmem:[%s4 + $0xe8] sm:$0xff]
        %v1472 = vld [vmem:[%s4 + $0xf0] sm:$0xff]
        %v1473 = vld [vmem:[%s4 + $0xf8] sm:$0xff]
        %v1474 = vld [vmem:[%s4 + $0x100] sm:$0xff]
        %v1475 = vld [vmem:[%s4 + $0x108] sm:$0xff]
        %v1476 = vld [vmem:[%s4 + $0x110] sm:$0xff]
        %v1477 = vld [vmem:[%s4 + $0x118] sm:$0xff]
        %v1478 = vld [vmem:[%s4 + $0x120] sm:$0xff]
        %v1479 = vld [vmem:[%s4 + $0x128] sm:$0xff]
        %v1480 = vld [vmem:[%s4 + $0x130] sm:$0xff]
        %v1481 = vld [vmem:[%s4 + $0x138] sm:$0xff]
        %v1482 = vld [vmem:[%s4 + $0x140] sm:$0xff]
        %v1483 = vld [vmem:[%s4 + $0x148] sm:$0xff]
        %v1484 = vld [vmem:[%s4 + $0x150] sm:$0xff]
        %v1485 = vld [vmem:[%s4 + $0x158] sm:$0xff]
        %v1486 = vld [vmem:[%s4 + $0x160] sm:$0xff]
        %v1487 = vld [vmem:[%s4 + $0x168] sm:$0xff]
        %v1488 = vld [vmem:[%s4 + $0x170] sm:$0xff]
        %v1489 = vld [vmem:[%s4 + $0x178] sm:$0xff]
        %v1490 = vld [vmem:[%s4 + $0x180] sm:$0xff]
        %v1491 = vld [vmem:[%s4 + $0x188] sm:$0xff]
        %v1492 = vld [vmem:[%s4 + $0x190] sm:$0xff]
        %v1493 = vld [vmem:[%s4 + $0x198] sm:$0xff]
        %v1494 = vld [vmem:[%s4 + $0x1a0] sm:$0xff]
        %v1495 = vld [vmem:[%s4 + $0x1a8] sm:$0xff]
        %v1496 = vld [vmem:[%s4 + $0x1b0] sm:$0xff]
        %v1497 = vld [vmem:[%s4 + $0x1b8] sm:$0xff]
        %v1498 = vld [vmem:[%s4 + $0x1c0] sm:$0xff]
        %v1499 = vld [vmem:[%s4 + $0x1c8] sm:$0xff]
        %v1500 = vld [vmem:[%s4 + $0x1d0] sm:$0xff]
        %v1501 = vld [vmem:[%s4 + $0x1d8] sm:$0xff]
        %v1502 = vld [vmem:[%s4 + $0x1e0] sm:$0xff]
        %v1503 = vld [vmem:[%s4 + $0x1e8] sm:$0xff]
        %v1504 = vld [vmem:[%s4 + $0x1f0] sm:$0xff]
        %v1505 = vld [vmem:[%s4 + $0x1f8] sm:$0xff]
        %v1506 = vld [vmem:[#allocation4] sm:$0xff]
        %v1507 = vld [vmem:[#allocation4 + $0x8] sm:$0xff]
        %v1508 = vld [vmem:[#allocation4 + $0x10] sm:$0xff]
        %v1509 = vld [vmem:[#allocation4 + $0x18] sm:$0xff]
        %v1510 = vld [vmem:[#allocation4 + $0x20] sm:$0xff]
        %v1511 = vld [vmem:[#allocation4 + $0x28] sm:$0xff]
        %v1512 = vld [vmem:[#allocation4 + $0x30] sm:$0xff]
        %v1513 = vld [vmem:[#allocation4 + $0x38] sm:$0xff]
        %v1514 = vld [vmem:[#allocation4 + $0x40] sm:$0xff]
        %v1515 = vld [vmem:[#allocation4 + $0x48] sm:$0xff]
        %v1516 = vld [vmem:[#allocation4 + $0x50] sm:$0xff]
        %v1517 = vld [vmem:[#allocation4 + $0x58] sm:$0xff]
        %v1518 = vld [vmem:[#allocation4 + $0x60] sm:$0xff]
        %v1519 = vld [vmem:[#allocation4 + $0x68] sm:$0xff]
        %v1520 = vld [vmem:[#allocation4 + $0x70] sm:$0xff]
        %v1521 = vld [vmem:[#allocation4 + $0x78] sm:$0xff]
        %v1522 = vld [vmem:[#allocation4 + $0x80] sm:$0xff]
        %v1523 = vld [vmem:[#allocation4 + $0x88] sm:$0xff]
        %v1524 = vld [vmem:[#allocation4 + $0x90] sm:$0xff]
        %v1525 = vld [vmem:[#allocation4 + $0x98] sm:$0xff]
        %v1526 = vld [vmem:[#allocation4 + $0xa0] sm:$0xff]
        %v1527 = vld [vmem:[#allocation4 + $0xa8] sm:$0xff]
        %v1528 = vld [vmem:[#allocation4 + $0xb0] sm:$0xff]
        %v1529 = vld [vmem:[#allocation4 + $0xb8] sm:$0xff]
        %v1530 = vld [vmem:[#allocation4 + $0xc0] sm:$0xff]
        %v1531 = vld [vmem:[#allocation4 + $0xc8] sm:$0xff]
        %v1532 = vld [vmem:[#allocation4 + $0xd0] sm:$0xff]
        %v1533 = vld [vmem:[#allocation4 + $0xd8] sm:$0xff]
        %v1534 = vld [vmem:[#allocation4 + $0xe0] sm:$0xff]
        %v1535 = vld [vmem:[#allocation4 + $0xe8] sm:$0xff]
        %v1536 = vld [vmem:[#allocation4 + $0xf0] sm:$0xff]
        %v1537 = vld [vmem:[#allocation4 + $0xf8] sm:$0xff]
        %v1538 = vld [vmem:[#allocation4 + $0x100] sm:$0xff]
        %v1539 = vld [vmem:[#allocation4 + $0x108] sm:$0xff]
        %v1540 = vld [vmem:[#allocation4 + $0x110] sm:$0xff]
        %v1541 = vld [vmem:[#allocation4 + $0x118] sm:$0xff]
        %v1542 = vld [vmem:[#allocation4 + $0x120] sm:$0xff]
        %v1543 = vld [vmem:[#allocation4 + $0x128] sm:$0xff]
        %v1544 = vld [vmem:[#allocation4 + $0x130] sm:$0xff]
        %v1545 = vld [vmem:[#allocation4 + $0x138] sm:$0xff]
        %v1546 = vld [vmem:[#allocation4 + $0x140] sm:$0xff]
        %v1547 = vld [vmem:[#allocation4 + $0x148] sm:$0xff]
        %v1548 = vld [vmem:[#allocation4 + $0x150] sm:$0xff]
        %v1549 = vld [vmem:[#allocation4 + $0x158] sm:$0xff]
        %v1550 = vld [vmem:[#allocation4 + $0x160] sm:$0xff]
        %v1551 = vld [vmem:[#allocation4 + $0x168] sm:$0xff]
        %v1552 = vld [vmem:[#allocation4 + $0x170] sm:$0xff]
        %v1553 = vld [vmem:[#allocation4 + $0x178] sm:$0xff]
        %v1554 = vld [vmem:[#allocation4 + $0x180] sm:$0xff]
        %v1555 = vld [vmem:[#allocation4 + $0x188] sm:$0xff]
        %v1556 = vld [vmem:[#allocation4 + $0x190] sm:$0xff]
        %v1557 = vld [vmem:[#allocation4 + $0x198] sm:$0xff]
        %v1558 = vld [vmem:[#allocation4 + $0x1a0] sm:$0xff]
        %v1559 = vld [vmem:[#allocation4 + $0x1a8] sm:$0xff]
        %v1560 = vld [vmem:[#allocation4 + $0x1b0] sm:$0xff]
        %v1561 = vld [vmem:[#allocation4 + $0x1b8] sm:$0xff]
        %v1562 = vld [vmem:[#allocation4 + $0x1c0] sm:$0xff]
        %v1563 = vld [vmem:[#allocation4 + $0x1c8] sm:$0xff]
        %v1564 = vld [vmem:[#allocation4 + $0x1d0] sm:$0xff]
        %v1565 = vld [vmem:[#allocation4 + $0x1d8] sm:$0xff]
        %v1566 = vld [vmem:[#allocation4 + $0x1e0] sm:$0xff]
        %v1567 = vld [vmem:[#allocation4 + $0x1e8] sm:$0xff]
        %v1568 = vld [vmem:[#allocation4 + $0x1f0] sm:$0xff]
        %v1569 = vld [vmem:[#allocation4 + $0x1f8] sm:$0xff]
        %v1570 = vld [vmem:[%s6] sm:$0xf]
        loop: start=0, step=1, limit=2
        $region72: #{lstm_encoder_forward.1} parent=55 // loop_pre_header
          _
        $region73: #{lstm_encoder_forward.1} parent=55 // loop_header
          %s1572 = sphi 0, %s1576
          %p1573 = scmp.ge.s32.totalorder %s1572, 2
          %v1577 = vphi 0.0, %v2495
          %v1578 = vphi 0.0, %v2493
        $region74: #{lstm_encoder_forward.1} parent=55 // loop_header_branch
          %1575 = sbr.rel (%p1573) target = $region78
        $region75: #{lstm_encoder_forward.1} parent=55 // loop_body
          %s1579 = smul.u32 %s1572, 32
          %s1580 = scalar_lea.vmem [#allocation2], %s1579
          %v1581 = vld [vmem:[%s1580] sm:$0xff]
          %v1582 = vld [vmem:[%s1580 + $0x8] sm:$0xff]
          %v1583 = vld [vmem:[%s1580 + $0x10] sm:$0xff]
          %v1584 = vld [vmem:[%s1580 + $0x18] sm:$0xff]
          %v1586 = vlaneseq
          %v1587 = vshrl.u32 %v1586, 7
          %v1588 = vsub.s32 0, %v1587
          %v1589 = vrot.slane %v1570, %v1588
          %v1590 = vlaneseq
          %v1591 = vshrl.u32 %v1590, 7
          %v1592 = vsub.s32 1, %v1591
          %v1593 = vrot.slane %v1570, %v1592
          %v1594 = vlaneseq
          %v1595 = vshrl.u32 %v1594, 7
          %v1596 = vsub.s32 2, %v1595
          %v1597 = vrot.slane %v1570, %v1596
          %v1598 = vlaneseq
          %v1599 = vshrl.u32 %v1598, 7
          %v1600 = vsub.s32 3, %v1599
          %v1601 = vrot.slane %v1570, %v1600
          %1606 = vmatprep.subr.mxu0 %v1503
          %1607 = vmatpush1.msra.mxu0 %v1502
          %1608 = vmatprep.subr.mxu0 %v1499
          %1609 = vmatpush1.msra.mxu0 %v1498
          %1610 = vmatprep.subr.mxu0 %v1495
          %1611 = vmatpush1.msra.mxu0 %v1494
          %1612 = vmatprep.subr.mxu0 %v1491
          %1613 = vmatpush1.msra.mxu0 %v1490
          %1614 = vmatprep.subr.mxu0 %v1487
          %1615 = vmatpush1.msra.mxu0 %v1486
          %1616 = vmatprep.subr.mxu0 %v1483
          %1617 = vmatpush1.msra.mxu0 %v1482
          %1618 = vmatprep.subr.mxu0 %v1479
          %1619 = vmatpush1.msra.mxu0 %v1478
          %1620 = vmatprep.subr.mxu0 %v1475
          %1621 = vmatpush1.msra.mxu0 %v1474
          %1622 = vmatprep.subr.mxu0 %v1471
          %1623 = vmatpush1.msra.mxu0 %v1470
          %1624 = vmatprep.subr.mxu0 %v1467
          %1625 = vmatpush1.msra.mxu0 %v1466
          %1626 = vmatprep.subr.mxu0 %v1463
          %1627 = vmatpush1.msra.mxu0 %v1462
          %1628 = vmatprep.subr.mxu0 %v1459
          %1629 = vmatpush1.msra.mxu0 %v1458
          %1630 = vmatprep.subr.mxu0 %v1455
          %1631 = vmatpush1.msra.mxu0 %v1454
          %1632 = vmatprep.subr.mxu0 %v1451
          %1633 = vmatpush1.msra.mxu0 %v1450
          %1634 = vmatprep.subr.mxu0 %v1447
          %1635 = vmatpush1.msra.mxu0 %v1446
          %1636 = vmatprep.subr.mxu0 %v1443
          %1637 = vmatpush1.msra.mxu0 %v1442
          %1638 = vmatprep.subr.mxu0 0.0
          %1639 = vmatpush2.msra.mxu0 0.0
          %1640 = vmatprep.subr.mxu0 0.0
          %1641 = vmatpush2.msra.mxu0 0.0
          %1642 = vmatprep.subr.mxu0 0.0
          %1643 = vmatpush2.msra.mxu0 0.0
          %1644 = vmatprep.subr.mxu0 0.0
          %1645 = vmatpush2.msra.mxu0 0.0
          %1646 = vmatprep.subr.mxu0 0.0
          %1647 = vmatpush2.msra.mxu0 0.0
          %1648 = vmatprep.subr.mxu0 0.0
          %1649 = vmatpush2.msra.mxu0 0.0
          %1650 = vmatprep.subr.mxu0 0.0
          %1651 = vmatpush2.msra.mxu0 0.0
          %1652 = vmatprep.subr.mxu0 0.0
          %1653 = vmatpush2.msra.mxu0 0.0
          %1654 = vmatprep.subr.mxu0 0.0
          %1655 = vmatpush2.msra.mxu0 0.0
          %1656 = vmatprep.subr.mxu0 0.0
          %1657 = vmatpush2.msra.mxu0 0.0
          %1658 = vmatprep.subr.mxu0 0.0
          %1659 = vmatpush2.msra.mxu0 0.0
          %1660 = vmatprep.subr.mxu0 0.0
          %1661 = vmatpush2.msra.mxu0 0.0
          %1662 = vmatprep.subr.mxu0 0.0
          %1663 = vmatpush2.msra.mxu0 0.0
          %1664 = vmatprep.subr.mxu0 0.0
          %1665 = vmatpush2.msra.mxu0 0.0
          %1666 = vmatprep.subr.mxu0 0.0
          %1667 = vmatpush2.msra.mxu0 0.0
          %1668 = vmatprep.subr.mxu0 0.0
          %1669 = vmatpush2.msra.mxu0 0.0
          %1670 = vmatprep.mubr.f32.mxu0 0.0
          %1671 = vmatmul.mubr.f32.gmra.mxu0 %v1581
          %v1672 = vpop.f32.mrf.mxu0
          %v1673 = vadd.f32 %v1589, %v1672
          %v1674 = vpop.f32.mrf.mxu0
          %v1675 = vadd.f32 %v1593, %v1674
          %1676 = vmatprep.mubr.f32.mxu0 0.0
          %1677 = vmatmul.mubr.f32.gmra.mxu0 %v1582
          %v1678 = vpop.f32.mrf.mxu0
          %v1679 = vadd.f32 %v1589, %v1678
          %v1680 = vpop.f32.mrf.mxu0
          %v1681 = vadd.f32 %v1593, %v1680
          %1682 = vmatprep.mubr.f32.mxu0 0.0
          %1683 = vmatmul.mubr.f32.gmra.mxu0 %v1583
          %v1684 = vpop.f32.mrf.mxu0
          %v1685 = vadd.f32 %v1589, %v1684
          %v1686 = vpop.f32.mrf.mxu0
          %v1687 = vadd.f32 %v1593, %v1686
          %1688 = vmatprep.mubr.f32.mxu0 0.0
          %1689 = vmatmul.mubr.f32.gmra.mxu0 %v1584
          %v1690 = vpop.f32.mrf.mxu0
          %v1691 = vadd.f32 %v1589, %v1690
          %v1692 = vpop.f32.mrf.mxu0
          %v1693 = vadd.f32 %v1593, %v1692
          %1694 = vdwg.mxu0
          %1695 = vmatprep.subr.mxu0 %v1505
          %1696 = vmatpush1.msra.mxu0 %v1504
          %1697 = vmatprep.subr.mxu0 %v1501
          %1698 = vmatpush1.msra.mxu0 %v1500
          %1699 = vmatprep.subr.mxu0 %v1497
          %1700 = vmatpush1.msra.mxu0 %v1496
          %1701 = vmatprep.subr.mxu0 %v1493
          %1702 = vmatpush1.msra.mxu0 %v1492
          %1703 = vmatprep.subr.mxu0 %v1489
          %1704 = vmatpush1.msra.mxu0 %v1488
          %1705 = vmatprep.subr.mxu0 %v1485
          %1706 = vmatpush1.msra.mxu0 %v1484
          %1707 = vmatprep.subr.mxu0 %v1481
          %1708 = vmatpush1.msra.mxu0 %v1480
          %1709 = vmatprep.subr.mxu0 %v1477
          %1710 = vmatpush1.msra.mxu0 %v1476
          %1711 = vmatprep.subr.mxu0 %v1473
          %1712 = vmatpush1.msra.mxu0 %v1472
          %1713 = vmatprep.subr.mxu0 %v1469
          %1714 = vmatpush1.msra.mxu0 %v1468
          %1715 = vmatprep.subr.mxu0 %v1465
          %1716 = vmatpush1.msra.mxu0 %v1464
          %1717 = vmatprep.subr.mxu0 %v1461
          %1718 = vmatpush1.msra.mxu0 %v1460
          %1719 = vmatprep.subr.mxu0 %v1457
          %1720 = vmatpush1.msra.mxu0 %v1456
          %1721 = vmatprep.subr.mxu0 %v1453
          %1722 = vmatpush1.msra.mxu0 %v1452
          %1723 = vmatprep.subr.mxu0 %v1449
          %1724 = vmatpush1.msra.mxu0 %v1448
          %1725 = vmatprep.subr.mxu0 %v1445
          %1726 = vmatpush1.msra.mxu0 %v1444
          %1727 = vmatprep.subr.mxu0 0.0
          %1728 = vmatpush2.msra.mxu0 0.0
          %1729 = vmatprep.subr.mxu0 0.0
          %1730 = vmatpush2.msra.mxu0 0.0
          %1731 = vmatprep.subr.mxu0 0.0
          %1732 = vmatpush2.msra.mxu0 0.0
          %1733 = vmatprep.subr.mxu0 0.0
          %1734 = vmatpush2.msra.mxu0 0.0
          %1735 = vmatprep.subr.mxu0 0.0
          %1736 = vmatpush2.msra.mxu0 0.0
          %1737 = vmatprep.subr.mxu0 0.0
          %1738 = vmatpush2.msra.mxu0 0.0
          %1739 = vmatprep.subr.mxu0 0.0
          %1740 = vmatpush2.msra.mxu0 0.0
          %1741 = vmatprep.subr.mxu0 0.0
          %1742 = vmatpush2.msra.mxu0 0.0
          %1743 = vmatprep.subr.mxu0 0.0
          %1744 = vmatpush2.msra.mxu0 0.0
          %1745 = vmatprep.subr.mxu0 0.0
          %1746 = vmatpush2.msra.mxu0 0.0
          %1747 = vmatprep.subr.mxu0 0.0
          %1748 = vmatpush2.msra.mxu0 0.0
          %1749 = vmatprep.subr.mxu0 0.0
          %1750 = vmatpush2.msra.mxu0 0.0
          %1751 = vmatprep.subr.mxu0 0.0
          %1752 = vmatpush2.msra.mxu0 0.0
          %1753 = vmatprep.subr.mxu0 0.0
          %1754 = vmatpush2.msra.mxu0 0.0
          %1755 = vmatprep.subr.mxu0 0.0
          %1756 = vmatpush2.msra.mxu0 0.0
          %1757 = vmatprep.subr.mxu0 0.0
          %1758 = vmatpush2.msra.mxu0 0.0
          %1759 = vmatprep.mubr.f32.mxu0 0.0
          %1760 = vmatmul.mubr.f32.gmra.mxu0 %v1581
          %v1761 = vpop.f32.mrf.mxu0
          %v1762 = vadd.f32 %v1597, %v1761
          %v1763 = vpop.f32.mrf.mxu0
          %v1764 = vadd.f32 %v1601, %v1763
          %1765 = vmatprep.mubr.f32.mxu0 0.0
          %1766 = vmatmul.mubr.f32.gmra.mxu0 %v1582
          %v1767 = vpop.f32.mrf.mxu0
          %v1768 = vadd.f32 %v1597, %v1767
          %v1769 = vpop.f32.mrf.mxu0
          %v1770 = vadd.f32 %v1601, %v1769
          %1771 = vmatprep.mubr.f32.mxu0 0.0
          %1772 = vmatmul.mubr.f32.gmra.mxu0 %v1583
          %v1773 = vpop.f32.mrf.mxu0
          %v1774 = vadd.f32 %v1597, %v1773
          %v1775 = vpop.f32.mrf.mxu0
          %v1776 = vadd.f32 %v1601, %v1775
          %1777 = vmatprep.mubr.f32.mxu0 0.0
          %1778 = vmatmul.mubr.f32.gmra.mxu0 %v1584
          %v1779 = vpop.f32.mrf.mxu0
          %v1780 = vadd.f32 %v1597, %v1779
          %v1781 = vpop.f32.mrf.mxu0
          %v1782 = vadd.f32 %v1601, %v1781
          %1783 = vdwg.mxu0
          %1784 = vst [vmem:[#allocation3] sm:$0xff] %v1673
          %1785 = vst [vmem:[#allocation3 + $0x8] sm:$0xff] %v1675
          %1786 = vst [vmem:[#allocation3 + $0x10] sm:$0xff] %v1762
          %1787 = vst [vmem:[#allocation3 + $0x18] sm:$0xff] %v1764
          %1788 = vst [vmem:[#allocation3 + $0x20] sm:$0xff] %v1679
          %1789 = vst [vmem:[#allocation3 + $0x28] sm:$0xff] %v1681
          %1790 = vst [vmem:[#allocation3 + $0x30] sm:$0xff] %v1768
          %1791 = vst [vmem:[#allocation3 + $0x38] sm:$0xff] %v1770
          %1792 = vst [vmem:[#allocation3 + $0x40] sm:$0xff] %v1685
          %1793 = vst [vmem:[#allocation3 + $0x48] sm:$0xff] %v1687
          %1794 = vst [vmem:[#allocation3 + $0x50] sm:$0xff] %v1774
          %1795 = vst [vmem:[#allocation3 + $0x58] sm:$0xff] %v1776
          %1796 = vst [vmem:[#allocation3 + $0x60] sm:$0xff] %v1691
          %1797 = vst [vmem:[#allocation3 + $0x68] sm:$0xff] %v1693
          %1798 = vst [vmem:[#allocation3 + $0x70] sm:$0xff] %v1780
          %1799 = vst [vmem:[#allocation3 + $0x78] sm:$0xff] %v1782
          %v1800 = vld [vmem:[#allocation3] sm:$0xff]
          %v1801 = vld [vmem:[#allocation3 + $0x8] sm:$0xff]
          %v1802 = vld [vmem:[#allocation3 + $0x10] sm:$0xff]
          %v1803 = vld [vmem:[#allocation3 + $0x18] sm:$0xff]
          %1804 = vmatprep.subr.mxu0 %v1567
          %1805 = vmatpush1.msra.mxu0 %v1566
          %1806 = vmatprep.subr.mxu0 %v1563
          %1807 = vmatpush1.msra.mxu0 %v1562
          %1808 = vmatprep.subr.mxu0 %v1559
          %1809 = vmatpush1.msra.mxu0 %v1558
          %1810 = vmatprep.subr.mxu0 %v1555
          %1811 = vmatpush1.msra.mxu0 %v1554
          %1812 = vmatprep.subr.mxu0 %v1551
          %1813 = vmatpush1.msra.mxu0 %v1550
          %1814 = vmatprep.subr.mxu0 %v1547
          %1815 = vmatpush1.msra.mxu0 %v1546
          %1816 = vmatprep.subr.mxu0 %v1543
          %1817 = vmatpush1.msra.mxu0 %v1542
          %1818 = vmatprep.subr.mxu0 %v1539
          %1819 = vmatpush1.msra.mxu0 %v1538
          %1820 = vmatprep.subr.mxu0 %v1535
          %1821 = vmatpush1.msra.mxu0 %v1534
          %1822 = vmatprep.subr.mxu0 %v1531
          %1823 = vmatpush1.msra.mxu0 %v1530
          %1824 = vmatprep.subr.mxu0 %v1527
          %1825 = vmatpush1.msra.mxu0 %v1526
          %1826 = vmatprep.subr.mxu0 %v1523
          %1827 = vmatpush1.msra.mxu0 %v1522
          %1828 = vmatprep.subr.mxu0 %v1519
          %1829 = vmatpush1.msra.mxu0 %v1518
          %1830 = vmatprep.subr.mxu0 %v1515
          %1831 = vmatpush1.msra.mxu0 %v1514
          %1832 = vmatprep.subr.mxu0 %v1511
          %1833 = vmatpush1.msra.mxu0 %v1510
          %1834 = vmatprep.subr.mxu0 %v1507
          %1835 = vmatpush1.msra.mxu0 %v1506
          %1836 = vmatprep.subr.mxu0 0.0
          %1837 = vmatpush2.msra.mxu0 0.0
          %1838 = vmatprep.subr.mxu0 0.0
          %1839 = vmatpush2.msra.mxu0 0.0
          %1840 = vmatprep.subr.mxu0 0.0
          %1841 = vmatpush2.msra.mxu0 0.0
          %1842 = vmatprep.subr.mxu0 0.0
          %1843 = vmatpush2.msra.mxu0 0.0
          %1844 = vmatprep.subr.mxu0 0.0
          %1845 = vmatpush2.msra.mxu0 0.0
          %1846 = vmatprep.subr.mxu0 0.0
          %1847 = vmatpush2.msra.mxu0 0.0
          %1848 = vmatprep.subr.mxu0 0.0
          %1849 = vmatpush2.msra.mxu0 0.0
          %1850 = vmatprep.subr.mxu0 0.0
          %1851 = vmatpush2.msra.mxu0 0.0
          %1852 = vmatprep.subr.mxu0 0.0
          %1853 = vmatpush2.msra.mxu0 0.0
          %1854 = vmatprep.subr.mxu0 0.0
          %1855 = vmatpush2.msra.mxu0 0.0
          %1856 = vmatprep.subr.mxu0 0.0
          %1857 = vmatpush2.msra.mxu0 0.0
          %1858 = vmatprep.subr.mxu0 0.0
          %1859 = vmatpush2.msra.mxu0 0.0
          %1860 = vmatprep.subr.mxu0 0.0
          %1861 = vmatpush2.msra.mxu0 0.0
          %1862 = vmatprep.subr.mxu0 0.0
          %1863 = vmatpush2.msra.mxu0 0.0
          %1864 = vmatprep.subr.mxu0 0.0
          %1865 = vmatpush2.msra.mxu0 0.0
          %1866 = vmatprep.subr.mxu0 0.0
          %1867 = vmatpush2.msra.mxu0 0.0
          %1868 = vmatprep.mubr.f32.mxu0 0.0
          %1869 = vmatmul.mubr.f32.gmra.mxu0 %v1577
          %v1870 = vpop.f32.mrf.mxu0
          %v1871 = vadd.f32 0.0, %v1870
          %v1872 = vpop.f32.mrf.mxu0
          %v1873 = vadd.f32 0.0, %v1872
          %1874 = vdwg.mxu0
          %1875 = vmatprep.subr.mxu0 %v1569
          %1876 = vmatpush1.msra.mxu0 %v1568
          %1877 = vmatprep.subr.mxu0 %v1565
          %1878 = vmatpush1.msra.mxu0 %v1564
          %1879 = vmatprep.subr.mxu0 %v1561
          %1880 = vmatpush1.msra.mxu0 %v1560
          %1881 = vmatprep.subr.mxu0 %v1557
          %1882 = vmatpush1.msra.mxu0 %v1556
          %1883 = vmatprep.subr.mxu0 %v1553
          %1884 = vmatpush1.msra.mxu0 %v1552
          %1885 = vmatprep.subr.mxu0 %v1549
          %1886 = vmatpush1.msra.mxu0 %v1548
          %1887 = vmatprep.subr.mxu0 %v1545
          %1888 = vmatpush1.msra.mxu0 %v1544
          %1889 = vmatprep.subr.mxu0 %v1541
          %1890 = vmatpush1.msra.mxu0 %v1540
          %1891 = vmatprep.subr.mxu0 %v1537
          %1892 = vmatpush1.msra.mxu0 %v1536
          %1893 = vmatprep.subr.mxu0 %v1533
          %1894 = vmatpush1.msra.mxu0 %v1532
          %1895 = vmatprep.subr.mxu0 %v1529
          %1896 = vmatpush1.msra.mxu0 %v1528
          %1897 = vmatprep.subr.mxu0 %v1525
          %1898 = vmatpush1.msra.mxu0 %v1524
          %1899 = vmatprep.subr.mxu0 %v1521
          %1900 = vmatpush1.msra.mxu0 %v1520
          %1901 = vmatprep.subr.mxu0 %v1517
          %1902 = vmatpush1.msra.mxu0 %v1516
          %1903 = vmatprep.subr.mxu0 %v1513
          %1904 = vmatpush1.msra.mxu0 %v1512
          %1905 = vmatprep.subr.mxu0 %v1509
          %1906 = vmatpush1.msra.mxu0 %v1508
          %1907 = vmatprep.subr.mxu0 0.0
          %1908 = vmatpush2.msra.mxu0 0.0
          %1909 = vmatprep.subr.mxu0 0.0
          %1910 = vmatpush2.msra.mxu0 0.0
          %1911 = vmatprep.subr.mxu0 0.0
          %1912 = vmatpush2.msra.mxu0 0.0
          %1913 = vmatprep.subr.mxu0 0.0
          %1914 = vmatpush2.msra.mxu0 0.0
          %1915 = vmatprep.subr.mxu0 0.0
          %1916 = vmatpush2.msra.mxu0 0.0
          %1917 = vmatprep.subr.mxu0 0.0
          %1918 = vmatpush2.msra.mxu0 0.0
          %1919 = vmatprep.subr.mxu0 0.0
          %1920 = vmatpush2.msra.mxu0 0.0
          %1921 = vmatprep.subr.mxu0 0.0
          %1922 = vmatpush2.msra.mxu0 0.0
          %1923 = vmatprep.subr.mxu0 0.0
          %1924 = vmatpush2.msra.mxu0 0.0
          %1925 = vmatprep.subr.mxu0 0.0
          %1926 = vmatpush2.msra.mxu0 0.0
          %1927 = vmatprep.subr.mxu0 0.0
          %1928 = vmatpush2.msra.mxu0 0.0
          %1929 = vmatprep.subr.mxu0 0.0
          %1930 = vmatpush2.msra.mxu0 0.0
          %1931 = vmatprep.subr.mxu0 0.0
          %1932 = vmatpush2.msra.mxu0 0.0
          %1933 = vmatprep.subr.mxu0 0.0
          %1934 = vmatpush2.msra.mxu0 0.0
          %1935 = vmatprep.subr.mxu0 0.0
          %1936 = vmatpush2.msra.mxu0 0.0
          %1937 = vmatprep.subr.mxu0 0.0
          %1938 = vmatpush2.msra.mxu0 0.0
          %1939 = vmatprep.mubr.f32.mxu0 0.0
          %1940 = vmatmul.mubr.f32.gmra.mxu0 %v1577
          %v1941 = vpop.f32.mrf.mxu0
          %v1942 = vadd.f32 0.0, %v1941
          %v1943 = vpop.f32.mrf.mxu0
          %v1944 = vadd.f32 0.0, %v1943
          %1945 = vdwg.mxu0
          %v1946 = vadd.f32 %v1800, %v1871
          %v1947 = vadd.f32 %v1801, %v1873
          %v1948 = vadd.f32 %v1802, %v1942
          %v1949 = vadd.f32 %v1803, %v1944
          %v1950 = vxor.u32 %v1946, 2147483648
          %v1951 = vmul.f32 %v1950, 1.442695
          %v1952 = vpow.pop %v1951
          %v1953 = vadd.f32 %v1952, 1.0
          %v1954 = vrcp.pop %v1953
          %v1955 = vmul.f32 1.0, %v1954
          %v1956 = vxor.u32 %v1947, 2147483648
          %v1957 = vmul.f32 %v1956, 1.442695
          %v1958 = vpow.pop %v1957
          %v1959 = vadd.f32 %v1958, 1.0
          %v1960 = vrcp.pop %v1959
          %v1961 = vmul.f32 1.0, %v1960
          %v1962 = vtanh.pop %v1948
          %v1963 = vxor.u32 %v1949, 2147483648
          %v1964 = vmul.f32 %v1963, 1.442695
          %v1965 = vpow.pop %v1964
          %v1966 = vadd.f32 %v1965, 1.0
          %v1967 = vrcp.pop %v1966
          %v1968 = vmul.f32 1.0, %v1967
          %v1969 = vmul.f32 %v1961, %v1578
          %v1970 = vmul.f32 %v1955, %v1962
          %v1971 = vadd.f32 %v1969, %v1970
          %v1972 = vtanh.pop %v1971
          %v1973 = vmul.f32 %v1968, %v1972
          %v1974 = vld [vmem:[#allocation3 + $0x20] sm:$0xff]
          %v1975 = vld [vmem:[#allocation3 + $0x28] sm:$0xff]
          %v1976 = vld [vmem:[#allocation3 + $0x30] sm:$0xff]
          %v1977 = vld [vmem:[#allocation3 + $0x38] sm:$0xff]
          %1978 = vmatprep.subr.mxu0 %v1567
          %1979 = vmatpush1.msra.mxu0 %v1566
          %1980 = vmatprep.subr.mxu0 %v1563
          %1981 = vmatpush1.msra.mxu0 %v1562
          %1982 = vmatprep.subr.mxu0 %v1559
          %1983 = vmatpush1.msra.mxu0 %v1558
          %1984 = vmatprep.subr.mxu0 %v1555
          %1985 = vmatpush1.msra.mxu0 %v1554
          %1986 = vmatprep.subr.mxu0 %v1551
          %1987 = vmatpush1.msra.mxu0 %v1550
          %1988 = vmatprep.subr.mxu0 %v1547
          %1989 = vmatpush1.msra.mxu0 %v1546
          %1990 = vmatprep.subr.mxu0 %v1543
          %1991 = vmatpush1.msra.mxu0 %v1542
          %1992 = vmatprep.subr.mxu0 %v1539
          %1993 = vmatpush1.msra.mxu0 %v1538
          %1994 = vmatprep.subr.mxu0 %v1535
          %1995 = vmatpush1.msra.mxu0 %v1534
          %1996 = vmatprep.subr.mxu0 %v1531
          %1997 = vmatpush1.msra.mxu0 %v1530
          %1998 = vmatprep.subr.mxu0 %v1527
          %1999 = vmatpush1.msra.mxu0 %v1526
          %2000 = vmatprep.subr.mxu0 %v1523
          %2001 = vmatpush1.msra.mxu0 %v1522
          %2002 = vmatprep.subr.mxu0 %v1519
          %2003 = vmatpush1.msra.mxu0 %v1518
          %2004 = vmatprep.subr.mxu0 %v1515
          %2005 = vmatpush1.msra.mxu0 %v1514
          %2006 = vmatprep.subr.mxu0 %v1511
          %2007 = vmatpush1.msra.mxu0 %v1510
          %2008 = vmatprep.subr.mxu0 %v1507
          %2009 = vmatpush1.msra.mxu0 %v1506
          %2010 = vmatprep.subr.mxu0 0.0
          %2011 = vmatpush2.msra.mxu0 0.0
          %2012 = vmatprep.subr.mxu0 0.0
          %2013 = vmatpush2.msra.mxu0 0.0
          %2014 = vmatprep.subr.mxu0 0.0
          %2015 = vmatpush2.msra.mxu0 0.0
          %2016 = vmatprep.subr.mxu0 0.0
          %2017 = vmatpush2.msra.mxu0 0.0
          %2018 = vmatprep.subr.mxu0 0.0
          %2019 = vmatpush2.msra.mxu0 0.0
          %2020 = vmatprep.subr.mxu0 0.0
          %2021 = vmatpush2.msra.mxu0 0.0
          %2022 = vmatprep.subr.mxu0 0.0
          %2023 = vmatpush2.msra.mxu0 0.0
          %2024 = vmatprep.subr.mxu0 0.0
          %2025 = vmatpush2.msra.mxu0 0.0
          %2026 = vmatprep.subr.mxu0 0.0
          %2027 = vmatpush2.msra.mxu0 0.0
          %2028 = vmatprep.subr.mxu0 0.0
          %2029 = vmatpush2.msra.mxu0 0.0
          %2030 = vmatprep.subr.mxu0 0.0
          %2031 = vmatpush2.msra.mxu0 0.0
          %2032 = vmatprep.subr.mxu0 0.0
          %2033 = vmatpush2.msra.mxu0 0.0
          %2034 = vmatprep.subr.mxu0 0.0
          %2035 = vmatpush2.msra.mxu0 0.0
          %2036 = vmatprep.subr.mxu0 0.0
          %2037 = vmatpush2.msra.mxu0 0.0
          %2038 = vmatprep.subr.mxu0 0.0
          %2039 = vmatpush2.msra.mxu0 0.0
          %2040 = vmatprep.subr.mxu0 0.0
          %2041 = vmatpush2.msra.mxu0 0.0
          %2042 = vmatprep.mubr.f32.mxu0 0.0
          %2043 = vmatmul.mubr.f32.gmra.mxu0 %v1973
          %v2044 = vpop.f32.mrf.mxu0
          %v2045 = vadd.f32 0.0, %v2044
          %v2046 = vpop.f32.mrf.mxu0
          %v2047 = vadd.f32 0.0, %v2046
          %2048 = vdwg.mxu0
          %2049 = vmatprep.subr.mxu0 %v1569
          %2050 = vmatpush1.msra.mxu0 %v1568
          %2051 = vmatprep.subr.mxu0 %v1565
          %2052 = vmatpush1.msra.mxu0 %v1564
          %2053 = vmatprep.subr.mxu0 %v1561
          %2054 = vmatpush1.msra.mxu0 %v1560
          %2055 = vmatprep.subr.mxu0 %v1557
          %2056 = vmatpush1.msra.mxu0 %v1556
          %2057 = vmatprep.subr.mxu0 %v1553
          %2058 = vmatpush1.msra.mxu0 %v1552
          %2059 = vmatprep.subr.mxu0 %v1549
          %2060 = vmatpush1.msra.mxu0 %v1548
          %2061 = vmatprep.subr.mxu0 %v1545
          %2062 = vmatpush1.msra.mxu0 %v1544
          %2063 = vmatprep.subr.mxu0 %v1541
          %2064 = vmatpush1.msra.mxu0 %v1540
          %2065 = vmatprep.subr.mxu0 %v1537
          %2066 = vmatpush1.msra.mxu0 %v1536
          %2067 = vmatprep.subr.mxu0 %v1533
          %2068 = vmatpush1.msra.mxu0 %v1532
          %2069 = vmatprep.subr.mxu0 %v1529
          %2070 = vmatpush1.msra.mxu0 %v1528
          %2071 = vmatprep.subr.mxu0 %v1525
          %2072 = vmatpush1.msra.mxu0 %v1524
          %2073 = vmatprep.subr.mxu0 %v1521
          %2074 = vmatpush1.msra.mxu0 %v1520
          %2075 = vmatprep.subr.mxu0 %v1517
          %2076 = vmatpush1.msra.mxu0 %v1516
          %2077 = vmatprep.subr.mxu0 %v1513
          %2078 = vmatpush1.msra.mxu0 %v1512
          %2079 = vmatprep.subr.mxu0 %v1509
          %2080 = vmatpush1.msra.mxu0 %v1508
          %2081 = vmatprep.subr.mxu0 0.0
          %2082 = vmatpush2.msra.mxu0 0.0
          %2083 = vmatprep.subr.mxu0 0.0
          %2084 = vmatpush2.msra.mxu0 0.0
          %2085 = vmatprep.subr.mxu0 0.0
          %2086 = vmatpush2.msra.mxu0 0.0
          %2087 = vmatprep.subr.mxu0 0.0
          %2088 = vmatpush2.msra.mxu0 0.0
          %2089 = vmatprep.subr.mxu0 0.0
          %2090 = vmatpush2.msra.mxu0 0.0
          %2091 = vmatprep.subr.mxu0 0.0
          %2092 = vmatpush2.msra.mxu0 0.0
          %2093 = vmatprep.subr.mxu0 0.0
          %2094 = vmatpush2.msra.mxu0 0.0
          %2095 = vmatprep.subr.mxu0 0.0
          %2096 = vmatpush2.msra.mxu0 0.0
          %2097 = vmatprep.subr.mxu0 0.0
          %2098 = vmatpush2.msra.mxu0 0.0
          %2099 = vmatprep.subr.mxu0 0.0
          %2100 = vmatpush2.msra.mxu0 0.0
          %2101 = vmatprep.subr.mxu0 0.0
          %2102 = vmatpush2.msra.mxu0 0.0
          %2103 = vmatprep.subr.mxu0 0.0
          %2104 = vmatpush2.msra.mxu0 0.0
          %2105 = vmatprep.subr.mxu0 0.0
          %2106 = vmatpush2.msra.mxu0 0.0
          %2107 = vmatprep.subr.mxu0 0.0
          %2108 = vmatpush2.msra.mxu0 0.0
          %2109 = vmatprep.subr.mxu0 0.0
          %2110 = vmatpush2.msra.mxu0 0.0
          %2111 = vmatprep.subr.mxu0 0.0
          %2112 = vmatpush2.msra.mxu0 0.0
          %2113 = vmatprep.mubr.f32.mxu0 0.0
          %2114 = vmatmul.mubr.f32.gmra.mxu0 %v1973
          %v2115 = vpop.f32.mrf.mxu0
          %v2116 = vadd.f32 0.0, %v2115
          %v2117 = vpop.f32.mrf.mxu0
          %v2118 = vadd.f32 0.0, %v2117
          %2119 = vdwg.mxu0
          %v2120 = vadd.f32 %v1974, %v2045
          %v2121 = vadd.f32 %v1975, %v2047
          %v2122 = vadd.f32 %v1976, %v2116
          %v2123 = vadd.f32 %v1977, %v2118
          %v2124 = vxor.u32 %v2120, 2147483648
          %v2125 = vmul.f32 %v2124, 1.442695
          %v2126 = vpow.pop %v2125
          %v2127 = vadd.f32 %v2126, 1.0
          %v2128 = vrcp.pop %v2127
          %v2129 = vmul.f32 1.0, %v2128
          %v2130 = vxor.u32 %v2121, 2147483648
          %v2131 = vmul.f32 %v2130, 1.442695
          %v2132 = vpow.pop %v2131
          %v2133 = vadd.f32 %v2132, 1.0
          %v2134 = vrcp.pop %v2133
          %v2135 = vmul.f32 1.0, %v2134
          %v2136 = vtanh.pop %v2122
          %v2137 = vxor.u32 %v2123, 2147483648
          %v2138 = vmul.f32 %v2137, 1.442695
          %v2139 = vpow.pop %v2138
          %v2140 = vadd.f32 %v2139, 1.0
          %v2141 = vrcp.pop %v2140
          %v2142 = vmul.f32 1.0, %v2141
          %v2143 = vmul.f32 %v2135, %v1971
          %v2144 = vmul.f32 %v2129, %v2136
          %v2145 = vadd.f32 %v2143, %v2144
          %v2146 = vtanh.pop %v2145
          %v2147 = vmul.f32 %v2142, %v2146
          %v2148 = vld [vmem:[#allocation3 + $0x40] sm:$0xff]
          %v2149 = vld [vmem:[#allocation3 + $0x48] sm:$0xff]
          %v2150 = vld [vmem:[#allocation3 + $0x50] sm:$0xff]
          %v2151 = vld [vmem:[#allocation3 + $0x58] sm:$0xff]
          %2152 = vmatprep.subr.mxu0 %v1567
          %2153 = vmatpush1.msra.mxu0 %v1566
          %2154 = vmatprep.subr.mxu0 %v1563
          %2155 = vmatpush1.msra.mxu0 %v1562
          %2156 = vmatprep.subr.mxu0 %v1559
          %2157 = vmatpush1.msra.mxu0 %v1558
          %2158 = vmatprep.subr.mxu0 %v1555
          %2159 = vmatpush1.msra.mxu0 %v1554
          %2160 = vmatprep.subr.mxu0 %v1551
          %2161 = vmatpush1.msra.mxu0 %v1550
          %2162 = vmatprep.subr.mxu0 %v1547
          %2163 = vmatpush1.msra.mxu0 %v1546
          %2164 = vmatprep.subr.mxu0 %v1543
          %2165 = vmatpush1.msra.mxu0 %v1542
          %2166 = vmatprep.subr.mxu0 %v1539
          %2167 = vmatpush1.msra.mxu0 %v1538
          %2168 = vmatprep.subr.mxu0 %v1535
          %2169 = vmatpush1.msra.mxu0 %v1534
          %2170 = vmatprep.subr.mxu0 %v1531
          %2171 = vmatpush1.msra.mxu0 %v1530
          %2172 = vmatprep.subr.mxu0 %v1527
          %2173 = vmatpush1.msra.mxu0 %v1526
          %2174 = vmatprep.subr.mxu0 %v1523
          %2175 = vmatpush1.msra.mxu0 %v1522
          %2176 = vmatprep.subr.mxu0 %v1519
          %2177 = vmatpush1.msra.mxu0 %v1518
          %2178 = vmatprep.subr.mxu0 %v1515
          %2179 = vmatpush1.msra.mxu0 %v1514
          %2180 = vmatprep.subr.mxu0 %v1511
          %2181 = vmatpush1.msra.mxu0 %v1510
          %2182 = vmatprep.subr.mxu0 %v1507
          %2183 = vmatpush1.msra.mxu0 %v1506
          %2184 = vmatprep.subr.mxu0 0.0
          %2185 = vmatpush2.msra.mxu0 0.0
          %2186 = vmatprep.subr.mxu0 0.0
          %2187 = vmatpush2.msra.mxu0 0.0
          %2188 = vmatprep.subr.mxu0 0.0
          %2189 = vmatpush2.msra.mxu0 0.0
          %2190 = vmatprep.subr.mxu0 0.0
          %2191 = vmatpush2.msra.mxu0 0.0
          %2192 = vmatprep.subr.mxu0 0.0
          %2193 = vmatpush2.msra.mxu0 0.0
          %2194 = vmatprep.subr.mxu0 0.0
          %2195 = vmatpush2.msra.mxu0 0.0
          %2196 = vmatprep.subr.mxu0 0.0
          %2197 = vmatpush2.msra.mxu0 0.0
          %2198 = vmatprep.subr.mxu0 0.0
          %2199 = vmatpush2.msra.mxu0 0.0
          %2200 = vmatprep.subr.mxu0 0.0
          %2201 = vmatpush2.msra.mxu0 0.0
          %2202 = vmatprep.subr.mxu0 0.0
          %2203 = vmatpush2.msra.mxu0 0.0
          %2204 = vmatprep.subr.mxu0 0.0
          %2205 = vmatpush2.msra.mxu0 0.0
          %2206 = vmatprep.subr.mxu0 0.0
          %2207 = vmatpush2.msra.mxu0 0.0
          %2208 = vmatprep.subr.mxu0 0.0
          %2209 = vmatpush2.msra.mxu0 0.0
          %2210 = vmatprep.subr.mxu0 0.0
          %2211 = vmatpush2.msra.mxu0 0.0
          %2212 = vmatprep.subr.mxu0 0.0
          %2213 = vmatpush2.msra.mxu0 0.0
          %2214 = vmatprep.subr.mxu0 0.0
          %2215 = vmatpush2.msra.mxu0 0.0
          %2216 = vmatprep.mubr.f32.mxu0 0.0
          %2217 = vmatmul.mubr.f32.gmra.mxu0 %v2147
          %v2218 = vpop.f32.mrf.mxu0
          %v2219 = vadd.f32 0.0, %v2218
          %v2220 = vpop.f32.mrf.mxu0
          %v2221 = vadd.f32 0.0, %v2220
          %2222 = vdwg.mxu0
          %2223 = vmatprep.subr.mxu0 %v1569
          %2224 = vmatpush1.msra.mxu0 %v1568
          %2225 = vmatprep.subr.mxu0 %v1565
          %2226 = vmatpush1.msra.mxu0 %v1564
          %2227 = vmatprep.subr.mxu0 %v1561
          %2228 = vmatpush1.msra.mxu0 %v1560
          %2229 = vmatprep.subr.mxu0 %v1557
          %2230 = vmatpush1.msra.mxu0 %v1556
          %2231 = vmatprep.subr.mxu0 %v1553
          %2232 = vmatpush1.msra.mxu0 %v1552
          %2233 = vmatprep.subr.mxu0 %v1549
          %2234 = vmatpush1.msra.mxu0 %v1548
          %2235 = vmatprep.subr.mxu0 %v1545
          %2236 = vmatpush1.msra.mxu0 %v1544
          %2237 = vmatprep.subr.mxu0 %v1541
          %2238 = vmatpush1.msra.mxu0 %v1540
          %2239 = vmatprep.subr.mxu0 %v1537
          %2240 = vmatpush1.msra.mxu0 %v1536
          %2241 = vmatprep.subr.mxu0 %v1533
          %2242 = vmatpush1.msra.mxu0 %v1532
          %2243 = vmatprep.subr.mxu0 %v1529
          %2244 = vmatpush1.msra.mxu0 %v1528
          %2245 = vmatprep.subr.mxu0 %v1525
          %2246 = vmatpush1.msra.mxu0 %v1524
          %2247 = vmatprep.subr.mxu0 %v1521
          %2248 = vmatpush1.msra.mxu0 %v1520
          %2249 = vmatprep.subr.mxu0 %v1517
          %2250 = vmatpush1.msra.mxu0 %v1516
          %2251 = vmatprep.subr.mxu0 %v1513
          %2252 = vmatpush1.msra.mxu0 %v1512
          %2253 = vmatprep.subr.mxu0 %v1509
          %2254 = vmatpush1.msra.mxu0 %v1508
          %2255 = vmatprep.subr.mxu0 0.0
          %2256 = vmatpush2.msra.mxu0 0.0
          %2257 = vmatprep.subr.mxu0 0.0
          %2258 = vmatpush2.msra.mxu0 0.0
          %2259 = vmatprep.subr.mxu0 0.0
          %2260 = vmatpush2.msra.mxu0 0.0
          %2261 = vmatprep.subr.mxu0 0.0
          %2262 = vmatpush2.msra.mxu0 0.0
          %2263 = vmatprep.subr.mxu0 0.0
          %2264 = vmatpush2.msra.mxu0 0.0
          %2265 = vmatprep.subr.mxu0 0.0
          %2266 = vmatpush2.msra.mxu0 0.0
          %2267 = vmatprep.subr.mxu0 0.0
          %2268 = vmatpush2.msra.mxu0 0.0
          %2269 = vmatprep.subr.mxu0 0.0
          %2270 = vmatpush2.msra.mxu0 0.0
          %2271 = vmatprep.subr.mxu0 0.0
          %2272 = vmatpush2.msra.mxu0 0.0
          %2273 = vmatprep.subr.mxu0 0.0
          %2274 = vmatpush2.msra.mxu0 0.0
          %2275 = vmatprep.subr.mxu0 0.0
          %2276 = vmatpush2.msra.mxu0 0.0
          %2277 = vmatprep.subr.mxu0 0.0
          %2278 = vmatpush2.msra.mxu0 0.0
          %2279 = vmatprep.subr.mxu0 0.0
          %2280 = vmatpush2.msra.mxu0 0.0
          %2281 = vmatprep.subr.mxu0 0.0
          %2282 = vmatpush2.msra.mxu0 0.0
          %2283 = vmatprep.subr.mxu0 0.0
          %2284 = vmatpush2.msra.mxu0 0.0
          %2285 = vmatprep.subr.mxu0 0.0
          %2286 = vmatpush2.msra.mxu0 0.0
          %2287 = vmatprep.mubr.f32.mxu0 0.0
          %2288 = vmatmul.mubr.f32.gmra.mxu0 %v2147
          %v2289 = vpop.f32.mrf.mxu0
          %v2290 = vadd.f32 0.0, %v2289
          %v2291 = vpop.f32.mrf.mxu0
          %v2292 = vadd.f32 0.0, %v2291
          %2293 = vdwg.mxu0
          %v2294 = vadd.f32 %v2148, %v2219
          %v2295 = vadd.f32 %v2149, %v2221
          %v2296 = vadd.f32 %v2150, %v2290
          %v2297 = vadd.f32 %v2151, %v2292
          %v2298 = vxor.u32 %v2294, 2147483648
          %v2299 = vmul.f32 %v2298, 1.442695
          %v2300 = vpow.pop %v2299
          %v2301 = vadd.f32 %v2300, 1.0
          %v2302 = vrcp.pop %v2301
          %v2303 = vmul.f32 1.0, %v2302
          %v2304 = vxor.u32 %v2295, 2147483648
          %v2305 = vmul.f32 %v2304, 1.442695
          %v2306 = vpow.pop %v2305
          %v2307 = vadd.f32 %v2306, 1.0
          %v2308 = vrcp.pop %v2307
          %v2309 = vmul.f32 1.0, %v2308
          %v2310 = vtanh.pop %v2296
          %v2311 = vxor.u32 %v2297, 2147483648
          %v2312 = vmul.f32 %v2311, 1.442695
          %v2313 = vpow.pop %v2312
          %v2314 = vadd.f32 %v2313, 1.0
          %v2315 = vrcp.pop %v2314
          %v2316 = vmul.f32 1.0, %v2315
          %v2317 = vmul.f32 %v2309, %v2145
          %v2318 = vmul.f32 %v2303, %v2310
          %v2319 = vadd.f32 %v2317, %v2318
          %v2320 = vtanh.pop %v2319
          %v2321 = vmul.f32 %v2316, %v2320
          %v2322 = vld [vmem:[#allocation3 + $0x60] sm:$0xff]
          %v2323 = vld [vmem:[#allocation3 + $0x68] sm:$0xff]
          %v2324 = vld [vmem:[#allocation3 + $0x70] sm:$0xff]
          %v2325 = vld [vmem:[#allocation3 + $0x78] sm:$0xff]
          %2326 = vmatprep.subr.mxu0 %v1567
          %2327 = vmatpush1.msra.mxu0 %v1566
          %2328 = vmatprep.subr.mxu0 %v1563
          %2329 = vmatpush1.msra.mxu0 %v1562
          %2330 = vmatprep.subr.mxu0 %v1559
          %2331 = vmatpush1.msra.mxu0 %v1558
          %2332 = vmatprep.subr.mxu0 %v1555
          %2333 = vmatpush1.msra.mxu0 %v1554
          %2334 = vmatprep.subr.mxu0 %v1551
          %2335 = vmatpush1.msra.mxu0 %v1550
          %2336 = vmatprep.subr.mxu0 %v1547
          %2337 = vmatpush1.msra.mxu0 %v1546
          %2338 = vmatprep.subr.mxu0 %v1543
          %2339 = vmatpush1.msra.mxu0 %v1542
          %2340 = vmatprep.subr.mxu0 %v1539
          %2341 = vmatpush1.msra.mxu0 %v1538
          %2342 = vmatprep.subr.mxu0 %v1535
          %2343 = vmatpush1.msra.mxu0 %v1534
          %2344 = vmatprep.subr.mxu0 %v1531
          %2345 = vmatpush1.msra.mxu0 %v1530
          %2346 = vmatprep.subr.mxu0 %v1527
          %2347 = vmatpush1.msra.mxu0 %v1526
          %2348 = vmatprep.subr.mxu0 %v1523
          %2349 = vmatpush1.msra.mxu0 %v1522
          %2350 = vmatprep.subr.mxu0 %v1519
          %2351 = vmatpush1.msra.mxu0 %v1518
          %2352 = vmatprep.subr.mxu0 %v1515
          %2353 = vmatpush1.msra.mxu0 %v1514
          %2354 = vmatprep.subr.mxu0 %v1511
          %2355 = vmatpush1.msra.mxu0 %v1510
          %2356 = vmatprep.subr.mxu0 %v1507
          %2357 = vmatpush1.msra.mxu0 %v1506
          %2358 = vmatprep.subr.mxu0 0.0
          %2359 = vmatpush2.msra.mxu0 0.0
          %2360 = vmatprep.subr.mxu0 0.0
          %2361 = vmatpush2.msra.mxu0 0.0
          %2362 = vmatprep.subr.mxu0 0.0
          %2363 = vmatpush2.msra.mxu0 0.0
          %2364 = vmatprep.subr.mxu0 0.0
          %2365 = vmatpush2.msra.mxu0 0.0
          %2366 = vmatprep.subr.mxu0 0.0
          %2367 = vmatpush2.msra.mxu0 0.0
          %2368 = vmatprep.subr.mxu0 0.0
          %2369 = vmatpush2.msra.mxu0 0.0
          %2370 = vmatprep.subr.mxu0 0.0
          %2371 = vmatpush2.msra.mxu0 0.0
          %2372 = vmatprep.subr.mxu0 0.0
          %2373 = vmatpush2.msra.mxu0 0.0
          %2374 = vmatprep.subr.mxu0 0.0
          %2375 = vmatpush2.msra.mxu0 0.0
          %2376 = vmatprep.subr.mxu0 0.0
          %2377 = vmatpush2.msra.mxu0 0.0
          %2378 = vmatprep.subr.mxu0 0.0
          %2379 = vmatpush2.msra.mxu0 0.0
          %2380 = vmatprep.subr.mxu0 0.0
          %2381 = vmatpush2.msra.mxu0 0.0
          %2382 = vmatprep.subr.mxu0 0.0
          %2383 = vmatpush2.msra.mxu0 0.0
          %2384 = vmatprep.subr.mxu0 0.0
          %2385 = vmatpush2.msra.mxu0 0.0
          %2386 = vmatprep.subr.mxu0 0.0
          %2387 = vmatpush2.msra.mxu0 0.0
          %2388 = vmatprep.subr.mxu0 0.0
          %2389 = vmatpush2.msra.mxu0 0.0
          %2390 = vmatprep.mubr.f32.mxu0 0.0
          %2391 = vmatmul.mubr.f32.gmra.mxu0 %v2321
          %v2392 = vpop.f32.mrf.mxu0
          %v2393 = vadd.f32 0.0, %v2392
          %v2394 = vpop.f32.mrf.mxu0
          %v2395 = vadd.f32 0.0, %v2394
          %2396 = vdwg.mxu0
          %2397 = vmatprep.subr.mxu0 %v1569
          %2398 = vmatpush1.msra.mxu0 %v1568
          %2399 = vmatprep.subr.mxu0 %v1565
          %2400 = vmatpush1.msra.mxu0 %v1564
          %2401 = vmatprep.subr.mxu0 %v1561
          %2402 = vmatpush1.msra.mxu0 %v1560
          %2403 = vmatprep.subr.mxu0 %v1557
          %2404 = vmatpush1.msra.mxu0 %v1556
          %2405 = vmatprep.subr.mxu0 %v1553
          %2406 = vmatpush1.msra.mxu0 %v1552
          %2407 = vmatprep.subr.mxu0 %v1549
          %2408 = vmatpush1.msra.mxu0 %v1548
          %2409 = vmatprep.subr.mxu0 %v1545
          %2410 = vmatpush1.msra.mxu0 %v1544
          %2411 = vmatprep.subr.mxu0 %v1541
          %2412 = vmatpush1.msra.mxu0 %v1540
          %2413 = vmatprep.subr.mxu0 %v1537
          %2414 = vmatpush1.msra.mxu0 %v1536
          %2415 = vmatprep.subr.mxu0 %v1533
          %2416 = vmatpush1.msra.mxu0 %v1532
          %2417 = vmatprep.subr.mxu0 %v1529
          %2418 = vmatpush1.msra.mxu0 %v1528
          %2419 = vmatprep.subr.mxu0 %v1525
          %2420 = vmatpush1.msra.mxu0 %v1524
          %2421 = vmatprep.subr.mxu0 %v1521
          %2422 = vmatpush1.msra.mxu0 %v1520
          %2423 = vmatprep.subr.mxu0 %v1517
          %2424 = vmatpush1.msra.mxu0 %v1516
          %2425 = vmatprep.subr.mxu0 %v1513
          %2426 = vmatpush1.msra.mxu0 %v1512
          %2427 = vmatprep.subr.mxu0 %v1509
          %2428 = vmatpush1.msra.mxu0 %v1508
          %2429 = vmatprep.subr.mxu0 0.0
          %2430 = vmatpush2.msra.mxu0 0.0
          %2431 = vmatprep.subr.mxu0 0.0
          %2432 = vmatpush2.msra.mxu0 0.0
          %2433 = vmatprep.subr.mxu0 0.0
          %2434 = vmatpush2.msra.mxu0 0.0
          %2435 = vmatprep.subr.mxu0 0.0
          %2436 = vmatpush2.msra.mxu0 0.0
          %2437 = vmatprep.subr.mxu0 0.0
          %2438 = vmatpush2.msra.mxu0 0.0
          %2439 = vmatprep.subr.mxu0 0.0
          %2440 = vmatpush2.msra.mxu0 0.0
          %2441 = vmatprep.subr.mxu0 0.0
          %2442 = vmatpush2.msra.mxu0 0.0
          %2443 = vmatprep.subr.mxu0 0.0
          %2444 = vmatpush2.msra.mxu0 0.0
          %2445 = vmatprep.subr.mxu0 0.0
          %2446 = vmatpush2.msra.mxu0 0.0
          %2447 = vmatprep.subr.mxu0 0.0
          %2448 = vmatpush2.msra.mxu0 0.0
          %2449 = vmatprep.subr.mxu0 0.0
          %2450 = vmatpush2.msra.mxu0 0.0
          %2451 = vmatprep.subr.mxu0 0.0
          %2452 = vmatpush2.msra.mxu0 0.0
          %2453 = vmatprep.subr.mxu0 0.0
          %2454 = vmatpush2.msra.mxu0 0.0
          %2455 = vmatprep.subr.mxu0 0.0
          %2456 = vmatpush2.msra.mxu0 0.0
          %2457 = vmatprep.subr.mxu0 0.0
          %2458 = vmatpush2.msra.mxu0 0.0
          %2459 = vmatprep.subr.mxu0 0.0
          %2460 = vmatpush2.msra.mxu0 0.0
          %2461 = vmatprep.mubr.f32.mxu0 0.0
          %2462 = vmatmul.mubr.f32.gmra.mxu0 %v2321
          %v2463 = vpop.f32.mrf.mxu0
          %v2464 = vadd.f32 0.0, %v2463
          %v2465 = vpop.f32.mrf.mxu0
          %v2466 = vadd.f32 0.0, %v2465
          %2467 = vdwg.mxu0
          %v2468 = vadd.f32 %v2322, %v2393
          %v2469 = vadd.f32 %v2323, %v2395
          %v2470 = vadd.f32 %v2324, %v2464
          %v2471 = vadd.f32 %v2325, %v2466
          %v2472 = vxor.u32 %v2468, 2147483648
          %v2473 = vmul.f32 %v2472, 1.442695
          %v2474 = vpow.pop %v2473
          %v2475 = vadd.f32 %v2474, 1.0
          %v2476 = vrcp.pop %v2475
          %v2477 = vmul.f32 1.0, %v2476
          %v2478 = vxor.u32 %v2469, 2147483648
          %v2479 = vmul.f32 %v2478, 1.442695
          %v2480 = vpow.pop %v2479
          %v2481 = vadd.f32 %v2480, 1.0
          %v2482 = vrcp.pop %v2481
          %v2483 = vmul.f32 1.0, %v2482
          %v2484 = vtanh.pop %v2470
          %v2485 = vxor.u32 %v2471, 2147483648
          %v2486 = vmul.f32 %v2485, 1.442695
          %v2487 = vpow.pop %v2486
          %v2488 = vadd.f32 %v2487, 1.0
          %v2489 = vrcp.pop %v2488
          %v2490 = vmul.f32 1.0, %v2489
          %v2491 = vmul.f32 %v2483, %v2319
          %v2492 = vmul.f32 %v2477, %v2484
          %v2493 = vadd.f32 %v2491, %v2492
          %v2494 = vtanh.pop %v2493
          %v2495 = vmul.f32 %v2490, %v2494
        $region76: #{lstm_encoder_forward.1} parent=55 // loop_footer
          %s1576 = sadd.s32 1, %s1572
        $region77: #{lstm_encoder_forward.1} parent=55 // loop_footer_branch
          %1571 = sbr.rel target = $region73
        $region78: #{lstm_encoder_forward.1} parent=55 // loop_exit
          _
        %v2496 = vld [vmem:[#allocation6 + $0x80] sm:$0xff]
        %v2497 = vld [vmem:[#allocation6 + $0x88] sm:$0xff]
        %v2498 = vld [vmem:[#allocation6 + $0x90] sm:$0xff]
        %v2499 = vld [vmem:[#allocation6 + $0x98] sm:$0xff]
        %v2500 = vld [vmem:[#allocation6 + $0xa0] sm:$0xff]
        %v2501 = vld [vmem:[#allocation6 + $0xa8] sm:$0xff]
        %v2502 = vld [vmem:[#allocation6 + $0xb0] sm:$0xff]
        %v2503 = vld [vmem:[#allocation6 + $0xb8] sm:$0xff]
        %v2504 = vld [vmem:[#allocation6 + $0xc0] sm:$0xff]
        %v2505 = vld [vmem:[#allocation6 + $0xc8] sm:$0xff]
        %v2506 = vld [vmem:[#allocation6 + $0xd0] sm:$0xff]
        %v2507 = vld [vmem:[#allocation6 + $0xd8] sm:$0xff]
        %v2508 = vld [vmem:[#allocation6 + $0xe0] sm:$0xff]
        %v2509 = vld [vmem:[#allocation6 + $0xe8] sm:$0xff]
        %v2510 = vld [vmem:[#allocation6 + $0xf0] sm:$0xff]
        %v2511 = vld [vmem:[#allocation6 + $0xf8] sm:$0xff]
        %2512 = vmatprep.subr.mxu0 0.0
        %2513 = vmatpush1.msra.mxu0 %v2511
        %2514 = vmatprep.subr.mxu0 0.0
        %2515 = vmatpush1.msra.mxu0 %v2510
        %2516 = vmatprep.subr.mxu0 0.0
        %2517 = vmatpush1.msra.mxu0 %v2509
        %2518 = vmatprep.subr.mxu0 0.0
        %2519 = vmatpush1.msra.mxu0 %v2508
        %2520 = vmatprep.subr.mxu0 0.0
        %2521 = vmatpush1.msra.mxu0 %v2507
        %2522 = vmatprep.subr.mxu0 0.0
        %2523 = vmatpush1.msra.mxu0 %v2506
        %2524 = vmatprep.subr.mxu0 0.0
        %2525 = vmatpush1.msra.mxu0 %v2505
        %2526 = vmatprep.subr.mxu0 0.0
        %2527 = vmatpush1.msra.mxu0 %v2504
        %2528 = vmatprep.subr.mxu0 0.0
        %2529 = vmatpush1.msra.mxu0 %v2503
        %2530 = vmatprep.subr.mxu0 0.0
        %2531 = vmatpush1.msra.mxu0 %v2502
        %2532 = vmatprep.subr.mxu0 0.0
        %2533 = vmatpush1.msra.mxu0 %v2501
        %2534 = vmatprep.subr.mxu0 0.0
        %2535 = vmatpush1.msra.mxu0 %v2500
        %2536 = vmatprep.subr.mxu0 0.0
        %2537 = vmatpush1.msra.mxu0 %v2499
        %2538 = vmatprep.subr.mxu0 0.0
        %2539 = vmatpush1.msra.mxu0 %v2498
        %2540 = vmatprep.subr.mxu0 0.0
        %2541 = vmatpush1.msra.mxu0 %v2497
        %2542 = vmatprep.subr.mxu0 0.0
        %2543 = vmatpush1.msra.mxu0 %v2496
        %2544 = vmatprep.subr.mxu0 0.0
        %2545 = vmatpush2.msra.mxu0 0.0
        %2546 = vmatprep.subr.mxu0 0.0
        %2547 = vmatpush2.msra.mxu0 0.0
        %2548 = vmatprep.subr.mxu0 0.0
        %2549 = vmatpush2.msra.mxu0 0.0
        %2550 = vmatprep.subr.mxu0 0.0
        %2551 = vmatpush2.msra.mxu0 0.0
        %2552 = vmatprep.subr.mxu0 0.0
        %2553 = vmatpush2.msra.mxu0 0.0
        %2554 = vmatprep.subr.mxu0 0.0
        %2555 = vmatpush2.msra.mxu0 0.0
        %2556 = vmatprep.subr.mxu0 0.0
        %2557 = vmatpush2.msra.mxu0 0.0
        %2558 = vmatprep.subr.mxu0 0.0
        %2559 = vmatpush2.msra.mxu0 0.0
        %2560 = vmatprep.subr.mxu0 0.0
        %2561 = vmatpush2.msra.mxu0 0.0
        %2562 = vmatprep.subr.mxu0 0.0
        %2563 = vmatpush2.msra.mxu0 0.0
        %2564 = vmatprep.subr.mxu0 0.0
        %2565 = vmatpush2.msra.mxu0 0.0
        %2566 = vmatprep.subr.mxu0 0.0
        %2567 = vmatpush2.msra.mxu0 0.0
        %2568 = vmatprep.subr.mxu0 0.0
        %2569 = vmatpush2.msra.mxu0 0.0
        %2570 = vmatprep.subr.mxu0 0.0
        %2571 = vmatpush2.msra.mxu0 0.0
        %2572 = vmatprep.subr.mxu0 0.0
        %2573 = vmatpush2.msra.mxu0 0.0
        %2574 = vmatprep.subr.mxu0 0.0
        %2575 = vmatpush2.msra.mxu0 0.0
        %2576 = vmatprep.mubr.f32.mxu0 0.0
        %2577 = vmatmul.mubr.f32.gmra.mxu0 %v1577
        %v2578 = vpop.f32.mrf.mxu0
        %v2579 = vadd.f32 0.0, %v2578
        %v2580 = vpop.f32.mrf.mxu0
        %2581 = vdwg.mxu0
        %2582 = vmatprep.subr.mxu0 0.0
        %2583 = vmatpush1.msra.mxu0 %v1441
        %2584 = vmatprep.subr.mxu0 0.0
        %2585 = vmatpush1.msra.mxu0 %v1440
        %2586 = vmatprep.subr.mxu0 0.0
        %2587 = vmatpush1.msra.mxu0 %v1439
        %2588 = vmatprep.subr.mxu0 0.0
        %2589 = vmatpush1.msra.mxu0 %v1438
        %2590 = vmatprep.subr.mxu0 0.0
        %2591 = vmatpush1.msra.mxu0 %v1437
        %2592 = vmatprep.subr.mxu0 0.0
        %2593 = vmatpush1.msra.mxu0 %v1436
        %2594 = vmatprep.subr.mxu0 0.0
        %2595 = vmatpush1.msra.mxu0 %v1435
        %2596 = vmatprep.subr.mxu0 0.0
        %2597 = vmatpush1.msra.mxu0 %v1434
        %2598 = vmatprep.subr.mxu0 0.0
        %2599 = vmatpush1.msra.mxu0 %v1433
        %2600 = vmatprep.subr.mxu0 0.0
        %2601 = vmatpush1.msra.mxu0 %v1432
        %2602 = vmatprep.subr.mxu0 0.0
        %2603 = vmatpush1.msra.mxu0 %v1431
        %2604 = vmatprep.subr.mxu0 0.0
        %2605 = vmatpush1.msra.mxu0 %v1430
        %2606 = vmatprep.subr.mxu0 0.0
        %2607 = vmatpush1.msra.mxu0 %v1429
        %2608 = vmatprep.subr.mxu0 0.0
        %2609 = vmatpush1.msra.mxu0 %v1428
        %2610 = vmatprep.subr.mxu0 0.0
        %2611 = vmatpush1.msra.mxu0 %v1427
        %2612 = vmatprep.subr.mxu0 0.0
        %2613 = vmatpush1.msra.mxu0 %v1426
        %2614 = vmatprep.subr.mxu0 0.0
        %2615 = vmatpush2.msra.mxu0 0.0
        %2616 = vmatprep.subr.mxu0 0.0
        %2617 = vmatpush2.msra.mxu0 0.0
        %2618 = vmatprep.subr.mxu0 0.0
        %2619 = vmatpush2.msra.mxu0 0.0
        %2620 = vmatprep.subr.mxu0 0.0
        %2621 = vmatpush2.msra.mxu0 0.0
        %2622 = vmatprep.subr.mxu0 0.0
        %2623 = vmatpush2.msra.mxu0 0.0
        %2624 = vmatprep.subr.mxu0 0.0
        %2625 = vmatpush2.msra.mxu0 0.0
        %2626 = vmatprep.subr.mxu0 0.0
        %2627 = vmatpush2.msra.mxu0 0.0
        %2628 = vmatprep.subr.mxu0 0.0
        %2629 = vmatpush2.msra.mxu0 0.0
        %2630 = vmatprep.subr.mxu0 0.0
        %2631 = vmatpush2.msra.mxu0 0.0
        %2632 = vmatprep.subr.mxu0 0.0
        %2633 = vmatpush2.msra.mxu0 0.0
        %2634 = vmatprep.subr.mxu0 0.0
        %2635 = vmatpush2.msra.mxu0 0.0
        %2636 = vmatprep.subr.mxu0 0.0
        %2637 = vmatpush2.msra.mxu0 0.0
        %2638 = vmatprep.subr.mxu0 0.0
        %2639 = vmatpush2.msra.mxu0 0.0
        %2640 = vmatprep.subr.mxu0 0.0
        %2641 = vmatpush2.msra.mxu0 0.0
        %2642 = vmatprep.subr.mxu0 0.0
        %2643 = vmatpush2.msra.mxu0 0.0
        %2644 = vmatprep.subr.mxu0 0.0
        %2645 = vmatpush2.msra.mxu0 0.0
        %2646 = vmatprep.mubr.f32.mxu0 0.0
        %2647 = vmatmul.mubr.f32.gmra.mxu0 %v496
        %v2648 = vpop.f32.mrf.mxu0
        %v2649 = vadd.f32 %v2579, %v2648
        %v2650 = vpop.f32.mrf.mxu0
        %2651 = vdwg.mxu0
        %v2652 = vld [vmem:[%s8] sm:$0x1]
        %v2654 = vlaneseq
        %v2655 = vshrl.u32 %v2654, 7
        %v2656 = vsub.s32 0, %v2655
        %v2657 = vrot.slane %v2652, %v2656
        %v2659 = vadd.f32 %v2649, %v2657
        %2660 = vst [vmem:[%s360] sm:$0xff] %v2659
        %p2661 = scmp.lt.s32.totalorder %s22, 1
        %s2662 = scalar_select %p2661, %s22, 1
        %s2663 = smul.addr %s2662, 8
        %s2664 = scalar_lea.vmem %s9, %s2663
        // Predicated region
        $region79: #{lstm_encoder_forward.1} parent=55 // pred_check
          %p2665 = pneg %p234
        $region80: #{lstm_encoder_forward.1} parent=55 // pred_check_branch
          %2667 = sbr.rel (%p2665) target = $region82
        $region81: #{lstm_encoder_forward.1} parent=55 // pred_region
          _
        $region82: #{lstm_encoder_forward.1} parent=55 // pred_fallthru
          _
      $region56: #{lstm_encoder_forward.1} parent=5 // pred_fallthru
        _
      %p2668 = scmp.le.s32.totalorder 2, %s17
      // Predicated region
      $region83: #{lstm_encoder_forward.1} parent=5 // pred_check
        %p2669 = pneg %p2668
      $region84: #{lstm_encoder_forward.1} parent=5 // pred_check_branch
        %2671 = sbr.rel (%p2669) target = $region86
      $region85: #{lstm_encoder_forward.1} parent=5 // pred_region
        %s2672 = ssub.s32 %s17, 2
        // Predicated region
        $region87: #{lstm_encoder_forward.1} parent=85 // pred_check
          %p2673 = pneg %p240
        $region88: #{lstm_encoder_forward.1} parent=85 // pred_check_branch
          %2675 = sbr.rel (%p2673) target = $region90
        $region89: #{lstm_encoder_forward.1} parent=85 // pred_region
          %p2676 = scmp.lt.s32.totalorder %s23, 1
          %s2677 = scalar_select %p2676, %s23, 1
          %s2678 = smul.addr %s2677, 8
          %s2679 = scalar_lea.vmem %s9, %s2678
        $region90: #{lstm_encoder_forward.1} parent=85 // pred_fallthru
          _
      $region86: #{lstm_encoder_forward.1} parent=5 // pred_fallthru
        _
    $region6: #{lstm_encoder_forward.1} parent=1 // loop_footer
      %s21 = sadd.s32 1, %s17
    $region7: #{lstm_encoder_forward.1} parent=1 // loop_footer_branch
      %16 = sbr.rel target = $region3
    $region8: #{lstm_encoder_forward.1} parent=1 // loop_exit
      _
    %2680 = vsyncpa [#allocation5], 1
    %s2681 = scalar_lea.sflag [#allocation5], 1
    %2682 = vsyncpa %s2681, 1
    %2683 = vsyncpa [#allocation7], 1

</llo_original>
